<compile_context>
chip_gen: v6e
topology: v6e:2x2x1
jax: 0.10.0
libtpu: 0.0.40
codegen_flags: <defaults>
</compile_context>

<pallas_src>
import functools

import jax
import jax.numpy as jnp
from jax import lax
from jax.experimental import pallas as pl
from jax.experimental.pallas import tpu as pltpu


# ----------------------------- Pallas kernel ------------------------------- #

def _fused_spectral_conv_kernel(x_ref, w_ref, b_ref, o_ref, *, kh, kw, tr, ow):
    # x_ref: (tr + kh - 1, ow + kw - 1, C)   bf16 halo tile of the padded input
    # w_ref: (kh * kw, C, O_pad)             bf16, spectral-normed * k_lipschitz
    # b_ref: (1, O_pad)                      f32,  bias * k_lipschitz
    # o_ref: (tr * ow, O_pad)                f32, lane-dense output tile
    m = tr * ow
    o_pad = o_ref.shape[-1]
    acc = jnp.zeros((m, o_pad), jnp.float32)
    # Fused im2col: KH*KW accumulated dots against (C, O_pad) weight taps.
    for ih in range(kh):
        for iw in range(kw):
            xs = x_ref[ih:ih + tr, iw:iw + ow, :]          # (tr, ow, C)
            xs = xs.reshape(m, xs.shape[-1])               # collapse leading dims
            acc = acc + jnp.dot(xs, w_ref[ih * kw + iw],
                                preferred_element_type=jnp.float32)
    o_ref[...] = (acc + b_ref[...]).astype(o_ref.dtype)


# ------------------------------ conv wrapper -------------------------------- #

def _round_up(x, m):
    return ((x + m - 1) // m) * m


def spectral_conv2d(x, weight_orig, bias, u, *, padding, k_lipschitz,
                    target_m_rows=512, compute_dtype=jnp.bfloat16):
    """x: (N, C, H, W) f32; weight_orig: (O, C, KH, KW); bias: (O,); u: (O,).

    Returns (y (N, O, OH, OW) f32, updated power-iteration vector u).
    """
    N, C, H, W = x.shape
    O, _, KH, KW = weight_orig.shape
    OH = H + 2 * padding - KH + 1
    OW = W + 2 * padding - KW + 1

    # --- spectral norm (one power iteration) + k_lipschitz fold (tiny, JAX) ---
    eps = 1e-12
    w_mat = weight_orig.reshape(O, -1)
    v = w_mat.T @ u
    v = v / (jnp.linalg.norm(v) + eps)
    u_new = w_mat @ v
    u_new = u_new / (jnp.linalg.norm(u_new) + eps)
    sigma = u_new @ (w_mat @ v)
    w_eff = weight_orig * (k_lipschitz / sigma)            # (O, C, KH, KW)
    b_eff = k_lipschitz * bias                             # (O,)

    # --- weight / bias prep: (KH*KW, C, O_pad) pre-transposed, lane-dense O ---
    O_pad = _round_up(O, 128)
    w_taps = jnp.transpose(w_eff, (2, 3, 1, 0)).reshape(KH * KW, C, O)
    w_taps = jnp.pad(w_taps, ((0, 0), (0, 0), (0, O_pad - O))).astype(compute_dtype)
    b_row = jnp.pad(b_eff, (0, O_pad - O)).reshape(1, O_pad).astype(jnp.float32)

    # --- input prep: NCHW -> NHWC, zero-pad, overlapping halo row-tiles ---
    tr = max(1, min(OH, -(-target_m_rows // OW)))          # TR*OW ~ target_m_rows
    n_tiles = -(-OH // tr)
    OH_pad = n_tiles * tr
    x_nhwc = jnp.transpose(x, (0, 2, 3, 1)).astype(jnp.float32)
    xp = jnp.pad(x_nhwc, ((0, 0),
                          (padding, padding + (OH_pad - OH)),
                          (padding, padding),
                          (0, 0)))
    halo = tr + KH - 1
    pw = W + 2 * padding
    tiles = jnp.stack([xp[:, i * tr:i * tr + halo, :, :] for i in range(n_tiles)],
                      axis=1).astype(compute_dtype)        # (N, n_tiles, halo, pw, C)

    m_tile = tr * OW
    kernel = functools.partial(_fused_spectral_conv_kernel,
                               kh=KH, kw=KW, tr=tr, ow=OW)

    out = pl.pallas_call(
        kernel,
        out_shape=jax.ShapeDtypeStruct((N, n_tiles, m_tile, O_pad), jnp.float32),
        grid_spec=pltpu.PrefetchScalarGridSpec(
            num_scalar_prefetch=0,
            grid=(N, n_tiles),
            in_specs=[
                # halo tile of the padded input (pipelined / double-buffered)
                pl.BlockSpec((None, None, halo, pw, C), lambda n, i: (n, i, 0, 0, 0)),
                # resident weight taps + bias (constant index_map).
                # TODO(synk): on v7x, mark these pipeline_mode=pl.Buffered(1) and add a
                # K ("arbitrary") grid axis + f32 VMEM accumulator once C is large enough
                # that the full (KH*KW, C, O_pad) weight stops fitting 64 MiB VMEM.
                pl.BlockSpec((KH * KW, C, O_pad), lambda n, i: (0, 0, 0)),
                pl.BlockSpec((1, O_pad), lambda n, i: (0, 0)),
            ],
            out_specs=pl.BlockSpec((None, None, m_tile, O_pad),
                                   lambda n, i: (n, i, 0, 0)),
        ),
        compiler_params=pltpu.CompilerParams(
            dimension_semantics=("parallel", "parallel"),
            vmem_limit_bytes=64 * 1024 * 1024,
        ),
    )(tiles, w_taps, b_row)

    out = out.reshape(N, OH_pad, OW, O_pad)[:, :OH, :, :O]
    return jnp.transpose(out, (0, 3, 1, 2)), u_new         # NCHW


# --------------------------- SpectralConv module ---------------------------- #

class SpectralConvPallas:
    """JAX/Pallas equivalent of the PyTorch SpectralConv module."""

    def __init__(self, input_dim, output_dim, kernel_dim, padding,
                 k_lipschitz=1.0, key=None):
        self.input_dim = input_dim
        self.output_dim = output_dim
        self.kernel_dim = kernel_dim
        self.padding = padding
        self.k_lipschitz = float(k_lipschitz)

        if key is None:
            key = jax.random.PRNGKey(0)
        kw_key, kb_key, ku_key = jax.random.split(key, 3)

        fan_in = input_dim * kernel_dim * kernel_dim
        bound = 1.0 / jnp.sqrt(fan_in)  # matches torch Conv2d default init bounds
        self.weight_orig = jax.random.uniform(
            kw_key, (output_dim, input_dim, kernel_dim, kernel_dim),
            minval=-bound, maxval=bound, dtype=jnp.float32)
        self.bias = jax.random.uniform(
            kb_key, (output_dim,), minval=-bound, maxval=bound, dtype=jnp.float32)
        u0 = jax.random.normal(ku_key, (output_dim,), dtype=jnp.float32)
        self.u = u0 / (jnp.linalg.norm(u0) + 1e-12)

    def __call__(self, x):
        """x: (N, C, H, W) f32 NCHW. Returns (N, O, OH, OW) f32."""
        y, u_new = spectral_conv2d(
            x, self.weight_orig, self.bias, self.u,
            padding=self.padding, k_lipschitz=self.k_lipschitz)
        self.u = u_new   # persist power-iteration vector like torch (train mode)
        return y


# --------------------------------- main ------------------------------------ #

if __name__ == "__main__":
    key = jax.random.PRNGKey(0)
    x_key, p_key = jax.random.split(key)

    # Small shapes: batch=2, input_dim=4, output_dim=8, spatial=16, 3x3 conv, pad=1.
    N, C, H, W = 2, 4, 16, 16
    O, KD, PAD, KLIP = 8, 3, 1, 0.5
    x = jax.random.normal(x_key, (N, C, H, W), dtype=jnp.float32)

    module = SpectralConvPallas(input_dim=C, output_dim=O, kernel_dim=KD,
                                padding=PAD, k_lipschitz=KLIP, key=p_key)

    u0 = module.u                      # snapshot so the reference uses the same u
    y = jax.block_until_ready(module(x))

    # --- reference: same spectral-norm / k_lipschitz fold, XLA conv ---
    eps = 1e-12
    w_mat = module.weight_orig.reshape(O, -1)
    v = w_mat.T @ u0
    v = v / (jnp.linalg.norm(v) + eps)
    u1 = w_mat @ v
    u1 = u1 / (jnp.linalg.norm(u1) + eps)
    sigma = u1 @ (w_mat @ v)
    w_eff = module.weight_orig * (KLIP / sigma)
    b_eff = KLIP * module.bias

    # (a) bit-comparable reference: same bf16 operands, f32 accumulation
    y_bf = lax.conv_general_dilated(
        x.astype(jnp.bfloat16), w_eff.astype(jnp.bfloat16),
        window_strides=(1, 1), padding=((PAD, PAD), (PAD, PAD)),
        dimension_numbers=("NCHW", "OIHW", "NCHW"),
        preferred_element_type=jnp.float32) + b_eff.reshape(1, -1, 1, 1)
    # (b) full-f32 reference (module semantics), loose tol for bf16 input rounding
    y_f32 = lax.conv_general_dilated(
        x, w_eff, window_strides=(1, 1), padding=((PAD, PAD), (PAD, PAD)),
        dimension_numbers=("NCHW", "OIHW", "NCHW")) + b_eff.reshape(1, -1, 1, 1)

    assert y.shape == (N, O, H, W), y.shape
    assert jnp.allclose(y, y_bf, atol=1e-3, rtol=1e-3), float(jnp.max(jnp.abs(y - y_bf)))
    assert jnp.allclose(y, y_f32, atol=5e-2, rtol=5e-2), float(jnp.max(jnp.abs(y - y_f32)))

    print("KERNEL_OK")
</pallas_src>

<mosaic_0001>
module attributes {stable_mosaic.version = 11 : i64} {
  func.func @_fused_spectral_conv_kernel(%arg0: i32, %arg1: i32, %arg2: memref<1x1x18x18x4xbf16, #tpu.memory_space<vmem>>, %arg3: memref<9x4x128xbf16, #tpu.memory_space<vmem>>, %arg4: memref<1x128xf32, #tpu.memory_space<vmem>>, %arg5: memref<1x1x256x128xf32, #tpu.memory_space<vmem>>) attributes {dimension_semantics = [#tpu.dimension_semantics<parallel>, #tpu.dimension_semantics<parallel>], iteration_bounds = array<i64: 2, 1>, scalar_prefetch = 0 : i64, scratch_operands = 0 : i64, tpu.core_type = #tpu.core_type<tc>, window_params = [{transform_indices = @transform_0, window_bounds = array<i64: 1, 1, 18, 18, 4>}, {pipeline_mode = #tpu.pipeline_mode<synchronous>, transform_indices = @transform_1, window_bounds = array<i64: 9, 4, 128>}, {pipeline_mode = #tpu.pipeline_mode<synchronous>, transform_indices = @transform_2, window_bounds = array<i64: 1, 128>}, {transform_indices = @transform_3, window_bounds = array<i64: 1, 1, 256, 128>}]} {
    %cst = arith.constant 0.000000e+00 : f32
    %0 = vector.broadcast %cst : f32 to vector<256x128xf32>
    %c0 = arith.constant 0 : index
    %c0_0 = arith.constant 0 : index
    %c0_1 = arith.constant 0 : index
    %c0_2 = arith.constant 0 : index
    %c0_3 = arith.constant 0 : index
    %1 = vector.load %arg2[%c0, %c0_0, %c0_1, %c0_2, %c0_3] : memref<1x1x18x18x4xbf16, #tpu.memory_space<vmem>>, vector<1x1x16x16x4xbf16>
    %2 = vector.shape_cast %1 : vector<1x1x16x16x4xbf16> to vector<16x16x4xbf16>
    %3 = vector.shape_cast %2 : vector<16x16x4xbf16> to vector<256x4xbf16>
    %c0_4 = arith.constant 0 : index
    %c0_5 = arith.constant 0 : index
    %c0_6 = arith.constant 0 : index
    %4 = vector.load %arg3[%c0_4, %c0_5, %c0_6] : memref<9x4x128xbf16, #tpu.memory_space<vmem>>, vector<1x4x128xbf16>
    %5 = vector.shape_cast %4 : vector<1x4x128xbf16> to vector<4x128xbf16>
    %cst_7 = arith.constant dense<0.000000e+00> : vector<256x128xf32>
    %6 = tpu.matmul %3, %5, %cst_7 {dimension_numbers = #tpu.dot_dimension_numbers<[1], [0], [0], [1], [0, 0, 1, 1], [], []>} : vector<256x4xbf16>, vector<4x128xbf16>, vector<256x128xf32> -> vector<256x128xf32>
    %7 = arith.addf %0, %6 : vector<256x128xf32>
    %c0_8 = arith.constant 0 : index
    %c0_9 = arith.constant 0 : index
    %c0_10 = arith.constant 0 : index
    %c1 = arith.constant 1 : index
    %c0_11 = arith.constant 0 : index
    %8 = vector.load %arg2[%c0_8, %c0_9, %c0_10, %c1, %c0_11] : memref<1x1x18x18x4xbf16, #tpu.memory_space<vmem>>, vector<1x1x16x16x4xbf16>
    %9 = vector.shape_cast %8 : vector<1x1x16x16x4xbf16> to vector<16x16x4xbf16>
    %10 = vector.shape_cast %9 : vector<16x16x4xbf16> to vector<256x4xbf16>
    %c1_12 = arith.constant 1 : index
    %c0_13 = arith.constant 0 : index
    %c0_14 = arith.constant 0 : index
    %11 = vector.load %arg3[%c1_12, %c0_13, %c0_14] : memref<9x4x128xbf16, #tpu.memory_space<vmem>>, vector<1x4x128xbf16>
    %12 = vector.shape_cast %11 : vector<1x4x128xbf16> to vector<4x128xbf16>
    %cst_15 = arith.constant dense<0.000000e+00> : vector<256x128xf32>
    %13 = tpu.matmul %10, %12, %cst_15 {dimension_numbers = #tpu.dot_dimension_numbers<[1], [0], [0], [1], [0, 0, 1, 1], [], []>} : vector<256x4xbf16>, vector<4x128xbf16>, vector<256x128xf32> -> vector<256x128xf32>
    %14 = arith.addf %7, %13 : vector<256x128xf32>
    %c0_16 = arith.constant 0 : index
    %c0_17 = arith.constant 0 : index
    %c0_18 = arith.constant 0 : index
    %c2 = arith.constant 2 : index
    %c0_19 = arith.constant 0 : index
    %15 = vector.load %arg2[%c0_16, %c0_17, %c0_18, %c2, %c0_19] : memref<1x1x18x18x4xbf16, #tpu.memory_space<vmem>>, vector<1x1x16x16x4xbf16>
    %16 = vector.shape_cast %15 : vector<1x1x16x16x4xbf16> to vector<16x16x4xbf16>
    %17 = vector.shape_cast %16 : vector<16x16x4xbf16> to vector<256x4xbf16>
    %c2_20 = arith.constant 2 : index
    %c0_21 = arith.constant 0 : index
    %c0_22 = arith.constant 0 : index
    %18 = vector.load %arg3[%c2_20, %c0_21, %c0_22] : memref<9x4x128xbf16, #tpu.memory_space<vmem>>, vector<1x4x128xbf16>
    %19 = vector.shape_cast %18 : vector<1x4x128xbf16> to vector<4x128xbf16>
    %cst_23 = arith.constant dense<0.000000e+00> : vector<256x128xf32>
    %20 = tpu.matmul %17, %19, %cst_23 {dimension_numbers = #tpu.dot_dimension_numbers<[1], [0], [0], [1], [0, 0, 1, 1], [], []>} : vector<256x4xbf16>, vector<4x128xbf16>, vector<256x128xf32> -> vector<256x128xf32>
    %21 = arith.addf %14, %20 : vector<256x128xf32>
    %c0_24 = arith.constant 0 : index
    %c0_25 = arith.constant 0 : index
    %c1_26 = arith.constant 1 : index
    %c0_27 = arith.constant 0 : index
    %c0_28 = arith.constant 0 : index
    %22 = vector.load %arg2[%c0_24, %c0_25, %c1_26, %c0_27, %c0_28] : memref<1x1x18x18x4xbf16, #tpu.memory_space<vmem>>, vector<1x1x16x16x4xbf16>
    %23 = vector.shape_cast %22 : vector<1x1x16x16x4xbf16> to vector<16x16x4xbf16>
    %24 = vector.shape_cast %23 : vector<16x16x4xbf16> to vector<256x4xbf16>
    %c3 = arith.constant 3 : index
    %c0_29 = arith.constant 0 : index
    %c0_30 = arith.constant 0 : index
    %25 = vector.load %arg3[%c3, %c0_29, %c0_30] : memref<9x4x128xbf16, #tpu.memory_space<vmem>>, vector<1x4x128xbf16>
    %26 = vector.shape_cast %25 : vector<1x4x128xbf16> to vector<4x128xbf16>
    %cst_31 = arith.constant dense<0.000000e+00> : vector<256x128xf32>
    %27 = tpu.matmul %24, %26, %cst_31 {dimension_numbers = #tpu.dot_dimension_numbers<[1], [0], [0], [1], [0, 0, 1, 1], [], []>} : vector<256x4xbf16>, vector<4x128xbf16>, vector<256x128xf32> -> vector<256x128xf32>
    %28 = arith.addf %21, %27 : vector<256x128xf32>
    %c0_32 = arith.constant 0 : index
    %c0_33 = arith.constant 0 : index
    %c1_34 = arith.constant 1 : index
    %c1_35 = arith.constant 1 : index
    %c0_36 = arith.constant 0 : index
    %29 = vector.load %arg2[%c0_32, %c0_33, %c1_34, %c1_35, %c0_36] : memref<1x1x18x18x4xbf16, #tpu.memory_space<vmem>>, vector<1x1x16x16x4xbf16>
    %30 = vector.shape_cast %29 : vector<1x1x16x16x4xbf16> to vector<16x16x4xbf16>
    %31 = vector.shape_cast %30 : vector<16x16x4xbf16> to vector<256x4xbf16>
    %c4 = arith.constant 4 : index
    %c0_37 = arith.constant 0 : index
    %c0_38 = arith.constant 0 : index
    %32 = vector.load %arg3[%c4, %c0_37, %c0_38] : memref<9x4x128xbf16, #tpu.memory_space<vmem>>, vector<1x4x128xbf16>
    %33 = vector.shape_cast %32 : vector<1x4x128xbf16> to vector<4x128xbf16>
    %cst_39 = arith.constant dense<0.000000e+00> : vector<256x128xf32>
    %34 = tpu.matmul %31, %33, %cst_39 {dimension_numbers = #tpu.dot_dimension_numbers<[1], [0], [0], [1], [0, 0, 1, 1], [], []>} : vector<256x4xbf16>, vector<4x128xbf16>, vector<256x128xf32> -> vector<256x128xf32>
    %35 = arith.addf %28, %34 : vector<256x128xf32>
    %c0_40 = arith.constant 0 : index
    %c0_41 = arith.constant 0 : index
    %c1_42 = arith.constant 1 : index
    %c2_43 = arith.constant 2 : index
    %c0_44 = arith.constant 0 : index
    %36 = vector.load %arg2[%c0_40, %c0_41, %c1_42, %c2_43, %c0_44] : memref<1x1x18x18x4xbf16, #tpu.memory_space<vmem>>, vector<1x1x16x16x4xbf16>
    %37 = vector.shape_cast %36 : vector<1x1x16x16x4xbf16> to vector<16x16x4xbf16>
    %38 = vector.shape_cast %37 : vector<16x16x4xbf16> to vector<256x4xbf16>
    %c5 = arith.constant 5 : index
    %c0_45 = arith.constant 0 : index
    %c0_46 = arith.constant 0 : index
    %39 = vector.load %arg3[%c5, %c0_45, %c0_46] : memref<9x4x128xbf16, #tpu.memory_space<vmem>>, vector<1x4x128xbf16>
    %40 = vector.shape_cast %39 : vector<1x4x128xbf16> to vector<4x128xbf16>
    %cst_47 = arith.constant dense<0.000000e+00> : vector<256x128xf32>
    %41 = tpu.matmul %38, %40, %cst_47 {dimension_numbers = #tpu.dot_dimension_numbers<[1], [0], [0], [1], [0, 0, 1, 1], [], []>} : vector<256x4xbf16>, vector<4x128xbf16>, vector<256x128xf32> -> vector<256x128xf32>
    %42 = arith.addf %35, %41 : vector<256x128xf32>
    %c0_48 = arith.constant 0 : index
    %c0_49 = arith.constant 0 : index
    %c2_50 = arith.constant 2 : index
    %c0_51 = arith.constant 0 : index
    %c0_52 = arith.constant 0 : index
    %43 = vector.load %arg2[%c0_48, %c0_49, %c2_50, %c0_51, %c0_52] : memref<1x1x18x18x4xbf16, #tpu.memory_space<vmem>>, vector<1x1x16x16x4xbf16>
    %44 = vector.shape_cast %43 : vector<1x1x16x16x4xbf16> to vector<16x16x4xbf16>
    %45 = vector.shape_cast %44 : vector<16x16x4xbf16> to vector<256x4xbf16>
    %c6 = arith.constant 6 : index
    %c0_53 = arith.constant 0 : index
    %c0_54 = arith.constant 0 : index
    %46 = vector.load %arg3[%c6, %c0_53, %c0_54] : memref<9x4x128xbf16, #tpu.memory_space<vmem>>, vector<1x4x128xbf16>
    %47 = vector.shape_cast %46 : vector<1x4x128xbf16> to vector<4x128xbf16>
    %cst_55 = arith.constant dense<0.000000e+00> : vector<256x128xf32>
    %48 = tpu.matmul %45, %47, %cst_55 {dimension_numbers = #tpu.dot_dimension_numbers<[1], [0], [0], [1], [0, 0, 1, 1], [], []>} : vector<256x4xbf16>, vector<4x128xbf16>, vector<256x128xf32> -> vector<256x128xf32>
    %49 = arith.addf %42, %48 : vector<256x128xf32>
    %c0_56 = arith.constant 0 : index
    %c0_57 = arith.constant 0 : index
    %c2_58 = arith.constant 2 : index
    %c1_59 = arith.constant 1 : index
    %c0_60 = arith.constant 0 : index
    %50 = vector.load %arg2[%c0_56, %c0_57, %c2_58, %c1_59, %c0_60] : memref<1x1x18x18x4xbf16, #tpu.memory_space<vmem>>, vector<1x1x16x16x4xbf16>
    %51 = vector.shape_cast %50 : vector<1x1x16x16x4xbf16> to vector<16x16x4xbf16>
    %52 = vector.shape_cast %51 : vector<16x16x4xbf16> to vector<256x4xbf16>
    %c7 = arith.constant 7 : index
    %c0_61 = arith.constant 0 : index
    %c0_62 = arith.constant 0 : index
    %53 = vector.load %arg3[%c7, %c0_61, %c0_62] : memref<9x4x128xbf16, #tpu.memory_space<vmem>>, vector<1x4x128xbf16>
    %54 = vector.shape_cast %53 : vector<1x4x128xbf16> to vector<4x128xbf16>
    %cst_63 = arith.constant dense<0.000000e+00> : vector<256x128xf32>
    %55 = tpu.matmul %52, %54, %cst_63 {dimension_numbers = #tpu.dot_dimension_numbers<[1], [0], [0], [1], [0, 0, 1, 1], [], []>} : vector<256x4xbf16>, vector<4x128xbf16>, vector<256x128xf32> -> vector<256x128xf32>
    %56 = arith.addf %49, %55 : vector<256x128xf32>
    %c0_64 = arith.constant 0 : index
    %c0_65 = arith.constant 0 : index
    %c2_66 = arith.constant 2 : index
    %c2_67 = arith.constant 2 : index
    %c0_68 = arith.constant 0 : index
    %57 = vector.load %arg2[%c0_64, %c0_65, %c2_66, %c2_67, %c0_68] : memref<1x1x18x18x4xbf16, #tpu.memory_space<vmem>>, vector<1x1x16x16x4xbf16>
    %58 = vector.shape_cast %57 : vector<1x1x16x16x4xbf16> to vector<16x16x4xbf16>
    %59 = vector.shape_cast %58 : vector<16x16x4xbf16> to vector<256x4xbf16>
    %c8 = arith.constant 8 : index
    %c0_69 = arith.constant 0 : index
    %c0_70 = arith.constant 0 : index
    %60 = vector.load %arg3[%c8, %c0_69, %c0_70] : memref<9x4x128xbf16, #tpu.memory_space<vmem>>, vector<1x4x128xbf16>
    %61 = vector.shape_cast %60 : vector<1x4x128xbf16> to vector<4x128xbf16>
    %cst_71 = arith.constant dense<0.000000e+00> : vector<256x128xf32>
    %62 = tpu.matmul %59, %61, %cst_71 {dimension_numbers = #tpu.dot_dimension_numbers<[1], [0], [0], [1], [0, 0, 1, 1], [], []>} : vector<256x4xbf16>, vector<4x128xbf16>, vector<256x128xf32> -> vector<256x128xf32>
    %63 = arith.addf %56, %62 : vector<256x128xf32>
    %c0_72 = arith.constant 0 : index
    %c0_73 = arith.constant 0 : index
    %64 = vector.load %arg4[%c0_72, %c0_73] : memref<1x128xf32, #tpu.memory_space<vmem>>, vector<1x128xf32>
    %65 = vector.broadcast %64 : vector<1x128xf32> to vector<256x128xf32>
    %66 = arith.addf %63, %65 : vector<256x128xf32>
    %c0_74 = arith.constant 0 : index
    %c0_75 = arith.constant 0 : index
    %c0_76 = arith.constant 0 : index
    %c0_77 = arith.constant 0 : index
    %67 = vector.load %arg5[%c0_74, %c0_75, %c0_76, %c0_77] : memref<1x1x256x128xf32, #tpu.memory_space<vmem>>, vector<1x1x256x128xf32>
    %68 = vector.shape_cast %67 : vector<1x1x256x128xf32> to vector<256x128xf32>
    %69 = vector.shape_cast %66 : vector<256x128xf32> to vector<1x1x256x128xf32>
    tpu.vector_store %arg5[%c0_74, %c0_75, %c0_76, %c0_77], %69 {strides = array<i32>} : memref<1x1x256x128xf32, #tpu.memory_space<vmem>>, vector<1x1x256x128xf32>,
    return
  }
  func.func @transform_0(%arg0: i32, %arg1: i32) -> (i32, i32, i32, i32, i32) {
    %c0_i32 = arith.constant 0 : i32
    %c0_i32_0 = arith.constant 0 : i32
    %c0_i32_1 = arith.constant 0 : i32
    %c0_i32_2 = arith.constant 0 : i32
    return %arg0, %arg1, %c0_i32, %c0_i32_0, %c0_i32_1 : i32, i32, i32, i32, i32
  }
  func.func @transform_1(%arg0: i32, %arg1: i32) -> (i32, i32, i32) {
    %c0_i32 = arith.constant 0 : i32
    %c0_i32_0 = arith.constant 0 : i32
    %c0_i32_1 = arith.constant 0 : i32
    %c0_i32_2 = arith.constant 0 : i32
    return %c0_i32, %c0_i32_0, %c0_i32_1 : i32, i32, i32
  }
  func.func @transform_2(%arg0: i32, %arg1: i32) -> (i32, i32) {
    %c0_i32 = arith.constant 0 : i32
    %c0_i32_0 = arith.constant 0 : i32
    %c0_i32_1 = arith.constant 0 : i32
    return %c0_i32, %c0_i32_0 : i32, i32
  }
  func.func @transform_3(%arg0: i32, %arg1: i32) -> (i32, i32, i32, i32) {
    %c0_i32 = arith.constant 0 : i32
    %c0_i32_0 = arith.constant 0 : i32
    %c0_i32_1 = arith.constant 0 : i32
    return %arg0, %arg1, %c0_i32, %c0_i32_0 : i32, i32, i32, i32
  }
}

</mosaic_0001>

<llo_original>
// kernel: tpu_custom_call.1
$region0: #{tpu_custom_call.1}
  #allocation0 [shape = 'u32[]', space=smem, size = 0x4, offset = 0x4, fixed_abs, tag = 'smem constant byte address 0x4 - core index']
  #allocation1 [shape = 'u32[144,128]{1,0:T(1,128)}', space=vmem, size = 0x12000, scoped, tag = 'internal scratch']
  %s0 = inlined_call_operand.vmem [shape: bf16[2,1,18,18,4], index: 0, kind: input, shape index: {}]
  %s1 = inlined_call_operand.vmem [shape: bf16[9,4,128], index: 1, kind: input, shape index: {}]
  %s2 = inlined_call_operand.vmem [shape: f32[1,128], index: 2, kind: input, shape index: {}]
  %s3 = inlined_call_operand.hbm [shape: f32[2,1,256,128], index: 3, kind: output, shape index: {}]
  %s4 = sld [smem:[#allocation0]]
  $region45: #{tpu_custom_call.1} parent=0
    _
  %s6 = ssub.s32 1, %s4
  %s7 = scalar_select 0, %s6, %s4
  $region1: #{tpu_custom_call.1} parent=0
    #allocation2 [shape = 'u8[262144]{0}', space=vmem, size = 0x40000, scoped, tag = 'output window, operand 0']
    #allocation3 [shape = 's32[2]{0}', space=sflag, size = 0x8, scoped, tag = 'scoped memory for tpu_custom_call.1']
    %8 = vsyncpa [#allocation3], 0
    %s9 = scalar_lea.sflag [#allocation3], 1
    %10 = vsyncpa %s9, 0
    loop: start=0, step=1, limit=4
    $region2: #{tpu_custom_call.1} parent=1 // loop_pre_header
      _
    $region3: #{tpu_custom_call.1} parent=1 // loop_header
      %s12 = sphi 0, %s16
      %p13 = scmp.ge.s32.totalorder %s12, 4
      %s19 = sphi 0, %s31
      %s20 = sphi 0, %s27
      %s21 = sphi 0, %s19
      %s22 = sphi 0, %s20
      %s23 = sphi 0, %s21
      %s24 = sphi 0, %s22
      %s36 = sphi 0, %s38
      %s39 = sphi 0, %s36
      %s40 = sphi 0, %s39
      %s56 = sphi 0, %s40
      %s60 = sphi 0, %s60
      %s62 = sphi 0, %s60
      %s63 = sphi 0, %s62
      %s77 = sphi 0, %s63
      %s81 = sphi 0, %s81
      %s83 = sphi 0, %s81
      %s84 = sphi 0, %s83
      %s98 = sphi 0, %s84
      %s106 = sphi 0, %s108
      %s109 = sphi 0, %s106
      %s110 = sphi 0, %s109
      %s126 = sphi 0, %s110
    $region4: #{tpu_custom_call.1} parent=1 // loop_header_branch
      %15 = sbr.rel (%p13) target = $region8
    $region5: #{tpu_custom_call.1} parent=1 // loop_body
      %s17 = ssub.s32 %s12, 1
      %s18 = ssub.s32 %s12, 2
      %s25 = sadd.s32 1, %s20
      %p26 = scmp.ge.s32.totalorder %s25, 1
      %s27 = scalar_select %p26, 0, %s25
      %s28 = sadd.s32 1, %s19
      %s29 = scalar_select %p26, %s28, %s19
      %p30 = scmp.ge.s32.totalorder %s29, 2
      %s31 = scalar_select %p30, 0, %s29
      %s32 = ssub.s32 %s19, %s31
      %s33 = ssub.s32 %s20, %s27
      %s34 = sor.u32 %s32, %s33
      %p35 = scmp.eq.s32.totalorder %s34, 0
      %s37 = sadd.s32 %s36, 1
      %s38 = scalar_select %p35, %s36, %s37
      %p41 = pneg %p35
      %p42 = scmp.eq.s32.totalorder %s12, 1
      %p43 = por %p41, %p42
      %p44 = scmp.ne.s32.totalorder %s36, %s39
      %p45 = scmp.eq.s32.totalorder %s12, 0
      %p46 = por %p44, %p45
      %p47 = scmp.ne.s32.totalorder %s36, %s39
      %p48 = scmp.eq.s32.totalorder %s17, 1
      %p49 = por %p47, %p48
      %p50 = scmp.ne.s32.totalorder %s39, %s40
      %p51 = scmp.eq.s32.totalorder %s17, 0
      %p52 = por %p50, %p51
      %p53 = scmp.ne.s32.totalorder %s39, %s40
      %p54 = scmp.eq.s32.totalorder %s18, 1
      %p55 = por %p53, %p54
      %p57 = scmp.ne.s32.totalorder %s40, %s56
      %p58 = scmp.eq.s32.totalorder %s18, 0
      %p59 = por %p57, %p58
      %s61 = sadd.s32 %s60, 1
      %p64 = scmp.eq.s32.totalorder %s12, 1
      %p65 = scmp.ne.s32.totalorder %s60, %s62
      %p66 = scmp.eq.s32.totalorder %s12, 0
      %p67 = por %p65, %p66
      %p68 = scmp.ne.s32.totalorder %s60, %s62
      %p69 = scmp.eq.s32.totalorder %s17, 1
      %p70 = por %p68, %p69
      %p71 = scmp.ne.s32.totalorder %s62, %s63
      %p72 = scmp.eq.s32.totalorder %s17, 0
      %p73 = por %p71, %p72
      %p74 = scmp.ne.s32.totalorder %s62, %s63
      %p75 = scmp.eq.s32.totalorder %s18, 1
      %p76 = por %p74, %p75
      %p78 = scmp.ne.s32.totalorder %s63, %s77
      %p79 = scmp.eq.s32.totalorder %s18, 0
      %p80 = por %p78, %p79
      %s82 = sadd.s32 %s81, 1
      %p85 = scmp.eq.s32.totalorder %s12, 1
      %p86 = scmp.ne.s32.totalorder %s81, %s83
      %p87 = scmp.eq.s32.totalorder %s12, 0
      %p88 = por %p86, %p87
      %p89 = scmp.ne.s32.totalorder %s81, %s83
      %p90 = scmp.eq.s32.totalorder %s17, 1
      %p91 = por %p89, %p90
      %p92 = scmp.ne.s32.totalorder %s83, %s84
      %p93 = scmp.eq.s32.totalorder %s17, 0
      %p94 = por %p92, %p93
      %p95 = scmp.ne.s32.totalorder %s83, %s84
      %p96 = scmp.eq.s32.totalorder %s18, 1
      %p97 = por %p95, %p96
      %p99 = scmp.ne.s32.totalorder %s84, %s98
      %p100 = scmp.eq.s32.totalorder %s18, 0
      %p101 = por %p99, %p100
      %s102 = ssub.s32 %s19, %s31
      %s103 = ssub.s32 %s20, %s27
      %s104 = sor.u32 %s102, %s103
      %p105 = scmp.eq.s32.totalorder %s104, 0
      %s107 = sadd.s32 %s106, 1
      %s108 = scalar_select %p105, %s106, %s107
      %p111 = pneg %p105
      %p112 = scmp.eq.s32.totalorder %s12, 1
      %p113 = por %p111, %p112
      %p114 = scmp.ne.s32.totalorder %s106, %s109
      %p115 = scmp.eq.s32.totalorder %s12, 0
      %p116 = por %p114, %p115
      %p117 = scmp.ne.s32.totalorder %s106, %s109
      %p118 = scmp.eq.s32.totalorder %s17, 1
      %p119 = por %p117, %p118
      %p120 = scmp.ne.s32.totalorder %s109, %s110
      %p121 = scmp.eq.s32.totalorder %s17, 0
      %p122 = por %p120, %p121
      %p123 = scmp.ne.s32.totalorder %s109, %s110
      %p124 = scmp.eq.s32.totalorder %s18, 1
      %p125 = por %p123, %p124
      %p127 = scmp.ne.s32.totalorder %s110, %s126
      %p128 = scmp.eq.s32.totalorder %s18, 0
      %p129 = por %p127, %p128
      %p130 = scmp.le.s32.totalorder 1, %s12
      %p131 = scmp.lt.s32.totalorder %s12, 3
      %p132 = pnand %p130, %p131
      %p133 = pneg %p132
      // Predicated region
      $region9: #{tpu_custom_call.1} parent=5 // pred_check
        _
      $region10: #{tpu_custom_call.1} parent=5 // pred_check_branch
        %135 = sbr.rel (%p132) target = $region12
      $region11: #{tpu_custom_call.1} parent=5 // pred_region
        %s136 = ssub.s32 %s12, 1
        // Predicated region
        $region13: #{tpu_custom_call.1} parent=11 // pred_check
          %p137 = pneg %p73
        $region14: #{tpu_custom_call.1} parent=11 // pred_check_branch
          %139 = sbr.rel (%p137) target = $region16
        $region15: #{tpu_custom_call.1} parent=11 // pred_region
          _
        $region16: #{tpu_custom_call.1} parent=11 // pred_fallthru
          _
        // Predicated region
        $region17: #{tpu_custom_call.1} parent=11 // pred_check
          %p140 = pneg %p94
        $region18: #{tpu_custom_call.1} parent=11 // pred_check_branch
          %142 = sbr.rel (%p140) target = $region20
        $region19: #{tpu_custom_call.1} parent=11 // pred_region
          _
        $region20: #{tpu_custom_call.1} parent=11 // pred_fallthru
          _
      $region12: #{tpu_custom_call.1} parent=5 // pred_fallthru
        _
      %p143 = scmp.lt.s32.totalorder %s12, 2
      // Predicated region
      $region21: #{tpu_custom_call.1} parent=5 // pred_check
        %p144 = pneg %p143
      $region22: #{tpu_custom_call.1} parent=5 // pred_check_branch
        %146 = sbr.rel (%p144) target = $region24
      $region23: #{tpu_custom_call.1} parent=5 // pred_region
        // Predicated region
        $region25: #{tpu_custom_call.1} parent=23 // pred_check
          %p147 = pneg %p46
        $region26: #{tpu_custom_call.1} parent=23 // pred_check_branch
          %149 = sbr.rel (%p147) target = $region28
        $region27: #{tpu_custom_call.1} parent=23 // pred_region
          %p150 = scmp.lt.s32.totalorder %s19, 1
          %s151 = scalar_select %p150, %s19, 1
          %p152 = scmp.lt.s32.totalorder %s20, 0
          %s153 = scalar_select %p152, %s20, 0
          %s154 = smul.addr %s153, 54
          %s155 = smul.addr %s151, 54
          %s156 = sadd.s32 %s154, %s155
          %s157 = smul.addr %s156, 4
          %s158 = scalar_lea.vmem %s0, %s157
        $region28: #{tpu_custom_call.1} parent=23 // pred_fallthru
          _
      $region24: #{tpu_custom_call.1} parent=5 // pred_fallthru
        _
      %p159 = scmp.le.s32.totalorder 1, %s12
      %p160 = scmp.lt.s32.totalorder %s12, 3
      %p161 = pnand %p159, %p160
      %p162 = pneg %p161
      // Predicated region
      $region29: #{tpu_custom_call.1} parent=5 // pred_check
        _
      $region30: #{tpu_custom_call.1} parent=5 // pred_check_branch
        %164 = sbr.rel (%p161) target = $region32
      $region31: #{tpu_custom_call.1} parent=5 // pred_region
        %s165 = ssub.s32 %s12, 1
        %p166 = scmp.lt.s32.totalorder %s21, 1
        %s167 = scalar_select %p166, %s21, 1
        %p168 = scmp.lt.s32.totalorder %s22, 0
        %s169 = scalar_select %p168, %s22, 0
        %s170 = smul.addr %s169, 54
        %s171 = smul.addr %s167, 54
        %s172 = sadd.s32 %s170, %s171
        %s173 = smul.addr %s172, 4
        %s174 = scalar_lea.vmem %s0, %s173
        %p175 = pneg %p52
        %p176 = pneg %p49
        %p177 = pneg %p73
        %p178 = pneg %p70
        %p179 = pneg %p94
        %p180 = pneg %p91
        %p181 = pneg %p122
        %p182 = pneg %p119
        %s183 = sand.u32 %s109, 1
        %s184 = scalar_lea.sflag [#allocation3], %s183
        %s185 = sand.u32 %s109, 1
        %s186 = smul.addr %s185, 256
        %s187 = scalar_lea.vmem [#allocation2], %s186
        %p188 = scmp.lt.s32.totalorder %s21, 1
        %s189 = scalar_select %p188, %s21, 1
        %p190 = scmp.lt.s32.totalorder %s22, 0
        %s191 = scalar_select %p190, %s22, 0
        %s192 = smul.addr %s191, 54
        %s193 = smul.addr %s189, 54
        %s194 = sadd.s32 %s192, %s193
        %s195 = smul.addr %s194, 4
        %s196 = scalar_lea.vmem %s0, %s195
        %v198 = vld [vmem:[%s196] sm:$0xf]
        %v199 = vld [vmem:[%s196 + $0x4] sm:$0xf]
        %v200 = vld [vmem:[%s196 + $0xc] sm:$0xf]
        %v201 = vld [vmem:[%s196 + $0x10] sm:$0xf]
        %v202 = vld [vmem:[%s196 + $0x18] sm:$0xf]
        %v203 = vld [vmem:[%s196 + $0x1c] sm:$0xf]
        %v204 = vld [vmem:[%s196 + $0x24] sm:$0xf]
        %v205 = vld [vmem:[%s196 + $0x28] sm:$0xf]
        %v206 = vld [vmem:[%s196 + $0x30] sm:$0xf]
        %v207 = vld [vmem:[%s196 + $0x34] sm:$0xf]
        %v208 = vld [vmem:[%s196 + $0x3c] sm:$0xf]
        %v209 = vld [vmem:[%s196 + $0x40] sm:$0xf]
        %v210 = vld [vmem:[%s196 + $0x48] sm:$0xf]
        %v211 = vld [vmem:[%s196 + $0x4c] sm:$0xf]
        %v212 = vld [vmem:[%s196 + $0x54] sm:$0xf]
        %v213 = vld [vmem:[%s196 + $0x58] sm:$0xf]
        %v214 = vld [vmem:[%s196 + $0x60] sm:$0xf]
        %v215 = vld [vmem:[%s196 + $0x64] sm:$0xf]
        %v216 = vld [vmem:[%s196 + $0x6c] sm:$0xf]
        %v217 = vld [vmem:[%s196 + $0x70] sm:$0xf]
        %v218 = vld [vmem:[%s196 + $0x78] sm:$0xf]
        %v219 = vld [vmem:[%s196 + $0x7c] sm:$0xf]
        %v220 = vld [vmem:[%s196 + $0x84] sm:$0xf]
        %v221 = vld [vmem:[%s196 + $0x88] sm:$0xf]
        %v222 = vld [vmem:[%s196 + $0x90] sm:$0xf]
        %v223 = vld [vmem:[%s196 + $0x94] sm:$0xf]
        %v224 = vld [vmem:[%s196 + $0x9c] sm:$0xf]
        %v225 = vld [vmem:[%s196 + $0xa0] sm:$0xf]
        %v226 = vld [vmem:[%s196 + $0xa8] sm:$0xf]
        %v227 = vld [vmem:[%s196 + $0xac] sm:$0xf]
        %v228 = vld [vmem:[%s196 + $0xb4] sm:$0xf]
        %v229 = vld [vmem:[%s196 + $0xb8] sm:$0xf]
        %v230 = vld [vmem:[%s1] sm:$0x3]
        %v231 = vld [vmem:[%s196 + $0x8] sm:$0x1]
        %v232 = vld [vmem:[%s196 + $0x14] sm:$0x1]
        %v233 = vld [vmem:[%s196 + $0x20] sm:$0x1]
        %v234 = vld [vmem:[%s196 + $0x2c] sm:$0x1]
        %v235 = vld [vmem:[%s196 + $0x38] sm:$0x1]
        %v236 = vld [vmem:[%s196 + $0x44] sm:$0x1]
        %v237 = vld [vmem:[%s196 + $0x50] sm:$0x1]
        %v238 = vld [vmem:[%s196 + $0x5c] sm:$0x1]
        %v239 = vld [vmem:[%s196 + $0x68] sm:$0x1]
        %v240 = vld [vmem:[%s196 + $0x74] sm:$0x1]
        %v241 = vld [vmem:[%s196 + $0x80] sm:$0x1]
        %v242 = vld [vmem:[%s196 + $0x8c] sm:$0x1]
        %v243 = vld [vmem:[%s196 + $0x98] sm:$0x1]
        %v244 = vld [vmem:[%s196 + $0xa4] sm:$0x1]
        %v245 = vld [vmem:[%s196 + $0xb0] sm:$0x1]
        %v246 = vld [vmem:[%s196 + $0xbc] sm:$0x1]
        %vm247 = vsmask.f32 3328
        %vm248 = vsmask.f32 7440
        %vm249 = vmor %vm247, %vm248
        %v251 = vshrl.u32 %v198, 16
        %v253 = vrot.slane %v251, 4
        %v254 = vshll.u32 %v198, 16
        %v256 = vrot.slane %v254, 5
        %v257 = vor.u32 %v253, %v256
        %v258 = vrot.slane %v257, 4
        %v260 = vshll.u32 %v199, 16
        %v262 = vrot.slane %v260, 5
        %v263 = vsel %vm249, %v258, %v262
        %v264 = vshrl.u32 %v199, 16
        %v266 = vrot.slane %v264, 4
        %v267 = vor.u32 %v266, %v262
        %v268 = vrot.slane %v267, 4
        %v270 = vshll.u32 %v231, 16
        %v272 = vrot.slane %v270, 5
        %v273 = vsel %vm249, %v268, %v272
        %v275 = vshrl.u32 %v200, 16
        %v277 = vrot.slane %v275, 4
        %v278 = vshll.u32 %v200, 16
        %v280 = vrot.slane %v278, 5
        %v281 = vor.u32 %v277, %v280
        %v282 = vrot.slane %v281, 4
        %v284 = vshll.u32 %v201, 16
        %v286 = vrot.slane %v284, 5
        %v287 = vsel %vm249, %v282, %v286
        %v288 = vshrl.u32 %v201, 16
        %v290 = vrot.slane %v288, 4
        %v291 = vor.u32 %v290, %v286
        %v292 = vrot.slane %v291, 4
        %v294 = vshll.u32 %v232, 16
        %v296 = vrot.slane %v294, 5
        %v297 = vsel %vm249, %v292, %v296
        %v299 = vshrl.u32 %v202, 16
        %v301 = vrot.slane %v299, 4
        %v302 = vshll.u32 %v202, 16
        %v304 = vrot.slane %v302, 5
        %v305 = vor.u32 %v301, %v304
        %v306 = vrot.slane %v305, 4
        %v308 = vshll.u32 %v203, 16
        %v310 = vrot.slane %v308, 5
        %v311 = vsel %vm249, %v306, %v310
        %v312 = vshrl.u32 %v203, 16
        %v314 = vrot.slane %v312, 4
        %v315 = vor.u32 %v314, %v310
        %v316 = vrot.slane %v315, 4
        %v318 = vshll.u32 %v233, 16
        %v320 = vrot.slane %v318, 5
        %v321 = vsel %vm249, %v316, %v320
        %v323 = vshrl.u32 %v204, 16
        %v325 = vrot.slane %v323, 4
        %v326 = vshll.u32 %v204, 16
        %v328 = vrot.slane %v326, 5
        %v329 = vor.u32 %v325, %v328
        %v330 = vrot.slane %v329, 4
        %v332 = vshll.u32 %v205, 16
        %v334 = vrot.slane %v332, 5
        %v335 = vsel %vm249, %v330, %v334
        %v336 = vshrl.u32 %v205, 16
        %v338 = vrot.slane %v336, 4
        %v339 = vor.u32 %v338, %v334
        %v340 = vrot.slane %v339, 4
        %v342 = vshll.u32 %v234, 16
        %v344 = vrot.slane %v342, 5
        %v345 = vsel %vm249, %v340, %v344
        %v347 = vshrl.u32 %v206, 16
        %v349 = vrot.slane %v347, 4
        %v350 = vshll.u32 %v206, 16
        %v352 = vrot.slane %v350, 5
        %v353 = vor.u32 %v349, %v352
        %v354 = vrot.slane %v353, 4
        %v356 = vshll.u32 %v207, 16
        %v358 = vrot.slane %v356, 5
        %v359 = vsel %vm249, %v354, %v358
        %v360 = vshrl.u32 %v207, 16
        %v362 = vrot.slane %v360, 4
        %v363 = vor.u32 %v362, %v358
        %v364 = vrot.slane %v363, 4
        %v366 = vshll.u32 %v235, 16
        %v368 = vrot.slane %v366, 5
        %v369 = vsel %vm249, %v364, %v368
        %v371 = vshrl.u32 %v208, 16
        %v373 = vrot.slane %v371, 4
        %v374 = vshll.u32 %v208, 16
        %v376 = vrot.slane %v374, 5
        %v377 = vor.u32 %v373, %v376
        %v378 = vrot.slane %v377, 4
        %v380 = vshll.u32 %v209, 16
        %v382 = vrot.slane %v380, 5
        %v383 = vsel %vm249, %v378, %v382
        %v384 = vshrl.u32 %v209, 16
        %v386 = vrot.slane %v384, 4
        %v387 = vor.u32 %v386, %v382
        %v388 = vrot.slane %v387, 4
        %v390 = vshll.u32 %v236, 16
        %v392 = vrot.slane %v390, 5
        %v393 = vsel %vm249, %v388, %v392
        %v395 = vshrl.u32 %v210, 16
        %v397 = vrot.slane %v395, 4
        %v398 = vshll.u32 %v210, 16
        %v400 = vrot.slane %v398, 5
        %v401 = vor.u32 %v397, %v400
        %v402 = vrot.slane %v401, 4
        %v404 = vshll.u32 %v211, 16
        %v406 = vrot.slane %v404, 5
        %v407 = vsel %vm249, %v402, %v406
        %v408 = vshrl.u32 %v211, 16
        %v410 = vrot.slane %v408, 4
        %v411 = vor.u32 %v410, %v406
        %v412 = vrot.slane %v411, 4
        %v414 = vshll.u32 %v237, 16
        %v416 = vrot.slane %v414, 5
        %v417 = vsel %vm249, %v412, %v416
        %v419 = vshrl.u32 %v212, 16
        %v421 = vrot.slane %v419, 4
        %v422 = vshll.u32 %v212, 16
        %v424 = vrot.slane %v422, 5
        %v425 = vor.u32 %v421, %v424
        %v426 = vrot.slane %v425, 4
        %v428 = vshll.u32 %v213, 16
        %v430 = vrot.slane %v428, 5
        %v431 = vsel %vm249, %v426, %v430
        %v432 = vshrl.u32 %v213, 16
        %v434 = vrot.slane %v432, 4
        %v435 = vor.u32 %v434, %v430
        %v436 = vrot.slane %v435, 4
        %v438 = vshll.u32 %v238, 16
        %v440 = vrot.slane %v438, 5
        %v441 = vsel %vm249, %v436, %v440
        %v443 = vshrl.u32 %v214, 16
        %v445 = vrot.slane %v443, 4
        %v446 = vshll.u32 %v214, 16
        %v448 = vrot.slane %v446, 5
        %v449 = vor.u32 %v445, %v448
        %v450 = vrot.slane %v449, 4
        %v452 = vshll.u32 %v215, 16
        %v454 = vrot.slane %v452, 5
        %v455 = vsel %vm249, %v450, %v454
        %v456 = vshrl.u32 %v215, 16
        %v458 = vrot.slane %v456, 4
        %v459 = vor.u32 %v458, %v454
        %v460 = vrot.slane %v459, 4
        %v462 = vshll.u32 %v239, 16
        %v464 = vrot.slane %v462, 5
        %v465 = vsel %vm249, %v460, %v464
        %v467 = vshrl.u32 %v216, 16
        %v469 = vrot.slane %v467, 4
        %v470 = vshll.u32 %v216, 16
        %v472 = vrot.slane %v470, 5
        %v473 = vor.u32 %v469, %v472
        %v474 = vrot.slane %v473, 4
        %v476 = vshll.u32 %v217, 16
        %v478 = vrot.slane %v476, 5
        %v479 = vsel %vm249, %v474, %v478
        %v480 = vshrl.u32 %v217, 16
        %v482 = vrot.slane %v480, 4
        %v483 = vor.u32 %v482, %v478
        %v484 = vrot.slane %v483, 4
        %v486 = vshll.u32 %v240, 16
        %v488 = vrot.slane %v486, 5
        %v489 = vsel %vm249, %v484, %v488
        %v491 = vshrl.u32 %v218, 16
        %v493 = vrot.slane %v491, 4
        %v494 = vshll.u32 %v218, 16
        %v496 = vrot.slane %v494, 5
        %v497 = vor.u32 %v493, %v496
        %v498 = vrot.slane %v497, 4
        %v500 = vshll.u32 %v219, 16
        %v502 = vrot.slane %v500, 5
        %v503 = vsel %vm249, %v498, %v502
        %v504 = vshrl.u32 %v219, 16
        %v506 = vrot.slane %v504, 4
        %v507 = vor.u32 %v506, %v502
        %v508 = vrot.slane %v507, 4
        %v510 = vshll.u32 %v241, 16
        %v512 = vrot.slane %v510, 5
        %v513 = vsel %vm249, %v508, %v512
        %v515 = vshrl.u32 %v220, 16
        %v517 = vrot.slane %v515, 4
        %v518 = vshll.u32 %v220, 16
        %v520 = vrot.slane %v518, 5
        %v521 = vor.u32 %v517, %v520
        %v522 = vrot.slane %v521, 4
        %v524 = vshll.u32 %v221, 16
        %v526 = vrot.slane %v524, 5
        %v527 = vsel %vm249, %v522, %v526
        %v528 = vshrl.u32 %v221, 16
        %v530 = vrot.slane %v528, 4
        %v531 = vor.u32 %v530, %v526
        %v532 = vrot.slane %v531, 4
        %v534 = vshll.u32 %v242, 16
        %v536 = vrot.slane %v534, 5
        %v537 = vsel %vm249, %v532, %v536
        %v539 = vshrl.u32 %v222, 16
        %v541 = vrot.slane %v539, 4
        %v542 = vshll.u32 %v222, 16
        %v544 = vrot.slane %v542, 5
        %v545 = vor.u32 %v541, %v544
        %v546 = vrot.slane %v545, 4
        %v548 = vshll.u32 %v223, 16
        %v550 = vrot.slane %v548, 5
        %v551 = vsel %vm249, %v546, %v550
        %v552 = vshrl.u32 %v223, 16
        %v554 = vrot.slane %v552, 4
        %v555 = vor.u32 %v554, %v550
        %v556 = vrot.slane %v555, 4
        %v558 = vshll.u32 %v243, 16
        %v560 = vrot.slane %v558, 5
        %v561 = vsel %vm249, %v556, %v560
        %v563 = vshrl.u32 %v224, 16
        %v565 = vrot.slane %v563, 4
        %v566 = vshll.u32 %v224, 16
        %v568 = vrot.slane %v566, 5
        %v569 = vor.u32 %v565, %v568
        %v570 = vrot.slane %v569, 4
        %v572 = vshll.u32 %v225, 16
        %v574 = vrot.slane %v572, 5
        %v575 = vsel %vm249, %v570, %v574
        %v576 = vshrl.u32 %v225, 16
        %v578 = vrot.slane %v576, 4
        %v579 = vor.u32 %v578, %v574
        %v580 = vrot.slane %v579, 4
        %v582 = vshll.u32 %v244, 16
        %v584 = vrot.slane %v582, 5
        %v585 = vsel %vm249, %v580, %v584
        %v587 = vshrl.u32 %v226, 16
        %v589 = vrot.slane %v587, 4
        %v590 = vshll.u32 %v226, 16
        %v592 = vrot.slane %v590, 5
        %v593 = vor.u32 %v589, %v592
        %v594 = vrot.slane %v593, 4
        %v596 = vshll.u32 %v227, 16
        %v598 = vrot.slane %v596, 5
        %v599 = vsel %vm249, %v594, %v598
        %v600 = vshrl.u32 %v227, 16
        %v602 = vrot.slane %v600, 4
        %v603 = vor.u32 %v602, %v598
        %v604 = vrot.slane %v603, 4
        %v606 = vshll.u32 %v245, 16
        %v608 = vrot.slane %v606, 5
        %v609 = vsel %vm249, %v604, %v608
        %v611 = vshrl.u32 %v228, 16
        %v613 = vrot.slane %v611, 4
        %v614 = vshll.u32 %v228, 16
        %v616 = vrot.slane %v614, 5
        %v617 = vor.u32 %v613, %v616
        %v618 = vrot.slane %v617, 4
        %v620 = vshll.u32 %v229, 16
        %v622 = vrot.slane %v620, 5
        %v623 = vsel %vm249, %v618, %v622
        %v624 = vshrl.u32 %v229, 16
        %v626 = vrot.slane %v624, 4
        %v627 = vor.u32 %v626, %v622
        %v628 = vrot.slane %v627, 4
        %v630 = vshll.u32 %v246, 16
        %v632 = vrot.slane %v630, 5
        %v633 = vsel %vm249, %v628, %v632
        %s634 = scalar_lea.vmem %s1, 2
        %v635 = vld [vmem:[%s634] sm:$0x3]
        %v636 = vunpack.c.l.b16 %v263
        %v637 = vunpack.c.l.b16 %v273
        %v638 = vunpack.c.l.b16 %v287
        %v639 = vunpack.c.l.b16 %v297
        %v640 = vunpack.c.l.b16 %v311
        %v641 = vunpack.c.l.b16 %v321
        %v642 = vunpack.c.l.b16 %v335
        %v643 = vunpack.c.l.b16 %v345
        %v644 = vunpack.c.l.b16 %v359
        %v645 = vunpack.c.l.b16 %v369
        %v646 = vunpack.c.l.b16 %v383
        %v647 = vunpack.c.l.b16 %v393
        %v648 = vunpack.c.l.b16 %v407
        %v649 = vunpack.c.l.b16 %v417
        %v650 = vunpack.c.l.b16 %v431
        %v651 = vunpack.c.l.b16 %v441
        %v652 = vunpack.c.l.b16 %v455
        %v653 = vunpack.c.l.b16 %v465
        %v654 = vunpack.c.l.b16 %v479
        %v655 = vunpack.c.l.b16 %v489
        %v656 = vunpack.c.l.b16 %v503
        %v657 = vunpack.c.l.b16 %v513
        %v658 = vunpack.c.l.b16 %v527
        %v659 = vunpack.c.l.b16 %v537
        %v660 = vunpack.c.l.b16 %v551
        %v661 = vunpack.c.l.b16 %v561
        %v662 = vunpack.c.l.b16 %v575
        %v663 = vunpack.c.l.b16 %v585
        %v664 = vunpack.c.l.b16 %v599
        %v665 = vunpack.c.l.b16 %v609
        %v666 = vunpack.c.l.b16 %v623
        %v667 = vunpack.c.l.b16 %v633
        %v668 = vpack.c.b16 %v637, %v636
        %v669 = vpack.c.b16 %v639, %v638
        %v670 = vpack.c.b16 %v641, %v640
        %v671 = vpack.c.b16 %v643, %v642
        %v672 = vpack.c.b16 %v645, %v644
        %v673 = vpack.c.b16 %v647, %v646
        %v674 = vpack.c.b16 %v649, %v648
        %v675 = vpack.c.b16 %v651, %v650
        %v676 = vpack.c.b16 %v653, %v652
        %v677 = vpack.c.b16 %v655, %v654
        %v678 = vpack.c.b16 %v657, %v656
        %v679 = vpack.c.b16 %v659, %v658
        %v680 = vpack.c.b16 %v661, %v660
        %v681 = vpack.c.b16 %v663, %v662
        %v682 = vpack.c.b16 %v665, %v664
        %v683 = vpack.c.b16 %v667, %v666
        %vm684 = vcmask 31744
        %v686 = vsel %vm684, %v668, 0
        %v689 = vsel %vm684, %v669, 0
        %v692 = vsel %vm684, %v670, 0
        %v695 = vsel %vm684, %v671, 0
        %v698 = vsel %vm684, %v672, 0
        %v701 = vsel %vm684, %v673, 0
        %v704 = vsel %vm684, %v674, 0
        %v707 = vsel %vm684, %v675, 0
        %v710 = vsel %vm684, %v676, 0
        %v713 = vsel %vm684, %v677, 0
        %v716 = vsel %vm684, %v678, 0
        %v719 = vsel %vm684, %v679, 0
        %v722 = vsel %vm684, %v680, 0
        %v725 = vsel %vm684, %v681, 0
        %v728 = vsel %vm684, %v682, 0
        %v731 = vsel %vm684, %v683, 0
        %vm733 = vcmask 1041408
        %v735 = vsel %vm733, %v635, 0
        %737 = vmatprep.subr.bf16.mxu0 0
        %738 = vmatpush1.bf16.msra.mxu0 0
        %739 = vmatprep.subr.bf16.mxu0 0
        %740 = vmatpush1.bf16.msra.mxu0 0
        %741 = vmatprep.subr.bf16.mxu0 0
        %742 = vmatpush1.bf16.msra.mxu0 0
        %743 = vmatprep.subr.bf16.mxu0 0
        %744 = vmatpush1.bf16.msra.mxu0 0
        %745 = vmatprep.subr.bf16.mxu0 0
        %746 = vmatpush1.bf16.msra.mxu0 0
        %747 = vmatprep.subr.bf16.mxu0 0
        %748 = vmatpush1.bf16.msra.mxu0 0
        %749 = vmatprep.subr.bf16.mxu0 0
        %750 = vmatpush1.bf16.msra.mxu0 0
        %751 = vmatprep.subr.bf16.mxu0 0
        %752 = vmatpush1.bf16.msra.mxu0 %v735
        %753 = vmatprep.subr.bf16.mxu0 0
        %754 = vmatpush2.bf16.msra.mxu0 0
        %755 = vmatprep.subr.bf16.mxu0 0
        %756 = vmatpush2.bf16.msra.mxu0 0
        %757 = vmatprep.subr.bf16.mxu0 0
        %758 = vmatpush2.bf16.msra.mxu0 0
        %759 = vmatprep.subr.bf16.mxu0 0
        %760 = vmatpush2.bf16.msra.mxu0 0
        %761 = vmatprep.subr.bf16.mxu0 0
        %762 = vmatpush2.bf16.msra.mxu0 0
        %763 = vmatprep.subr.bf16.mxu0 0
        %764 = vmatpush2.bf16.msra.mxu0 0
        %765 = vmatprep.subr.bf16.mxu0 0
        %766 = vmatpush2.bf16.msra.mxu0 0
        %767 = vmatprep.subr.bf16.mxu0 0
        %768 = vmatpush2.bf16.msra.mxu0 0
        %769 = vmatprep.mubr.bf16.mxu0 0
        %770 = vmatmul.mubr.bf16.gmra.mxu0 %v686
        %v771 = vpop.f32.mrf.mxu0
        %v772 = vadd.f32 0.0, %v771
        %v773 = vpop.f32.mrf.mxu0
        %v774 = vpop.f32.mrf.mxu0
        %v775 = vadd.f32 0.0, %v774
        %v776 = vpop.f32.mrf.mxu0
        %777 = vmatprep.mubr.bf16.mxu0 0
        %778 = vmatmul.mubr.bf16.gmra.mxu0 %v689
        %v779 = vpop.f32.mrf.mxu0
        %v780 = vadd.f32 0.0, %v779
        %v781 = vpop.f32.mrf.mxu0
        %v782 = vpop.f32.mrf.mxu0
        %v783 = vadd.f32 0.0, %v782
        %v784 = vpop.f32.mrf.mxu0
        %785 = vmatprep.mubr.bf16.mxu0 0
        %786 = vmatmul.mubr.bf16.gmra.mxu0 %v692
        %v787 = vpop.f32.mrf.mxu0
        %v788 = vadd.f32 0.0, %v787
        %v789 = vpop.f32.mrf.mxu0
        %v790 = vpop.f32.mrf.mxu0
        %v791 = vadd.f32 0.0, %v790
        %v792 = vpop.f32.mrf.mxu0
        %793 = vmatprep.mubr.bf16.mxu0 0
        %794 = vmatmul.mubr.bf16.gmra.mxu0 %v695
        %v795 = vpop.f32.mrf.mxu0
        %v796 = vadd.f32 0.0, %v795
        %v797 = vpop.f32.mrf.mxu0
        %v798 = vpop.f32.mrf.mxu0
        %v799 = vadd.f32 0.0, %v798
        %v800 = vpop.f32.mrf.mxu0
        %801 = vmatprep.mubr.bf16.mxu0 0
        %802 = vmatmul.mubr.bf16.gmra.mxu0 %v698
        %v803 = vpop.f32.mrf.mxu0
        %v804 = vadd.f32 0.0, %v803
        %v805 = vpop.f32.mrf.mxu0
        %v806 = vpop.f32.mrf.mxu0
        %v807 = vadd.f32 0.0, %v806
        %v808 = vpop.f32.mrf.mxu0
        %809 = vmatprep.mubr.bf16.mxu0 0
        %810 = vmatmul.mubr.bf16.gmra.mxu0 %v701
        %v811 = vpop.f32.mrf.mxu0
        %v812 = vadd.f32 0.0, %v811
        %v813 = vpop.f32.mrf.mxu0
        %v814 = vpop.f32.mrf.mxu0
        %v815 = vadd.f32 0.0, %v814
        %v816 = vpop.f32.mrf.mxu0
        %817 = vmatprep.mubr.bf16.mxu0 0
        %818 = vmatmul.mubr.bf16.gmra.mxu0 %v704
        %v819 = vpop.f32.mrf.mxu0
        %v820 = vadd.f32 0.0, %v819
        %v821 = vpop.f32.mrf.mxu0
        %v822 = vpop.f32.mrf.mxu0
        %v823 = vadd.f32 0.0, %v822
        %v824 = vpop.f32.mrf.mxu0
        %825 = vmatprep.mubr.bf16.mxu0 0
        %826 = vmatmul.mubr.bf16.gmra.mxu0 %v707
        %v827 = vpop.f32.mrf.mxu0
        %v828 = vadd.f32 0.0, %v827
        %v829 = vpop.f32.mrf.mxu0
        %v830 = vpop.f32.mrf.mxu0
        %v831 = vadd.f32 0.0, %v830
        %v832 = vpop.f32.mrf.mxu0
        %833 = vmatprep.mubr.bf16.mxu0 0
        %834 = vmatmul.mubr.bf16.gmra.mxu0 %v710
        %v835 = vpop.f32.mrf.mxu0
        %v836 = vadd.f32 0.0, %v835
        %v837 = vpop.f32.mrf.mxu0
        %v838 = vpop.f32.mrf.mxu0
        %v839 = vadd.f32 0.0, %v838
        %v840 = vpop.f32.mrf.mxu0
        %841 = vmatprep.mubr.bf16.mxu0 0
        %842 = vmatmul.mubr.bf16.gmra.mxu0 %v713
        %v843 = vpop.f32.mrf.mxu0
        %v844 = vadd.f32 0.0, %v843
        %v845 = vpop.f32.mrf.mxu0
        %v846 = vpop.f32.mrf.mxu0
        %v847 = vadd.f32 0.0, %v846
        %v848 = vpop.f32.mrf.mxu0
        %849 = vmatprep.mubr.bf16.mxu0 0
        %850 = vmatmul.mubr.bf16.gmra.mxu0 %v716
        %v851 = vpop.f32.mrf.mxu0
        %v852 = vadd.f32 0.0, %v851
        %v853 = vpop.f32.mrf.mxu0
        %v854 = vpop.f32.mrf.mxu0
        %v855 = vadd.f32 0.0, %v854
        %v856 = vpop.f32.mrf.mxu0
        %857 = vmatprep.mubr.bf16.mxu0 0
        %858 = vmatmul.mubr.bf16.gmra.mxu0 %v719
        %v859 = vpop.f32.mrf.mxu0
        %v860 = vadd.f32 0.0, %v859
        %v861 = vpop.f32.mrf.mxu0
        %v862 = vpop.f32.mrf.mxu0
        %v863 = vadd.f32 0.0, %v862
        %v864 = vpop.f32.mrf.mxu0
        %865 = vmatprep.mubr.bf16.mxu0 0
        %866 = vmatmul.mubr.bf16.gmra.mxu0 %v722
        %v867 = vpop.f32.mrf.mxu0
        %v868 = vadd.f32 0.0, %v867
        %v869 = vpop.f32.mrf.mxu0
        %v870 = vpop.f32.mrf.mxu0
        %v871 = vadd.f32 0.0, %v870
        %v872 = vpop.f32.mrf.mxu0
        %873 = vmatprep.mubr.bf16.mxu0 0
        %874 = vmatmul.mubr.bf16.gmra.mxu0 %v725
        %v875 = vpop.f32.mrf.mxu0
        %v876 = vadd.f32 0.0, %v875
        %v877 = vpop.f32.mrf.mxu0
        %v878 = vpop.f32.mrf.mxu0
        %v879 = vadd.f32 0.0, %v878
        %v880 = vpop.f32.mrf.mxu0
        %881 = vmatprep.mubr.bf16.mxu0 0
        %882 = vmatmul.mubr.bf16.gmra.mxu0 %v728
        %v883 = vpop.f32.mrf.mxu0
        %v884 = vadd.f32 0.0, %v883
        %v885 = vpop.f32.mrf.mxu0
        %v886 = vpop.f32.mrf.mxu0
        %v887 = vadd.f32 0.0, %v886
        %v888 = vpop.f32.mrf.mxu0
        %889 = vmatprep.mubr.bf16.mxu0 0
        %890 = vmatmul.mubr.bf16.gmra.mxu0 %v731
        %v891 = vpop.f32.mrf.mxu0
        %v892 = vadd.f32 0.0, %v891
        %v893 = vpop.f32.mrf.mxu0
        %v894 = vpop.f32.mrf.mxu0
        %v895 = vadd.f32 0.0, %v894
        %v896 = vpop.f32.mrf.mxu0
        %897 = vdwg.mxu0
        %v930 = vunpack.c.l.b16 %v198
        %v931 = vunpack.c.l.b16 %v199
        %v932 = vunpack.c.l.b16 %v200
        %v933 = vunpack.c.l.b16 %v201
        %v934 = vunpack.c.l.b16 %v202
        %v935 = vunpack.c.l.b16 %v203
        %v936 = vunpack.c.l.b16 %v204
        %v937 = vunpack.c.l.b16 %v205
        %v938 = vunpack.c.l.b16 %v206
        %v939 = vunpack.c.l.b16 %v207
        %v940 = vunpack.c.l.b16 %v208
        %v941 = vunpack.c.l.b16 %v209
        %v942 = vunpack.c.l.b16 %v210
        %v943 = vunpack.c.l.b16 %v211
        %v944 = vunpack.c.l.b16 %v212
        %v945 = vunpack.c.l.b16 %v213
        %v946 = vunpack.c.l.b16 %v214
        %v947 = vunpack.c.l.b16 %v215
        %v948 = vunpack.c.l.b16 %v216
        %v949 = vunpack.c.l.b16 %v217
        %v950 = vunpack.c.l.b16 %v218
        %v951 = vunpack.c.l.b16 %v219
        %v952 = vunpack.c.l.b16 %v220
        %v953 = vunpack.c.l.b16 %v221
        %v954 = vunpack.c.l.b16 %v222
        %v955 = vunpack.c.l.b16 %v223
        %v956 = vunpack.c.l.b16 %v224
        %v957 = vunpack.c.l.b16 %v225
        %v958 = vunpack.c.l.b16 %v226
        %v959 = vunpack.c.l.b16 %v227
        %v960 = vunpack.c.l.b16 %v228
        %v961 = vunpack.c.l.b16 %v229
        %v962 = vpack.c.b16 %v931, %v930
        %v963 = vpack.c.b16 %v933, %v932
        %v964 = vpack.c.b16 %v935, %v934
        %v965 = vpack.c.b16 %v937, %v936
        %v966 = vpack.c.b16 %v939, %v938
        %v967 = vpack.c.b16 %v941, %v940
        %v968 = vpack.c.b16 %v943, %v942
        %v969 = vpack.c.b16 %v945, %v944
        %v970 = vpack.c.b16 %v947, %v946
        %v971 = vpack.c.b16 %v949, %v948
        %v972 = vpack.c.b16 %v951, %v950
        %v973 = vpack.c.b16 %v953, %v952
        %v974 = vpack.c.b16 %v955, %v954
        %v975 = vpack.c.b16 %v957, %v956
        %v976 = vpack.c.b16 %v959, %v958
        %v977 = vpack.c.b16 %v961, %v960
        %v979 = vsel %vm684, %v962, 0
        %v982 = vsel %vm684, %v963, 0
        %v985 = vsel %vm684, %v964, 0
        %v988 = vsel %vm684, %v965, 0
        %v991 = vsel %vm684, %v966, 0
        %v994 = vsel %vm684, %v967, 0
        %v997 = vsel %vm684, %v968, 0
        %v1000 = vsel %vm684, %v969, 0
        %v1003 = vsel %vm684, %v970, 0
        %v1006 = vsel %vm684, %v971, 0
        %v1009 = vsel %vm684, %v972, 0
        %v1012 = vsel %vm684, %v973, 0
        %v1015 = vsel %vm684, %v974, 0
        %v1018 = vsel %vm684, %v975, 0
        %v1021 = vsel %vm684, %v976, 0
        %v1024 = vsel %vm684, %v977, 0
        %v1027 = vsel %vm733, %v230, 0
        %1029 = vmatprep.subr.bf16.mxu0 0
        %1030 = vmatpush1.bf16.msra.mxu0 0
        %1031 = vmatprep.subr.bf16.mxu0 0
        %1032 = vmatpush1.bf16.msra.mxu0 0
        %1033 = vmatprep.subr.bf16.mxu0 0
        %1034 = vmatpush1.bf16.msra.mxu0 0
        %1035 = vmatprep.subr.bf16.mxu0 0
        %1036 = vmatpush1.bf16.msra.mxu0 0
        %1037 = vmatprep.subr.bf16.mxu0 0
        %1038 = vmatpush1.bf16.msra.mxu0 0
        %1039 = vmatprep.subr.bf16.mxu0 0
        %1040 = vmatpush1.bf16.msra.mxu0 0
        %1041 = vmatprep.subr.bf16.mxu0 0
        %1042 = vmatpush1.bf16.msra.mxu0 0
        %1043 = vmatprep.subr.bf16.mxu0 0
        %1044 = vmatpush1.bf16.msra.mxu0 %v1027
        %1045 = vmatprep.subr.bf16.mxu0 0
        %1046 = vmatpush2.bf16.msra.mxu0 0
        %1047 = vmatprep.subr.bf16.mxu0 0
        %1048 = vmatpush2.bf16.msra.mxu0 0
        %1049 = vmatprep.subr.bf16.mxu0 0
        %1050 = vmatpush2.bf16.msra.mxu0 0
        %1051 = vmatprep.subr.bf16.mxu0 0
        %1052 = vmatpush2.bf16.msra.mxu0 0
        %1053 = vmatprep.subr.bf16.mxu0 0
        %1054 = vmatpush2.bf16.msra.mxu0 0
        %1055 = vmatprep.subr.bf16.mxu0 0
        %1056 = vmatpush2.bf16.msra.mxu0 0
        %1057 = vmatprep.subr.bf16.mxu0 0
        %1058 = vmatpush2.bf16.msra.mxu0 0
        %1059 = vmatprep.subr.bf16.mxu0 0
        %1060 = vmatpush2.bf16.msra.mxu0 0
        %1061 = vmatprep.mubr.bf16.mxu0 0
        %1062 = vmatmul.mubr.bf16.gmra.mxu0 %v979
        %v1063 = vpop.f32.mrf.mxu0
        %v1064 = vadd.f32 %v772, %v1063
        %v1065 = vpop.f32.mrf.mxu0
        %v1066 = vpop.f32.mrf.mxu0
        %v1067 = vadd.f32 %v775, %v1066
        %v1068 = vpop.f32.mrf.mxu0
        %1069 = vmatprep.mubr.bf16.mxu0 0
        %1070 = vmatmul.mubr.bf16.gmra.mxu0 %v982
        %v1071 = vpop.f32.mrf.mxu0
        %v1072 = vadd.f32 %v780, %v1071
        %v1073 = vpop.f32.mrf.mxu0
        %v1074 = vpop.f32.mrf.mxu0
        %v1075 = vadd.f32 %v783, %v1074
        %v1076 = vpop.f32.mrf.mxu0
        %1077 = vmatprep.mubr.bf16.mxu0 0
        %1078 = vmatmul.mubr.bf16.gmra.mxu0 %v985
        %v1079 = vpop.f32.mrf.mxu0
        %v1080 = vadd.f32 %v788, %v1079
        %v1081 = vpop.f32.mrf.mxu0
        %v1082 = vpop.f32.mrf.mxu0
        %v1083 = vadd.f32 %v791, %v1082
        %v1084 = vpop.f32.mrf.mxu0
        %1085 = vmatprep.mubr.bf16.mxu0 0
        %1086 = vmatmul.mubr.bf16.gmra.mxu0 %v988
        %v1087 = vpop.f32.mrf.mxu0
        %v1088 = vadd.f32 %v796, %v1087
        %v1089 = vpop.f32.mrf.mxu0
        %v1090 = vpop.f32.mrf.mxu0
        %v1091 = vadd.f32 %v799, %v1090
        %v1092 = vpop.f32.mrf.mxu0
        %1093 = vmatprep.mubr.bf16.mxu0 0
        %1094 = vmatmul.mubr.bf16.gmra.mxu0 %v991
        %v1095 = vpop.f32.mrf.mxu0
        %v1096 = vadd.f32 %v804, %v1095
        %v1097 = vpop.f32.mrf.mxu0
        %v1098 = vpop.f32.mrf.mxu0
        %v1099 = vadd.f32 %v807, %v1098
        %v1100 = vpop.f32.mrf.mxu0
        %1101 = vmatprep.mubr.bf16.mxu0 0
        %1102 = vmatmul.mubr.bf16.gmra.mxu0 %v994
        %v1103 = vpop.f32.mrf.mxu0
        %v1104 = vadd.f32 %v812, %v1103
        %v1105 = vpop.f32.mrf.mxu0
        %v1106 = vpop.f32.mrf.mxu0
        %v1107 = vadd.f32 %v815, %v1106
        %v1108 = vpop.f32.mrf.mxu0
        %1109 = vmatprep.mubr.bf16.mxu0 0
        %1110 = vmatmul.mubr.bf16.gmra.mxu0 %v997
        %v1111 = vpop.f32.mrf.mxu0
        %v1112 = vadd.f32 %v820, %v1111
        %v1113 = vpop.f32.mrf.mxu0
        %v1114 = vpop.f32.mrf.mxu0
        %v1115 = vadd.f32 %v823, %v1114
        %v1116 = vpop.f32.mrf.mxu0
        %1117 = vmatprep.mubr.bf16.mxu0 0
        %1118 = vmatmul.mubr.bf16.gmra.mxu0 %v1000
        %v1119 = vpop.f32.mrf.mxu0
        %v1120 = vadd.f32 %v828, %v1119
        %v1121 = vpop.f32.mrf.mxu0
        %v1122 = vpop.f32.mrf.mxu0
        %v1123 = vadd.f32 %v831, %v1122
        %v1124 = vpop.f32.mrf.mxu0
        %1125 = vmatprep.mubr.bf16.mxu0 0
        %1126 = vmatmul.mubr.bf16.gmra.mxu0 %v1003
        %v1127 = vpop.f32.mrf.mxu0
        %v1128 = vadd.f32 %v836, %v1127
        %v1129 = vpop.f32.mrf.mxu0
        %v1130 = vpop.f32.mrf.mxu0
        %v1131 = vadd.f32 %v839, %v1130
        %v1132 = vpop.f32.mrf.mxu0
        %1133 = vmatprep.mubr.bf16.mxu0 0
        %1134 = vmatmul.mubr.bf16.gmra.mxu0 %v1006
        %v1135 = vpop.f32.mrf.mxu0
        %v1136 = vadd.f32 %v844, %v1135
        %v1137 = vpop.f32.mrf.mxu0
        %v1138 = vpop.f32.mrf.mxu0
        %v1139 = vadd.f32 %v847, %v1138
        %v1140 = vpop.f32.mrf.mxu0
        %1141 = vmatprep.mubr.bf16.mxu0 0
        %1142 = vmatmul.mubr.bf16.gmra.mxu0 %v1009
        %v1143 = vpop.f32.mrf.mxu0
        %v1144 = vadd.f32 %v852, %v1143
        %v1145 = vpop.f32.mrf.mxu0
        %v1146 = vpop.f32.mrf.mxu0
        %v1147 = vadd.f32 %v855, %v1146
        %v1148 = vpop.f32.mrf.mxu0
        %1149 = vmatprep.mubr.bf16.mxu0 0
        %1150 = vmatmul.mubr.bf16.gmra.mxu0 %v1012
        %v1151 = vpop.f32.mrf.mxu0
        %v1152 = vadd.f32 %v860, %v1151
        %v1153 = vpop.f32.mrf.mxu0
        %v1154 = vpop.f32.mrf.mxu0
        %v1155 = vadd.f32 %v863, %v1154
        %v1156 = vpop.f32.mrf.mxu0
        %1157 = vmatprep.mubr.bf16.mxu0 0
        %1158 = vmatmul.mubr.bf16.gmra.mxu0 %v1015
        %v1159 = vpop.f32.mrf.mxu0
        %v1160 = vadd.f32 %v868, %v1159
        %v1161 = vpop.f32.mrf.mxu0
        %v1162 = vpop.f32.mrf.mxu0
        %v1163 = vadd.f32 %v871, %v1162
        %v1164 = vpop.f32.mrf.mxu0
        %1165 = vmatprep.mubr.bf16.mxu0 0
        %1166 = vmatmul.mubr.bf16.gmra.mxu0 %v1018
        %v1167 = vpop.f32.mrf.mxu0
        %v1168 = vadd.f32 %v876, %v1167
        %v1169 = vpop.f32.mrf.mxu0
        %v1170 = vpop.f32.mrf.mxu0
        %v1171 = vadd.f32 %v879, %v1170
        %v1172 = vpop.f32.mrf.mxu0
        %1173 = vmatprep.mubr.bf16.mxu0 0
        %1174 = vmatmul.mubr.bf16.gmra.mxu0 %v1021
        %v1175 = vpop.f32.mrf.mxu0
        %v1176 = vadd.f32 %v884, %v1175
        %v1177 = vpop.f32.mrf.mxu0
        %v1178 = vpop.f32.mrf.mxu0
        %v1179 = vadd.f32 %v887, %v1178
        %v1180 = vpop.f32.mrf.mxu0
        %1181 = vmatprep.mubr.bf16.mxu0 0
        %1182 = vmatmul.mubr.bf16.gmra.mxu0 %v1024
        %v1183 = vpop.f32.mrf.mxu0
        %v1184 = vadd.f32 %v892, %v1183
        %v1185 = vpop.f32.mrf.mxu0
        %v1186 = vpop.f32.mrf.mxu0
        %v1187 = vadd.f32 %v895, %v1186
        %v1188 = vpop.f32.mrf.mxu0
        %1189 = vdwg.mxu0
        %v1190 = vld [vmem:[%s196] sm:$0xe]
        %v1191 = vld [vmem:[%s196 + $0xc] sm:$0xe]
        %v1192 = vld [vmem:[%s196 + $0x18] sm:$0xe]
        %v1193 = vld [vmem:[%s196 + $0x24] sm:$0xe]
        %v1194 = vld [vmem:[%s196 + $0x30] sm:$0xe]
        %v1195 = vld [vmem:[%s196 + $0x3c] sm:$0xe]
        %v1196 = vld [vmem:[%s196 + $0x48] sm:$0xe]
        %v1197 = vld [vmem:[%s196 + $0x54] sm:$0xe]
        %v1198 = vld [vmem:[%s196 + $0x60] sm:$0xe]
        %v1199 = vld [vmem:[%s196 + $0x6c] sm:$0xe]
        %v1200 = vld [vmem:[%s196 + $0x78] sm:$0xe]
        %v1201 = vld [vmem:[%s196 + $0x84] sm:$0xe]
        %v1202 = vld [vmem:[%s196 + $0x90] sm:$0xe]
        %v1203 = vld [vmem:[%s196 + $0x9c] sm:$0xe]
        %v1204 = vld [vmem:[%s196 + $0xa8] sm:$0xe]
        %v1205 = vld [vmem:[%s196 + $0xb4] sm:$0xe]
        %vm1238 = vcmask 1042432
        %vm1239 = vcmask 1046532
        %vm1240 = vmor %vm1238, %vm1239
        %v1241 = vrot.slane %v1190, 5
        %v1242 = vrot.slane %v1241, 4
        %v1243 = vrot.slane %v199, 5
        %v1244 = vsel %vm1240, %v1242, %v1243
        %v1245 = vrot.slane %v1243, 4
        %v1246 = vrot.slane %v231, 5
        %v1247 = vsel %vm1240, %v1245, %v1246
        %v1248 = vrot.slane %v1191, 5
        %v1249 = vrot.slane %v1248, 4
        %v1250 = vrot.slane %v201, 5
        %v1251 = vsel %vm1240, %v1249, %v1250
        %v1252 = vrot.slane %v1250, 4
        %v1253 = vrot.slane %v232, 5
        %v1254 = vsel %vm1240, %v1252, %v1253
        %v1255 = vrot.slane %v1192, 5
        %v1256 = vrot.slane %v1255, 4
        %v1257 = vrot.slane %v203, 5
        %v1258 = vsel %vm1240, %v1256, %v1257
        %v1259 = vrot.slane %v1257, 4
        %v1260 = vrot.slane %v233, 5
        %v1261 = vsel %vm1240, %v1259, %v1260
        %v1262 = vrot.slane %v1193, 5
        %v1263 = vrot.slane %v1262, 4
        %v1264 = vrot.slane %v205, 5
        %v1265 = vsel %vm1240, %v1263, %v1264
        %v1266 = vrot.slane %v1264, 4
        %v1267 = vrot.slane %v234, 5
        %v1268 = vsel %vm1240, %v1266, %v1267
        %v1269 = vrot.slane %v1194, 5
        %v1270 = vrot.slane %v1269, 4
        %v1271 = vrot.slane %v207, 5
        %v1272 = vsel %vm1240, %v1270, %v1271
        %v1273 = vrot.slane %v1271, 4
        %v1274 = vrot.slane %v235, 5
        %v1275 = vsel %vm1240, %v1273, %v1274
        %v1276 = vrot.slane %v1195, 5
        %v1277 = vrot.slane %v1276, 4
        %v1278 = vrot.slane %v209, 5
        %v1279 = vsel %vm1240, %v1277, %v1278
        %v1280 = vrot.slane %v1278, 4
        %v1281 = vrot.slane %v236, 5
        %v1282 = vsel %vm1240, %v1280, %v1281
        %v1283 = vrot.slane %v1196, 5
        %v1284 = vrot.slane %v1283, 4
        %v1285 = vrot.slane %v211, 5
        %v1286 = vsel %vm1240, %v1284, %v1285
        %v1287 = vrot.slane %v1285, 4
        %v1288 = vrot.slane %v237, 5
        %v1289 = vsel %vm1240, %v1287, %v1288
        %v1290 = vrot.slane %v1197, 5
        %v1291 = vrot.slane %v1290, 4
        %v1292 = vrot.slane %v213, 5
        %v1293 = vsel %vm1240, %v1291, %v1292
        %v1294 = vrot.slane %v1292, 4
        %v1295 = vrot.slane %v238, 5
        %v1296 = vsel %vm1240, %v1294, %v1295
        %v1297 = vrot.slane %v1198, 5
        %v1298 = vrot.slane %v1297, 4
        %v1299 = vrot.slane %v215, 5
        %v1300 = vsel %vm1240, %v1298, %v1299
        %v1301 = vrot.slane %v1299, 4
        %v1302 = vrot.slane %v239, 5
        %v1303 = vsel %vm1240, %v1301, %v1302
        %v1304 = vrot.slane %v1199, 5
        %v1305 = vrot.slane %v1304, 4
        %v1306 = vrot.slane %v217, 5
        %v1307 = vsel %vm1240, %v1305, %v1306
        %v1308 = vrot.slane %v1306, 4
        %v1309 = vrot.slane %v240, 5
        %v1310 = vsel %vm1240, %v1308, %v1309
        %v1311 = vrot.slane %v1200, 5
        %v1312 = vrot.slane %v1311, 4
        %v1313 = vrot.slane %v219, 5
        %v1314 = vsel %vm1240, %v1312, %v1313
        %v1315 = vrot.slane %v1313, 4
        %v1316 = vrot.slane %v241, 5
        %v1317 = vsel %vm1240, %v1315, %v1316
        %v1318 = vrot.slane %v1201, 5
        %v1319 = vrot.slane %v1318, 4
        %v1320 = vrot.slane %v221, 5
        %v1321 = vsel %vm1240, %v1319, %v1320
        %v1322 = vrot.slane %v1320, 4
        %v1323 = vrot.slane %v242, 5
        %v1324 = vsel %vm1240, %v1322, %v1323
        %v1325 = vrot.slane %v1202, 5
        %v1326 = vrot.slane %v1325, 4
        %v1327 = vrot.slane %v223, 5
        %v1328 = vsel %vm1240, %v1326, %v1327
        %v1329 = vrot.slane %v1327, 4
        %v1330 = vrot.slane %v243, 5
        %v1331 = vsel %vm1240, %v1329, %v1330
        %v1332 = vrot.slane %v1203, 5
        %v1333 = vrot.slane %v1332, 4
        %v1334 = vrot.slane %v225, 5
        %v1335 = vsel %vm1240, %v1333, %v1334
        %v1336 = vrot.slane %v1334, 4
        %v1337 = vrot.slane %v244, 5
        %v1338 = vsel %vm1240, %v1336, %v1337
        %v1339 = vrot.slane %v1204, 5
        %v1340 = vrot.slane %v1339, 4
        %v1341 = vrot.slane %v227, 5
        %v1342 = vsel %vm1240, %v1340, %v1341
        %v1343 = vrot.slane %v1341, 4
        %v1344 = vrot.slane %v245, 5
        %v1345 = vsel %vm1240, %v1343, %v1344
        %v1346 = vrot.slane %v1205, 5
        %v1347 = vrot.slane %v1346, 4
        %v1348 = vrot.slane %v229, 5
        %v1349 = vsel %vm1240, %v1347, %v1348
        %v1350 = vrot.slane %v1348, 4
        %v1351 = vrot.slane %v246, 5
        %v1352 = vsel %vm1240, %v1350, %v1351
        %s1353 = scalar_lea.vmem %s1, 4
        %v1354 = vld [vmem:[%s1353] sm:$0x3]
        %v1355 = vunpack.c.l.b16 %v1244
        %v1356 = vunpack.c.l.b16 %v1247
        %v1357 = vunpack.c.l.b16 %v1251
        %v1358 = vunpack.c.l.b16 %v1254
        %v1359 = vunpack.c.l.b16 %v1258
        %v1360 = vunpack.c.l.b16 %v1261
        %v1361 = vunpack.c.l.b16 %v1265
        %v1362 = vunpack.c.l.b16 %v1268
        %v1363 = vunpack.c.l.b16 %v1272
        %v1364 = vunpack.c.l.b16 %v1275
        %v1365 = vunpack.c.l.b16 %v1279
        %v1366 = vunpack.c.l.b16 %v1282
        %v1367 = vunpack.c.l.b16 %v1286
        %v1368 = vunpack.c.l.b16 %v1289
        %v1369 = vunpack.c.l.b16 %v1293
        %v1370 = vunpack.c.l.b16 %v1296
        %v1371 = vunpack.c.l.b16 %v1300
        %v1372 = vunpack.c.l.b16 %v1303
        %v1373 = vunpack.c.l.b16 %v1307
        %v1374 = vunpack.c.l.b16 %v1310
        %v1375 = vunpack.c.l.b16 %v1314
        %v1376 = vunpack.c.l.b16 %v1317
        %v1377 = vunpack.c.l.b16 %v1321
        %v1378 = vunpack.c.l.b16 %v1324
        %v1379 = vunpack.c.l.b16 %v1328
        %v1380 = vunpack.c.l.b16 %v1331
        %v1381 = vunpack.c.l.b16 %v1335
        %v1382 = vunpack.c.l.b16 %v1338
        %v1383 = vunpack.c.l.b16 %v1342
        %v1384 = vunpack.c.l.b16 %v1345
        %v1385 = vunpack.c.l.b16 %v1349
        %v1386 = vunpack.c.l.b16 %v1352
        %v1387 = vpack.c.b16 %v1356, %v1355
        %v1388 = vpack.c.b16 %v1358, %v1357
        %v1389 = vpack.c.b16 %v1360, %v1359
        %v1390 = vpack.c.b16 %v1362, %v1361
        %v1391 = vpack.c.b16 %v1364, %v1363
        %v1392 = vpack.c.b16 %v1366, %v1365
        %v1393 = vpack.c.b16 %v1368, %v1367
        %v1394 = vpack.c.b16 %v1370, %v1369
        %v1395 = vpack.c.b16 %v1372, %v1371
        %v1396 = vpack.c.b16 %v1374, %v1373
        %v1397 = vpack.c.b16 %v1376, %v1375
        %v1398 = vpack.c.b16 %v1378, %v1377
        %v1399 = vpack.c.b16 %v1380, %v1379
        %v1400 = vpack.c.b16 %v1382, %v1381
        %v1401 = vpack.c.b16 %v1384, %v1383
        %v1402 = vpack.c.b16 %v1386, %v1385
        %v1404 = vsel %vm684, %v1387, 0
        %v1407 = vsel %vm684, %v1388, 0
        %v1410 = vsel %vm684, %v1389, 0
        %v1413 = vsel %vm684, %v1390, 0
        %v1416 = vsel %vm684, %v1391, 0
        %v1419 = vsel %vm684, %v1392, 0
        %v1422 = vsel %vm684, %v1393, 0
        %v1425 = vsel %vm684, %v1394, 0
        %v1428 = vsel %vm684, %v1395, 0
        %v1431 = vsel %vm684, %v1396, 0
        %v1434 = vsel %vm684, %v1397, 0
        %v1437 = vsel %vm684, %v1398, 0
        %v1440 = vsel %vm684, %v1399, 0
        %v1443 = vsel %vm684, %v1400, 0
        %v1446 = vsel %vm684, %v1401, 0
        %v1449 = vsel %vm684, %v1402, 0
        %v1452 = vsel %vm733, %v1354, 0
        %1454 = vmatprep.subr.bf16.mxu0 0
        %1455 = vmatpush1.bf16.msra.mxu0 0
        %1456 = vmatprep.subr.bf16.mxu0 0
        %1457 = vmatpush1.bf16.msra.mxu0 0
        %1458 = vmatprep.subr.bf16.mxu0 0
        %1459 = vmatpush1.bf16.msra.mxu0 0
        %1460 = vmatprep.subr.bf16.mxu0 0
        %1461 = vmatpush1.bf16.msra.mxu0 0
        %1462 = vmatprep.subr.bf16.mxu0 0
        %1463 = vmatpush1.bf16.msra.mxu0 0
        %1464 = vmatprep.subr.bf16.mxu0 0
        %1465 = vmatpush1.bf16.msra.mxu0 0
        %1466 = vmatprep.subr.bf16.mxu0 0
        %1467 = vmatpush1.bf16.msra.mxu0 0
        %1468 = vmatprep.subr.bf16.mxu0 0
        %1469 = vmatpush1.bf16.msra.mxu0 %v1452
        %1470 = vmatprep.subr.bf16.mxu0 0
        %1471 = vmatpush2.bf16.msra.mxu0 0
        %1472 = vmatprep.subr.bf16.mxu0 0
        %1473 = vmatpush2.bf16.msra.mxu0 0
        %1474 = vmatprep.subr.bf16.mxu0 0
        %1475 = vmatpush2.bf16.msra.mxu0 0
        %1476 = vmatprep.subr.bf16.mxu0 0
        %1477 = vmatpush2.bf16.msra.mxu0 0
        %1478 = vmatprep.subr.bf16.mxu0 0
        %1479 = vmatpush2.bf16.msra.mxu0 0
        %1480 = vmatprep.subr.bf16.mxu0 0
        %1481 = vmatpush2.bf16.msra.mxu0 0
        %1482 = vmatprep.subr.bf16.mxu0 0
        %1483 = vmatpush2.bf16.msra.mxu0 0
        %1484 = vmatprep.subr.bf16.mxu0 0
        %1485 = vmatpush2.bf16.msra.mxu0 0
        %1486 = vmatprep.mubr.bf16.mxu0 0
        %1487 = vmatmul.mubr.bf16.gmra.mxu0 %v1404
        %v1488 = vpop.f32.mrf.mxu0
        %v1489 = vadd.f32 0.0, %v1488
        %v1490 = vpop.f32.mrf.mxu0
        %v1491 = vpop.f32.mrf.mxu0
        %v1492 = vadd.f32 0.0, %v1491
        %v1493 = vpop.f32.mrf.mxu0
        %1494 = vmatprep.mubr.bf16.mxu0 0
        %1495 = vmatmul.mubr.bf16.gmra.mxu0 %v1407
        %v1496 = vpop.f32.mrf.mxu0
        %v1497 = vadd.f32 0.0, %v1496
        %v1498 = vpop.f32.mrf.mxu0
        %v1499 = vpop.f32.mrf.mxu0
        %v1500 = vadd.f32 0.0, %v1499
        %v1501 = vpop.f32.mrf.mxu0
        %1502 = vmatprep.mubr.bf16.mxu0 0
        %1503 = vmatmul.mubr.bf16.gmra.mxu0 %v1410
        %v1504 = vpop.f32.mrf.mxu0
        %v1505 = vadd.f32 0.0, %v1504
        %v1506 = vpop.f32.mrf.mxu0
        %v1507 = vpop.f32.mrf.mxu0
        %v1508 = vadd.f32 0.0, %v1507
        %v1509 = vpop.f32.mrf.mxu0
        %1510 = vmatprep.mubr.bf16.mxu0 0
        %1511 = vmatmul.mubr.bf16.gmra.mxu0 %v1413
        %v1512 = vpop.f32.mrf.mxu0
        %v1513 = vadd.f32 0.0, %v1512
        %v1514 = vpop.f32.mrf.mxu0
        %v1515 = vpop.f32.mrf.mxu0
        %v1516 = vadd.f32 0.0, %v1515
        %v1517 = vpop.f32.mrf.mxu0
        %1518 = vmatprep.mubr.bf16.mxu0 0
        %1519 = vmatmul.mubr.bf16.gmra.mxu0 %v1416
        %v1520 = vpop.f32.mrf.mxu0
        %v1521 = vadd.f32 0.0, %v1520
        %v1522 = vpop.f32.mrf.mxu0
        %v1523 = vpop.f32.mrf.mxu0
        %v1524 = vadd.f32 0.0, %v1523
        %v1525 = vpop.f32.mrf.mxu0
        %1526 = vmatprep.mubr.bf16.mxu0 0
        %1527 = vmatmul.mubr.bf16.gmra.mxu0 %v1419
        %v1528 = vpop.f32.mrf.mxu0
        %v1529 = vadd.f32 0.0, %v1528
        %v1530 = vpop.f32.mrf.mxu0
        %v1531 = vpop.f32.mrf.mxu0
        %v1532 = vadd.f32 0.0, %v1531
        %v1533 = vpop.f32.mrf.mxu0
        %1534 = vmatprep.mubr.bf16.mxu0 0
        %1535 = vmatmul.mubr.bf16.gmra.mxu0 %v1422
        %v1536 = vpop.f32.mrf.mxu0
        %v1537 = vadd.f32 0.0, %v1536
        %v1538 = vpop.f32.mrf.mxu0
        %v1539 = vpop.f32.mrf.mxu0
        %v1540 = vadd.f32 0.0, %v1539
        %v1541 = vpop.f32.mrf.mxu0
        %1542 = vmatprep.mubr.bf16.mxu0 0
        %1543 = vmatmul.mubr.bf16.gmra.mxu0 %v1425
        %v1544 = vpop.f32.mrf.mxu0
        %v1545 = vadd.f32 0.0, %v1544
        %v1546 = vpop.f32.mrf.mxu0
        %v1547 = vpop.f32.mrf.mxu0
        %v1548 = vadd.f32 0.0, %v1547
        %v1549 = vpop.f32.mrf.mxu0
        %1550 = vmatprep.mubr.bf16.mxu0 0
        %1551 = vmatmul.mubr.bf16.gmra.mxu0 %v1428
        %v1552 = vpop.f32.mrf.mxu0
        %v1553 = vadd.f32 0.0, %v1552
        %v1554 = vpop.f32.mrf.mxu0
        %v1555 = vpop.f32.mrf.mxu0
        %v1556 = vadd.f32 0.0, %v1555
        %v1557 = vpop.f32.mrf.mxu0
        %1558 = vmatprep.mubr.bf16.mxu0 0
        %1559 = vmatmul.mubr.bf16.gmra.mxu0 %v1431
        %v1560 = vpop.f32.mrf.mxu0
        %v1561 = vadd.f32 0.0, %v1560
        %v1562 = vpop.f32.mrf.mxu0
        %v1563 = vpop.f32.mrf.mxu0
        %v1564 = vadd.f32 0.0, %v1563
        %v1565 = vpop.f32.mrf.mxu0
        %1566 = vmatprep.mubr.bf16.mxu0 0
        %1567 = vmatmul.mubr.bf16.gmra.mxu0 %v1434
        %v1568 = vpop.f32.mrf.mxu0
        %v1569 = vadd.f32 0.0, %v1568
        %v1570 = vpop.f32.mrf.mxu0
        %v1571 = vpop.f32.mrf.mxu0
        %v1572 = vadd.f32 0.0, %v1571
        %v1573 = vpop.f32.mrf.mxu0
        %1574 = vmatprep.mubr.bf16.mxu0 0
        %1575 = vmatmul.mubr.bf16.gmra.mxu0 %v1437
        %v1576 = vpop.f32.mrf.mxu0
        %v1577 = vadd.f32 0.0, %v1576
        %v1578 = vpop.f32.mrf.mxu0
        %v1579 = vpop.f32.mrf.mxu0
        %v1580 = vadd.f32 0.0, %v1579
        %v1581 = vpop.f32.mrf.mxu0
        %1582 = vmatprep.mubr.bf16.mxu0 0
        %1583 = vmatmul.mubr.bf16.gmra.mxu0 %v1440
        %v1584 = vpop.f32.mrf.mxu0
        %v1585 = vadd.f32 0.0, %v1584
        %v1586 = vpop.f32.mrf.mxu0
        %v1587 = vpop.f32.mrf.mxu0
        %v1588 = vadd.f32 0.0, %v1587
        %v1589 = vpop.f32.mrf.mxu0
        %1590 = vmatprep.mubr.bf16.mxu0 0
        %1591 = vmatmul.mubr.bf16.gmra.mxu0 %v1443
        %v1592 = vpop.f32.mrf.mxu0
        %v1593 = vadd.f32 0.0, %v1592
        %v1594 = vpop.f32.mrf.mxu0
        %v1595 = vpop.f32.mrf.mxu0
        %v1596 = vadd.f32 0.0, %v1595
        %v1597 = vpop.f32.mrf.mxu0
        %1598 = vmatprep.mubr.bf16.mxu0 0
        %1599 = vmatmul.mubr.bf16.gmra.mxu0 %v1446
        %v1600 = vpop.f32.mrf.mxu0
        %v1601 = vadd.f32 0.0, %v1600
        %v1602 = vpop.f32.mrf.mxu0
        %v1603 = vpop.f32.mrf.mxu0
        %v1604 = vadd.f32 0.0, %v1603
        %v1605 = vpop.f32.mrf.mxu0
        %1606 = vmatprep.mubr.bf16.mxu0 0
        %1607 = vmatmul.mubr.bf16.gmra.mxu0 %v1449
        %v1608 = vpop.f32.mrf.mxu0
        %v1609 = vadd.f32 0.0, %v1608
        %v1610 = vpop.f32.mrf.mxu0
        %v1611 = vpop.f32.mrf.mxu0
        %v1612 = vadd.f32 0.0, %v1611
        %v1613 = vpop.f32.mrf.mxu0
        %1614 = vdwg.mxu0
        %v1615 = vadd.f32 %v1064, %v1489
        %v1616 = vadd.f32 %v1067, %v1492
        %v1617 = vadd.f32 %v1072, %v1497
        %v1618 = vadd.f32 %v1075, %v1500
        %v1619 = vadd.f32 %v1080, %v1505
        %v1620 = vadd.f32 %v1083, %v1508
        %v1621 = vadd.f32 %v1088, %v1513
        %v1622 = vadd.f32 %v1091, %v1516
        %v1623 = vadd.f32 %v1096, %v1521
        %v1624 = vadd.f32 %v1099, %v1524
        %v1625 = vadd.f32 %v1104, %v1529
        %v1626 = vadd.f32 %v1107, %v1532
        %v1627 = vadd.f32 %v1112, %v1537
        %v1628 = vadd.f32 %v1115, %v1540
        %v1629 = vadd.f32 %v1120, %v1545
        %v1630 = vadd.f32 %v1123, %v1548
        %v1631 = vadd.f32 %v1128, %v1553
        %v1632 = vadd.f32 %v1131, %v1556
        %v1633 = vadd.f32 %v1136, %v1561
        %v1634 = vadd.f32 %v1139, %v1564
        %v1635 = vadd.f32 %v1144, %v1569
        %v1636 = vadd.f32 %v1147, %v1572
        %v1637 = vadd.f32 %v1152, %v1577
        %v1638 = vadd.f32 %v1155, %v1580
        %v1639 = vadd.f32 %v1160, %v1585
        %v1640 = vadd.f32 %v1163, %v1588
        %v1641 = vadd.f32 %v1168, %v1593
        %v1642 = vadd.f32 %v1171, %v1596
        %v1643 = vadd.f32 %v1176, %v1601
        %v1644 = vadd.f32 %v1179, %v1604
        %v1645 = vadd.f32 %v1184, %v1609
        %v1646 = vadd.f32 %v1187, %v1612
        %s1647 = scalar_lea.vmem %s196, 12
        %v1648 = vld [vmem:[%s1647] sm:$0xf]
        %v1649 = vld [vmem:[%s1647 + $0x4] sm:$0xf]
        %v1650 = vld [vmem:[%s1647 + $0xc] sm:$0xf]
        %v1651 = vld [vmem:[%s1647 + $0x10] sm:$0xf]
        %v1652 = vld [vmem:[%s1647 + $0x18] sm:$0xf]
        %v1653 = vld [vmem:[%s1647 + $0x1c] sm:$0xf]
        %v1654 = vld [vmem:[%s1647 + $0x24] sm:$0xf]
        %v1655 = vld [vmem:[%s1647 + $0x28] sm:$0xf]
        %v1656 = vld [vmem:[%s1647 + $0x30] sm:$0xf]
        %v1657 = vld [vmem:[%s1647 + $0x34] sm:$0xf]
        %v1658 = vld [vmem:[%s1647 + $0x3c] sm:$0xf]
        %v1659 = vld [vmem:[%s1647 + $0x40] sm:$0xf]
        %v1660 = vld [vmem:[%s1647 + $0x48] sm:$0xf]
        %v1661 = vld [vmem:[%s1647 + $0x4c] sm:$0xf]
        %v1662 = vld [vmem:[%s1647 + $0x54] sm:$0xf]
        %v1663 = vld [vmem:[%s1647 + $0x58] sm:$0xf]
        %v1664 = vld [vmem:[%s1647 + $0x60] sm:$0xf]
        %v1665 = vld [vmem:[%s1647 + $0x64] sm:$0xf]
        %v1666 = vld [vmem:[%s1647 + $0x6c] sm:$0xf]
        %v1667 = vld [vmem:[%s1647 + $0x70] sm:$0xf]
        %v1668 = vld [vmem:[%s1647 + $0x78] sm:$0xf]
        %v1669 = vld [vmem:[%s1647 + $0x7c] sm:$0xf]
        %v1670 = vld [vmem:[%s1647 + $0x84] sm:$0xf]
        %v1671 = vld [vmem:[%s1647 + $0x88] sm:$0xf]
        %v1672 = vld [vmem:[%s1647 + $0x90] sm:$0xf]
        %v1673 = vld [vmem:[%s1647 + $0x94] sm:$0xf]
        %v1674 = vld [vmem:[%s1647 + $0x9c] sm:$0xf]
        %v1675 = vld [vmem:[%s1647 + $0xa0] sm:$0xf]
        %v1676 = vld [vmem:[%s1647 + $0xa8] sm:$0xf]
        %v1677 = vld [vmem:[%s1647 + $0xac] sm:$0xf]
        %v1678 = vld [vmem:[%s1647 + $0xb4] sm:$0xf]
        %v1679 = vld [vmem:[%s1647 + $0xb8] sm:$0xf]
        %s1680 = scalar_lea.vmem %s1, 6
        %v1681 = vld [vmem:[%s1680] sm:$0x3]
        %v1714 = vunpack.c.l.b16 %v1648
        %v1715 = vunpack.c.l.b16 %v1649
        %v1716 = vunpack.c.l.b16 %v1650
        %v1717 = vunpack.c.l.b16 %v1651
        %v1718 = vunpack.c.l.b16 %v1652
        %v1719 = vunpack.c.l.b16 %v1653
        %v1720 = vunpack.c.l.b16 %v1654
        %v1721 = vunpack.c.l.b16 %v1655
        %v1722 = vunpack.c.l.b16 %v1656
        %v1723 = vunpack.c.l.b16 %v1657
        %v1724 = vunpack.c.l.b16 %v1658
        %v1725 = vunpack.c.l.b16 %v1659
        %v1726 = vunpack.c.l.b16 %v1660
        %v1727 = vunpack.c.l.b16 %v1661
        %v1728 = vunpack.c.l.b16 %v1662
        %v1729 = vunpack.c.l.b16 %v1663
        %v1730 = vunpack.c.l.b16 %v1664
        %v1731 = vunpack.c.l.b16 %v1665
        %v1732 = vunpack.c.l.b16 %v1666
        %v1733 = vunpack.c.l.b16 %v1667
        %v1734 = vunpack.c.l.b16 %v1668
        %v1735 = vunpack.c.l.b16 %v1669
        %v1736 = vunpack.c.l.b16 %v1670
        %v1737 = vunpack.c.l.b16 %v1671
        %v1738 = vunpack.c.l.b16 %v1672
        %v1739 = vunpack.c.l.b16 %v1673
        %v1740 = vunpack.c.l.b16 %v1674
        %v1741 = vunpack.c.l.b16 %v1675
        %v1742 = vunpack.c.l.b16 %v1676
        %v1743 = vunpack.c.l.b16 %v1677
        %v1744 = vunpack.c.l.b16 %v1678
        %v1745 = vunpack.c.l.b16 %v1679
        %v1746 = vpack.c.b16 %v1715, %v1714
        %v1747 = vpack.c.b16 %v1717, %v1716
        %v1748 = vpack.c.b16 %v1719, %v1718
        %v1749 = vpack.c.b16 %v1721, %v1720
        %v1750 = vpack.c.b16 %v1723, %v1722
        %v1751 = vpack.c.b16 %v1725, %v1724
        %v1752 = vpack.c.b16 %v1727, %v1726
        %v1753 = vpack.c.b16 %v1729, %v1728
        %v1754 = vpack.c.b16 %v1731, %v1730
        %v1755 = vpack.c.b16 %v1733, %v1732
        %v1756 = vpack.c.b16 %v1735, %v1734
        %v1757 = vpack.c.b16 %v1737, %v1736
        %v1758 = vpack.c.b16 %v1739, %v1738
        %v1759 = vpack.c.b16 %v1741, %v1740
        %v1760 = vpack.c.b16 %v1743, %v1742
        %v1761 = vpack.c.b16 %v1745, %v1744
        %v1763 = vsel %vm684, %v1746, 0
        %v1766 = vsel %vm684, %v1747, 0
        %v1769 = vsel %vm684, %v1748, 0
        %v1772 = vsel %vm684, %v1749, 0
        %v1775 = vsel %vm684, %v1750, 0
        %v1778 = vsel %vm684, %v1751, 0
        %v1781 = vsel %vm684, %v1752, 0
        %v1784 = vsel %vm684, %v1753, 0
        %v1787 = vsel %vm684, %v1754, 0
        %v1790 = vsel %vm684, %v1755, 0
        %v1793 = vsel %vm684, %v1756, 0
        %v1796 = vsel %vm684, %v1757, 0
        %v1799 = vsel %vm684, %v1758, 0
        %v1802 = vsel %vm684, %v1759, 0
        %v1805 = vsel %vm684, %v1760, 0
        %v1808 = vsel %vm684, %v1761, 0
        %v1811 = vsel %vm733, %v1681, 0
        %1813 = vmatprep.subr.bf16.mxu0 0
        %1814 = vmatpush1.bf16.msra.mxu0 0
        %1815 = vmatprep.subr.bf16.mxu0 0
        %1816 = vmatpush1.bf16.msra.mxu0 0
        %1817 = vmatprep.subr.bf16.mxu0 0
        %1818 = vmatpush1.bf16.msra.mxu0 0
        %1819 = vmatprep.subr.bf16.mxu0 0
        %1820 = vmatpush1.bf16.msra.mxu0 0
        %1821 = vmatprep.subr.bf16.mxu0 0
        %1822 = vmatpush1.bf16.msra.mxu0 0
        %1823 = vmatprep.subr.bf16.mxu0 0
        %1824 = vmatpush1.bf16.msra.mxu0 0
        %1825 = vmatprep.subr.bf16.mxu0 0
        %1826 = vmatpush1.bf16.msra.mxu0 0
        %1827 = vmatprep.subr.bf16.mxu0 0
        %1828 = vmatpush1.bf16.msra.mxu0 %v1811
        %1829 = vmatprep.subr.bf16.mxu0 0
        %1830 = vmatpush2.bf16.msra.mxu0 0
        %1831 = vmatprep.subr.bf16.mxu0 0
        %1832 = vmatpush2.bf16.msra.mxu0 0
        %1833 = vmatprep.subr.bf16.mxu0 0
        %1834 = vmatpush2.bf16.msra.mxu0 0
        %1835 = vmatprep.subr.bf16.mxu0 0
        %1836 = vmatpush2.bf16.msra.mxu0 0
        %1837 = vmatprep.subr.bf16.mxu0 0
        %1838 = vmatpush2.bf16.msra.mxu0 0
        %1839 = vmatprep.subr.bf16.mxu0 0
        %1840 = vmatpush2.bf16.msra.mxu0 0
        %1841 = vmatprep.subr.bf16.mxu0 0
        %1842 = vmatpush2.bf16.msra.mxu0 0
        %1843 = vmatprep.subr.bf16.mxu0 0
        %1844 = vmatpush2.bf16.msra.mxu0 0
        %1845 = vmatprep.mubr.bf16.mxu0 0
        %1846 = vmatmul.mubr.bf16.gmra.mxu0 %v1763
        %v1847 = vpop.f32.mrf.mxu0
        %v1848 = vadd.f32 0.0, %v1847
        %v1849 = vpop.f32.mrf.mxu0
        %v1850 = vpop.f32.mrf.mxu0
        %v1851 = vadd.f32 0.0, %v1850
        %v1852 = vpop.f32.mrf.mxu0
        %1853 = vmatprep.mubr.bf16.mxu0 0
        %1854 = vmatmul.mubr.bf16.gmra.mxu0 %v1766
        %v1855 = vpop.f32.mrf.mxu0
        %v1856 = vadd.f32 0.0, %v1855
        %v1857 = vpop.f32.mrf.mxu0
        %v1858 = vpop.f32.mrf.mxu0
        %v1859 = vadd.f32 0.0, %v1858
        %v1860 = vpop.f32.mrf.mxu0
        %1861 = vmatprep.mubr.bf16.mxu0 0
        %1862 = vmatmul.mubr.bf16.gmra.mxu0 %v1769
        %v1863 = vpop.f32.mrf.mxu0
        %v1864 = vadd.f32 0.0, %v1863
        %v1865 = vpop.f32.mrf.mxu0
        %v1866 = vpop.f32.mrf.mxu0
        %v1867 = vadd.f32 0.0, %v1866
        %v1868 = vpop.f32.mrf.mxu0
        %1869 = vmatprep.mubr.bf16.mxu0 0
        %1870 = vmatmul.mubr.bf16.gmra.mxu0 %v1772
        %v1871 = vpop.f32.mrf.mxu0
        %v1872 = vadd.f32 0.0, %v1871
        %v1873 = vpop.f32.mrf.mxu0
        %v1874 = vpop.f32.mrf.mxu0
        %v1875 = vadd.f32 0.0, %v1874
        %v1876 = vpop.f32.mrf.mxu0
        %1877 = vmatprep.mubr.bf16.mxu0 0
        %1878 = vmatmul.mubr.bf16.gmra.mxu0 %v1775
        %v1879 = vpop.f32.mrf.mxu0
        %v1880 = vadd.f32 0.0, %v1879
        %v1881 = vpop.f32.mrf.mxu0
        %v1882 = vpop.f32.mrf.mxu0
        %v1883 = vadd.f32 0.0, %v1882
        %v1884 = vpop.f32.mrf.mxu0
        %1885 = vmatprep.mubr.bf16.mxu0 0
        %1886 = vmatmul.mubr.bf16.gmra.mxu0 %v1778
        %v1887 = vpop.f32.mrf.mxu0
        %v1888 = vadd.f32 0.0, %v1887
        %v1889 = vpop.f32.mrf.mxu0
        %v1890 = vpop.f32.mrf.mxu0
        %v1891 = vadd.f32 0.0, %v1890
        %v1892 = vpop.f32.mrf.mxu0
        %1893 = vmatprep.mubr.bf16.mxu0 0
        %1894 = vmatmul.mubr.bf16.gmra.mxu0 %v1781
        %v1895 = vpop.f32.mrf.mxu0
        %v1896 = vadd.f32 0.0, %v1895
        %v1897 = vpop.f32.mrf.mxu0
        %v1898 = vpop.f32.mrf.mxu0
        %v1899 = vadd.f32 0.0, %v1898
        %v1900 = vpop.f32.mrf.mxu0
        %1901 = vmatprep.mubr.bf16.mxu0 0
        %1902 = vmatmul.mubr.bf16.gmra.mxu0 %v1784
        %v1903 = vpop.f32.mrf.mxu0
        %v1904 = vadd.f32 0.0, %v1903
        %v1905 = vpop.f32.mrf.mxu0
        %v1906 = vpop.f32.mrf.mxu0
        %v1907 = vadd.f32 0.0, %v1906
        %v1908 = vpop.f32.mrf.mxu0
        %1909 = vmatprep.mubr.bf16.mxu0 0
        %1910 = vmatmul.mubr.bf16.gmra.mxu0 %v1787
        %v1911 = vpop.f32.mrf.mxu0
        %v1912 = vadd.f32 0.0, %v1911
        %v1913 = vpop.f32.mrf.mxu0
        %v1914 = vpop.f32.mrf.mxu0
        %v1915 = vadd.f32 0.0, %v1914
        %v1916 = vpop.f32.mrf.mxu0
        %1917 = vmatprep.mubr.bf16.mxu0 0
        %1918 = vmatmul.mubr.bf16.gmra.mxu0 %v1790
        %v1919 = vpop.f32.mrf.mxu0
        %v1920 = vadd.f32 0.0, %v1919
        %v1921 = vpop.f32.mrf.mxu0
        %v1922 = vpop.f32.mrf.mxu0
        %v1923 = vadd.f32 0.0, %v1922
        %v1924 = vpop.f32.mrf.mxu0
        %1925 = vmatprep.mubr.bf16.mxu0 0
        %1926 = vmatmul.mubr.bf16.gmra.mxu0 %v1793
        %v1927 = vpop.f32.mrf.mxu0
        %v1928 = vadd.f32 0.0, %v1927
        %v1929 = vpop.f32.mrf.mxu0
        %v1930 = vpop.f32.mrf.mxu0
        %v1931 = vadd.f32 0.0, %v1930
        %v1932 = vpop.f32.mrf.mxu0
        %1933 = vmatprep.mubr.bf16.mxu0 0
        %1934 = vmatmul.mubr.bf16.gmra.mxu0 %v1796
        %v1935 = vpop.f32.mrf.mxu0
        %v1936 = vadd.f32 0.0, %v1935
        %v1937 = vpop.f32.mrf.mxu0
        %v1938 = vpop.f32.mrf.mxu0
        %v1939 = vadd.f32 0.0, %v1938
        %v1940 = vpop.f32.mrf.mxu0
        %1941 = vmatprep.mubr.bf16.mxu0 0
        %1942 = vmatmul.mubr.bf16.gmra.mxu0 %v1799
        %v1943 = vpop.f32.mrf.mxu0
        %v1944 = vadd.f32 0.0, %v1943
        %v1945 = vpop.f32.mrf.mxu0
        %v1946 = vpop.f32.mrf.mxu0
        %v1947 = vadd.f32 0.0, %v1946
        %v1948 = vpop.f32.mrf.mxu0
        %1949 = vmatprep.mubr.bf16.mxu0 0
        %1950 = vmatmul.mubr.bf16.gmra.mxu0 %v1802
        %v1951 = vpop.f32.mrf.mxu0
        %v1952 = vadd.f32 0.0, %v1951
        %v1953 = vpop.f32.mrf.mxu0
        %v1954 = vpop.f32.mrf.mxu0
        %v1955 = vadd.f32 0.0, %v1954
        %v1956 = vpop.f32.mrf.mxu0
        %1957 = vmatprep.mubr.bf16.mxu0 0
        %1958 = vmatmul.mubr.bf16.gmra.mxu0 %v1805
        %v1959 = vpop.f32.mrf.mxu0
        %v1960 = vadd.f32 0.0, %v1959
        %v1961 = vpop.f32.mrf.mxu0
        %v1962 = vpop.f32.mrf.mxu0
        %v1963 = vadd.f32 0.0, %v1962
        %v1964 = vpop.f32.mrf.mxu0
        %1965 = vmatprep.mubr.bf16.mxu0 0
        %1966 = vmatmul.mubr.bf16.gmra.mxu0 %v1808
        %v1967 = vpop.f32.mrf.mxu0
        %v1968 = vadd.f32 0.0, %v1967
        %v1969 = vpop.f32.mrf.mxu0
        %v1970 = vpop.f32.mrf.mxu0
        %v1971 = vadd.f32 0.0, %v1970
        %v1972 = vpop.f32.mrf.mxu0
        %1973 = vdwg.mxu0
        %v1974 = vadd.f32 %v1615, %v1848
        %v1975 = vadd.f32 %v1616, %v1851
        %v1976 = vadd.f32 %v1617, %v1856
        %v1977 = vadd.f32 %v1618, %v1859
        %v1978 = vadd.f32 %v1619, %v1864
        %v1979 = vadd.f32 %v1620, %v1867
        %v1980 = vadd.f32 %v1621, %v1872
        %v1981 = vadd.f32 %v1622, %v1875
        %v1982 = vadd.f32 %v1623, %v1880
        %v1983 = vadd.f32 %v1624, %v1883
        %v1984 = vadd.f32 %v1625, %v1888
        %v1985 = vadd.f32 %v1626, %v1891
        %v1986 = vadd.f32 %v1627, %v1896
        %v1987 = vadd.f32 %v1628, %v1899
        %v1988 = vadd.f32 %v1629, %v1904
        %v1989 = vadd.f32 %v1630, %v1907
        %v1990 = vadd.f32 %v1631, %v1912
        %v1991 = vadd.f32 %v1632, %v1915
        %v1992 = vadd.f32 %v1633, %v1920
        %v1993 = vadd.f32 %v1634, %v1923
        %v1994 = vadd.f32 %v1635, %v1928
        %v1995 = vadd.f32 %v1636, %v1931
        %v1996 = vadd.f32 %v1637, %v1936
        %v1997 = vadd.f32 %v1638, %v1939
        %v1998 = vadd.f32 %v1639, %v1944
        %v1999 = vadd.f32 %v1640, %v1947
        %v2000 = vadd.f32 %v1641, %v1952
        %v2001 = vadd.f32 %v1642, %v1955
        %v2002 = vadd.f32 %v1643, %v1960
        %v2003 = vadd.f32 %v1644, %v1963
        %v2004 = vadd.f32 %v1645, %v1968
        %v2005 = vadd.f32 %v1646, %v1971
        %v2006 = vld [vmem:[%s1647] sm:$0xf]
        %v2007 = vld [vmem:[%s1647 + $0x4] sm:$0xf]
        %v2008 = vld [vmem:[%s1647 + $0x8] sm:$0x1]
        %v2009 = vld [vmem:[%s1647 + $0xc] sm:$0xf]
        %v2010 = vld [vmem:[%s1647 + $0x10] sm:$0xf]
        %v2011 = vld [vmem:[%s1647 + $0x14] sm:$0x1]
        %v2012 = vld [vmem:[%s1647 + $0x18] sm:$0xf]
        %v2013 = vld [vmem:[%s1647 + $0x1c] sm:$0xf]
        %v2014 = vld [vmem:[%s1647 + $0x20] sm:$0x1]
        %v2015 = vld [vmem:[%s1647 + $0x24] sm:$0xf]
        %v2016 = vld [vmem:[%s1647 + $0x28] sm:$0xf]
        %v2017 = vld [vmem:[%s1647 + $0x2c] sm:$0x1]
        %v2018 = vld [vmem:[%s1647 + $0x30] sm:$0xf]
        %v2019 = vld [vmem:[%s1647 + $0x34] sm:$0xf]
        %v2020 = vld [vmem:[%s1647 + $0x38] sm:$0x1]
        %v2021 = vld [vmem:[%s1647 + $0x3c] sm:$0xf]
        %v2022 = vld [vmem:[%s1647 + $0x40] sm:$0xf]
        %v2023 = vld [vmem:[%s1647 + $0x44] sm:$0x1]
        %v2024 = vld [vmem:[%s1647 + $0x48] sm:$0xf]
        %v2025 = vld [vmem:[%s1647 + $0x4c] sm:$0xf]
        %v2026 = vld [vmem:[%s1647 + $0x50] sm:$0x1]
        %v2027 = vld [vmem:[%s1647 + $0x54] sm:$0xf]
        %v2028 = vld [vmem:[%s1647 + $0x58] sm:$0xf]
        %v2029 = vld [vmem:[%s1647 + $0x5c] sm:$0x1]
        %v2030 = vld [vmem:[%s1647 + $0x60] sm:$0xf]
        %v2031 = vld [vmem:[%s1647 + $0x64] sm:$0xf]
        %v2032 = vld [vmem:[%s1647 + $0x68] sm:$0x1]
        %v2033 = vld [vmem:[%s1647 + $0x6c] sm:$0xf]
        %v2034 = vld [vmem:[%s1647 + $0x70] sm:$0xf]
        %v2035 = vld [vmem:[%s1647 + $0x74] sm:$0x1]
        %v2036 = vld [vmem:[%s1647 + $0x78] sm:$0xf]
        %v2037 = vld [vmem:[%s1647 + $0x7c] sm:$0xf]
        %v2038 = vld [vmem:[%s1647 + $0x80] sm:$0x1]
        %v2039 = vld [vmem:[%s1647 + $0x84] sm:$0xf]
        %v2040 = vld [vmem:[%s1647 + $0x88] sm:$0xf]
        %v2041 = vld [vmem:[%s1647 + $0x8c] sm:$0x1]
        %v2042 = vld [vmem:[%s1647 + $0x90] sm:$0xf]
        %v2043 = vld [vmem:[%s1647 + $0x94] sm:$0xf]
        %v2044 = vld [vmem:[%s1647 + $0x98] sm:$0x1]
        %v2045 = vld [vmem:[%s1647 + $0x9c] sm:$0xf]
        %v2046 = vld [vmem:[%s1647 + $0xa0] sm:$0xf]
        %v2047 = vld [vmem:[%s1647 + $0xa4] sm:$0x1]
        %v2048 = vld [vmem:[%s1647 + $0xa8] sm:$0xf]
        %v2049 = vld [vmem:[%s1647 + $0xac] sm:$0xf]
        %v2050 = vld [vmem:[%s1647 + $0xb0] sm:$0x1]
        %v2051 = vld [vmem:[%s1647 + $0xb4] sm:$0xf]
        %v2052 = vld [vmem:[%s1647 + $0xb8] sm:$0xf]
        %v2053 = vld [vmem:[%s1647 + $0xbc] sm:$0x1]
        %v2055 = vshrl.u32 %v2006, 16
        %v2057 = vrot.slane %v2055, 4
        %v2058 = vshll.u32 %v2006, 16
        %v2060 = vrot.slane %v2058, 5
        %v2061 = vor.u32 %v2057, %v2060
        %v2062 = vrot.slane %v2061, 4
        %v2064 = vshll.u32 %v2007, 16
        %v2066 = vrot.slane %v2064, 5
        %v2067 = vsel %vm249, %v2062, %v2066
        %v2068 = vshrl.u32 %v2007, 16
        %v2070 = vrot.slane %v2068, 4
        %v2071 = vor.u32 %v2070, %v2066
        %v2072 = vrot.slane %v2071, 4
        %v2074 = vshll.u32 %v2008, 16
        %v2076 = vrot.slane %v2074, 5
        %v2077 = vsel %vm249, %v2072, %v2076
        %v2079 = vshrl.u32 %v2009, 16
        %v2081 = vrot.slane %v2079, 4
        %v2082 = vshll.u32 %v2009, 16
        %v2084 = vrot.slane %v2082, 5
        %v2085 = vor.u32 %v2081, %v2084
        %v2086 = vrot.slane %v2085, 4
        %v2088 = vshll.u32 %v2010, 16
        %v2090 = vrot.slane %v2088, 5
        %v2091 = vsel %vm249, %v2086, %v2090
        %v2092 = vshrl.u32 %v2010, 16
        %v2094 = vrot.slane %v2092, 4
        %v2095 = vor.u32 %v2094, %v2090
        %v2096 = vrot.slane %v2095, 4
        %v2098 = vshll.u32 %v2011, 16
        %v2100 = vrot.slane %v2098, 5
        %v2101 = vsel %vm249, %v2096, %v2100
        %v2103 = vshrl.u32 %v2012, 16
        %v2105 = vrot.slane %v2103, 4
        %v2106 = vshll.u32 %v2012, 16
        %v2108 = vrot.slane %v2106, 5
        %v2109 = vor.u32 %v2105, %v2108
        %v2110 = vrot.slane %v2109, 4
        %v2112 = vshll.u32 %v2013, 16
        %v2114 = vrot.slane %v2112, 5
        %v2115 = vsel %vm249, %v2110, %v2114
        %v2116 = vshrl.u32 %v2013, 16
        %v2118 = vrot.slane %v2116, 4
        %v2119 = vor.u32 %v2118, %v2114
        %v2120 = vrot.slane %v2119, 4
        %v2122 = vshll.u32 %v2014, 16
        %v2124 = vrot.slane %v2122, 5
        %v2125 = vsel %vm249, %v2120, %v2124
        %v2127 = vshrl.u32 %v2015, 16
        %v2129 = vrot.slane %v2127, 4
        %v2130 = vshll.u32 %v2015, 16
        %v2132 = vrot.slane %v2130, 5
        %v2133 = vor.u32 %v2129, %v2132
        %v2134 = vrot.slane %v2133, 4
        %v2136 = vshll.u32 %v2016, 16
        %v2138 = vrot.slane %v2136, 5
        %v2139 = vsel %vm249, %v2134, %v2138
        %v2140 = vshrl.u32 %v2016, 16
        %v2142 = vrot.slane %v2140, 4
        %v2143 = vor.u32 %v2142, %v2138
        %v2144 = vrot.slane %v2143, 4
        %v2146 = vshll.u32 %v2017, 16
        %v2148 = vrot.slane %v2146, 5
        %v2149 = vsel %vm249, %v2144, %v2148
        %v2151 = vshrl.u32 %v2018, 16
        %v2153 = vrot.slane %v2151, 4
        %v2154 = vshll.u32 %v2018, 16
        %v2156 = vrot.slane %v2154, 5
        %v2157 = vor.u32 %v2153, %v2156
        %v2158 = vrot.slane %v2157, 4
        %v2160 = vshll.u32 %v2019, 16
        %v2162 = vrot.slane %v2160, 5
        %v2163 = vsel %vm249, %v2158, %v2162
        %v2164 = vshrl.u32 %v2019, 16
        %v2166 = vrot.slane %v2164, 4
        %v2167 = vor.u32 %v2166, %v2162
        %v2168 = vrot.slane %v2167, 4
        %v2170 = vshll.u32 %v2020, 16
        %v2172 = vrot.slane %v2170, 5
        %v2173 = vsel %vm249, %v2168, %v2172
        %v2175 = vshrl.u32 %v2021, 16
        %v2177 = vrot.slane %v2175, 4
        %v2178 = vshll.u32 %v2021, 16
        %v2180 = vrot.slane %v2178, 5
        %v2181 = vor.u32 %v2177, %v2180
        %v2182 = vrot.slane %v2181, 4
        %v2184 = vshll.u32 %v2022, 16
        %v2186 = vrot.slane %v2184, 5
        %v2187 = vsel %vm249, %v2182, %v2186
        %v2188 = vshrl.u32 %v2022, 16
        %v2190 = vrot.slane %v2188, 4
        %v2191 = vor.u32 %v2190, %v2186
        %v2192 = vrot.slane %v2191, 4
        %v2194 = vshll.u32 %v2023, 16
        %v2196 = vrot.slane %v2194, 5
        %v2197 = vsel %vm249, %v2192, %v2196
        %v2199 = vshrl.u32 %v2024, 16
        %v2201 = vrot.slane %v2199, 4
        %v2202 = vshll.u32 %v2024, 16
        %v2204 = vrot.slane %v2202, 5
        %v2205 = vor.u32 %v2201, %v2204
        %v2206 = vrot.slane %v2205, 4
        %v2208 = vshll.u32 %v2025, 16
        %v2210 = vrot.slane %v2208, 5
        %v2211 = vsel %vm249, %v2206, %v2210
        %v2212 = vshrl.u32 %v2025, 16
        %v2214 = vrot.slane %v2212, 4
        %v2215 = vor.u32 %v2214, %v2210
        %v2216 = vrot.slane %v2215, 4
        %v2218 = vshll.u32 %v2026, 16
        %v2220 = vrot.slane %v2218, 5
        %v2221 = vsel %vm249, %v2216, %v2220
        %v2223 = vshrl.u32 %v2027, 16
        %v2225 = vrot.slane %v2223, 4
        %v2226 = vshll.u32 %v2027, 16
        %v2228 = vrot.slane %v2226, 5
        %v2229 = vor.u32 %v2225, %v2228
        %v2230 = vrot.slane %v2229, 4
        %v2232 = vshll.u32 %v2028, 16
        %v2234 = vrot.slane %v2232, 5
        %v2235 = vsel %vm249, %v2230, %v2234
        %v2236 = vshrl.u32 %v2028, 16
        %v2238 = vrot.slane %v2236, 4
        %v2239 = vor.u32 %v2238, %v2234
        %v2240 = vrot.slane %v2239, 4
        %v2242 = vshll.u32 %v2029, 16
        %v2244 = vrot.slane %v2242, 5
        %v2245 = vsel %vm249, %v2240, %v2244
        %v2247 = vshrl.u32 %v2030, 16
        %v2249 = vrot.slane %v2247, 4
        %v2250 = vshll.u32 %v2030, 16
        %v2252 = vrot.slane %v2250, 5
        %v2253 = vor.u32 %v2249, %v2252
        %v2254 = vrot.slane %v2253, 4
        %v2256 = vshll.u32 %v2031, 16
        %v2258 = vrot.slane %v2256, 5
        %v2259 = vsel %vm249, %v2254, %v2258
        %v2260 = vshrl.u32 %v2031, 16
        %v2262 = vrot.slane %v2260, 4
        %v2263 = vor.u32 %v2262, %v2258
        %v2264 = vrot.slane %v2263, 4
        %v2266 = vshll.u32 %v2032, 16
        %v2268 = vrot.slane %v2266, 5
        %v2269 = vsel %vm249, %v2264, %v2268
        %v2271 = vshrl.u32 %v2033, 16
        %v2273 = vrot.slane %v2271, 4
        %v2274 = vshll.u32 %v2033, 16
        %v2276 = vrot.slane %v2274, 5
        %v2277 = vor.u32 %v2273, %v2276
        %v2278 = vrot.slane %v2277, 4
        %v2280 = vshll.u32 %v2034, 16
        %v2282 = vrot.slane %v2280, 5
        %v2283 = vsel %vm249, %v2278, %v2282
        %v2284 = vshrl.u32 %v2034, 16
        %v2286 = vrot.slane %v2284, 4
        %v2287 = vor.u32 %v2286, %v2282
        %v2288 = vrot.slane %v2287, 4
        %v2290 = vshll.u32 %v2035, 16
        %v2292 = vrot.slane %v2290, 5
        %v2293 = vsel %vm249, %v2288, %v2292
        %v2295 = vshrl.u32 %v2036, 16
        %v2297 = vrot.slane %v2295, 4
        %v2298 = vshll.u32 %v2036, 16
        %v2300 = vrot.slane %v2298, 5
        %v2301 = vor.u32 %v2297, %v2300
        %v2302 = vrot.slane %v2301, 4
        %v2304 = vshll.u32 %v2037, 16
        %v2306 = vrot.slane %v2304, 5
        %v2307 = vsel %vm249, %v2302, %v2306
        %v2308 = vshrl.u32 %v2037, 16
        %v2310 = vrot.slane %v2308, 4
        %v2311 = vor.u32 %v2310, %v2306
        %v2312 = vrot.slane %v2311, 4
        %v2314 = vshll.u32 %v2038, 16
        %v2316 = vrot.slane %v2314, 5
        %v2317 = vsel %vm249, %v2312, %v2316
        %v2319 = vshrl.u32 %v2039, 16
        %v2321 = vrot.slane %v2319, 4
        %v2322 = vshll.u32 %v2039, 16
        %v2324 = vrot.slane %v2322, 5
        %v2325 = vor.u32 %v2321, %v2324
        %v2326 = vrot.slane %v2325, 4
        %v2328 = vshll.u32 %v2040, 16
        %v2330 = vrot.slane %v2328, 5
        %v2331 = vsel %vm249, %v2326, %v2330
        %v2332 = vshrl.u32 %v2040, 16
        %v2334 = vrot.slane %v2332, 4
        %v2335 = vor.u32 %v2334, %v2330
        %v2336 = vrot.slane %v2335, 4
        %v2338 = vshll.u32 %v2041, 16
        %v2340 = vrot.slane %v2338, 5
        %v2341 = vsel %vm249, %v2336, %v2340
        %v2343 = vshrl.u32 %v2042, 16
        %v2345 = vrot.slane %v2343, 4
        %v2346 = vshll.u32 %v2042, 16
        %v2348 = vrot.slane %v2346, 5
        %v2349 = vor.u32 %v2345, %v2348
        %v2350 = vrot.slane %v2349, 4
        %v2352 = vshll.u32 %v2043, 16
        %v2354 = vrot.slane %v2352, 5
        %v2355 = vsel %vm249, %v2350, %v2354
        %v2356 = vshrl.u32 %v2043, 16
        %v2358 = vrot.slane %v2356, 4
        %v2359 = vor.u32 %v2358, %v2354
        %v2360 = vrot.slane %v2359, 4
        %v2362 = vshll.u32 %v2044, 16
        %v2364 = vrot.slane %v2362, 5
        %v2365 = vsel %vm249, %v2360, %v2364
        %v2367 = vshrl.u32 %v2045, 16
        %v2369 = vrot.slane %v2367, 4
        %v2370 = vshll.u32 %v2045, 16
        %v2372 = vrot.slane %v2370, 5
        %v2373 = vor.u32 %v2369, %v2372
        %v2374 = vrot.slane %v2373, 4
        %v2376 = vshll.u32 %v2046, 16
        %v2378 = vrot.slane %v2376, 5
        %v2379 = vsel %vm249, %v2374, %v2378
        %v2380 = vshrl.u32 %v2046, 16
        %v2382 = vrot.slane %v2380, 4
        %v2383 = vor.u32 %v2382, %v2378
        %v2384 = vrot.slane %v2383, 4
        %v2386 = vshll.u32 %v2047, 16
        %v2388 = vrot.slane %v2386, 5
        %v2389 = vsel %vm249, %v2384, %v2388
        %v2391 = vshrl.u32 %v2048, 16
        %v2393 = vrot.slane %v2391, 4
        %v2394 = vshll.u32 %v2048, 16
        %v2396 = vrot.slane %v2394, 5
        %v2397 = vor.u32 %v2393, %v2396
        %v2398 = vrot.slane %v2397, 4
        %v2400 = vshll.u32 %v2049, 16
        %v2402 = vrot.slane %v2400, 5
        %v2403 = vsel %vm249, %v2398, %v2402
        %v2404 = vshrl.u32 %v2049, 16
        %v2406 = vrot.slane %v2404, 4
        %v2407 = vor.u32 %v2406, %v2402
        %v2408 = vrot.slane %v2407, 4
        %v2410 = vshll.u32 %v2050, 16
        %v2412 = vrot.slane %v2410, 5
        %v2413 = vsel %vm249, %v2408, %v2412
        %v2415 = vshrl.u32 %v2051, 16
        %v2417 = vrot.slane %v2415, 4
        %v2418 = vshll.u32 %v2051, 16
        %v2420 = vrot.slane %v2418, 5
        %v2421 = vor.u32 %v2417, %v2420
        %v2422 = vrot.slane %v2421, 4
        %v2424 = vshll.u32 %v2052, 16
        %v2426 = vrot.slane %v2424, 5
        %v2427 = vsel %vm249, %v2422, %v2426
        %v2428 = vshrl.u32 %v2052, 16
        %v2430 = vrot.slane %v2428, 4
        %v2431 = vor.u32 %v2430, %v2426
        %v2432 = vrot.slane %v2431, 4
        %v2434 = vshll.u32 %v2053, 16
        %v2436 = vrot.slane %v2434, 5
        %v2437 = vsel %vm249, %v2432, %v2436
        %s2438 = scalar_lea.vmem %s1, 8
        %v2439 = vld [vmem:[%s2438] sm:$0x3]
        %v2440 = vunpack.c.l.b16 %v2067
        %v2441 = vunpack.c.l.b16 %v2077
        %v2442 = vunpack.c.l.b16 %v2091
        %v2443 = vunpack.c.l.b16 %v2101
        %v2444 = vunpack.c.l.b16 %v2115
        %v2445 = vunpack.c.l.b16 %v2125
        %v2446 = vunpack.c.l.b16 %v2139
        %v2447 = vunpack.c.l.b16 %v2149
        %v2448 = vunpack.c.l.b16 %v2163
        %v2449 = vunpack.c.l.b16 %v2173
        %v2450 = vunpack.c.l.b16 %v2187
        %v2451 = vunpack.c.l.b16 %v2197
        %v2452 = vunpack.c.l.b16 %v2211
        %v2453 = vunpack.c.l.b16 %v2221
        %v2454 = vunpack.c.l.b16 %v2235
        %v2455 = vunpack.c.l.b16 %v2245
        %v2456 = vunpack.c.l.b16 %v2259
        %v2457 = vunpack.c.l.b16 %v2269
        %v2458 = vunpack.c.l.b16 %v2283
        %v2459 = vunpack.c.l.b16 %v2293
        %v2460 = vunpack.c.l.b16 %v2307
        %v2461 = vunpack.c.l.b16 %v2317
        %v2462 = vunpack.c.l.b16 %v2331
        %v2463 = vunpack.c.l.b16 %v2341
        %v2464 = vunpack.c.l.b16 %v2355
        %v2465 = vunpack.c.l.b16 %v2365
        %v2466 = vunpack.c.l.b16 %v2379
        %v2467 = vunpack.c.l.b16 %v2389
        %v2468 = vunpack.c.l.b16 %v2403
        %v2469 = vunpack.c.l.b16 %v2413
        %v2470 = vunpack.c.l.b16 %v2427
        %v2471 = vunpack.c.l.b16 %v2437
        %v2472 = vpack.c.b16 %v2441, %v2440
        %v2473 = vpack.c.b16 %v2443, %v2442
        %v2474 = vpack.c.b16 %v2445, %v2444
        %v2475 = vpack.c.b16 %v2447, %v2446
        %v2476 = vpack.c.b16 %v2449, %v2448
        %v2477 = vpack.c.b16 %v2451, %v2450
        %v2478 = vpack.c.b16 %v2453, %v2452
        %v2479 = vpack.c.b16 %v2455, %v2454
        %v2480 = vpack.c.b16 %v2457, %v2456
        %v2481 = vpack.c.b16 %v2459, %v2458
        %v2482 = vpack.c.b16 %v2461, %v2460
        %v2483 = vpack.c.b16 %v2463, %v2462
        %v2484 = vpack.c.b16 %v2465, %v2464
        %v2485 = vpack.c.b16 %v2467, %v2466
        %v2486 = vpack.c.b16 %v2469, %v2468
        %v2487 = vpack.c.b16 %v2471, %v2470
        %v2489 = vsel %vm684, %v2472, 0
        %v2492 = vsel %vm684, %v2473, 0
        %v2495 = vsel %vm684, %v2474, 0
        %v2498 = vsel %vm684, %v2475, 0
        %v2501 = vsel %vm684, %v2476, 0
        %v2504 = vsel %vm684, %v2477, 0
        %v2507 = vsel %vm684, %v2478, 0
        %v2510 = vsel %vm684, %v2479, 0
        %v2513 = vsel %vm684, %v2480, 0
        %v2516 = vsel %vm684, %v2481, 0
        %v2519 = vsel %vm684, %v2482, 0
        %v2522 = vsel %vm684, %v2483, 0
        %v2525 = vsel %vm684, %v2484, 0
        %v2528 = vsel %vm684, %v2485, 0
        %v2531 = vsel %vm684, %v2486, 0
        %v2534 = vsel %vm684, %v2487, 0
        %v2537 = vsel %vm733, %v2439, 0
        %2539 = vmatprep.subr.bf16.mxu0 0
        %2540 = vmatpush1.bf16.msra.mxu0 0
        %2541 = vmatprep.subr.bf16.mxu0 0
        %2542 = vmatpush1.bf16.msra.mxu0 0
        %2543 = vmatprep.subr.bf16.mxu0 0
        %2544 = vmatpush1.bf16.msra.mxu0 0
        %2545 = vmatprep.subr.bf16.mxu0 0
        %2546 = vmatpush1.bf16.msra.mxu0 0
        %2547 = vmatprep.subr.bf16.mxu0 0
        %2548 = vmatpush1.bf16.msra.mxu0 0
        %2549 = vmatprep.subr.bf16.mxu0 0
        %2550 = vmatpush1.bf16.msra.mxu0 0
        %2551 = vmatprep.subr.bf16.mxu0 0
        %2552 = vmatpush1.bf16.msra.mxu0 0
        %2553 = vmatprep.subr.bf16.mxu0 0
        %2554 = vmatpush1.bf16.msra.mxu0 %v2537
        %2555 = vmatprep.subr.bf16.mxu0 0
        %2556 = vmatpush2.bf16.msra.mxu0 0
        %2557 = vmatprep.subr.bf16.mxu0 0
        %2558 = vmatpush2.bf16.msra.mxu0 0
        %2559 = vmatprep.subr.bf16.mxu0 0
        %2560 = vmatpush2.bf16.msra.mxu0 0
        %2561 = vmatprep.subr.bf16.mxu0 0
        %2562 = vmatpush2.bf16.msra.mxu0 0
        %2563 = vmatprep.subr.bf16.mxu0 0
        %2564 = vmatpush2.bf16.msra.mxu0 0
        %2565 = vmatprep.subr.bf16.mxu0 0
        %2566 = vmatpush2.bf16.msra.mxu0 0
        %2567 = vmatprep.subr.bf16.mxu0 0
        %2568 = vmatpush2.bf16.msra.mxu0 0
        %2569 = vmatprep.subr.bf16.mxu0 0
        %2570 = vmatpush2.bf16.msra.mxu0 0
        %2571 = vmatprep.mubr.bf16.mxu0 0
        %2572 = vmatmul.mubr.bf16.gmra.mxu0 %v2489
        %v2573 = vpop.f32.mrf.mxu0
        %v2574 = vadd.f32 0.0, %v2573
        %v2575 = vpop.f32.mrf.mxu0
        %v2576 = vpop.f32.mrf.mxu0
        %v2577 = vadd.f32 0.0, %v2576
        %v2578 = vpop.f32.mrf.mxu0
        %2579 = vmatprep.mubr.bf16.mxu0 0
        %2580 = vmatmul.mubr.bf16.gmra.mxu0 %v2492
        %v2581 = vpop.f32.mrf.mxu0
        %v2582 = vadd.f32 0.0, %v2581
        %v2583 = vpop.f32.mrf.mxu0
        %v2584 = vpop.f32.mrf.mxu0
        %v2585 = vadd.f32 0.0, %v2584
        %v2586 = vpop.f32.mrf.mxu0
        %2587 = vmatprep.mubr.bf16.mxu0 0
        %2588 = vmatmul.mubr.bf16.gmra.mxu0 %v2495
        %v2589 = vpop.f32.mrf.mxu0
        %v2590 = vadd.f32 0.0, %v2589
        %v2591 = vpop.f32.mrf.mxu0
        %v2592 = vpop.f32.mrf.mxu0
        %v2593 = vadd.f32 0.0, %v2592
        %v2594 = vpop.f32.mrf.mxu0
        %2595 = vmatprep.mubr.bf16.mxu0 0
        %2596 = vmatmul.mubr.bf16.gmra.mxu0 %v2498
        %v2597 = vpop.f32.mrf.mxu0
        %v2598 = vadd.f32 0.0, %v2597
        %v2599 = vpop.f32.mrf.mxu0
        %v2600 = vpop.f32.mrf.mxu0
        %v2601 = vadd.f32 0.0, %v2600
        %v2602 = vpop.f32.mrf.mxu0
        %2603 = vmatprep.mubr.bf16.mxu0 0
        %2604 = vmatmul.mubr.bf16.gmra.mxu0 %v2501
        %v2605 = vpop.f32.mrf.mxu0
        %v2606 = vadd.f32 0.0, %v2605
        %v2607 = vpop.f32.mrf.mxu0
        %v2608 = vpop.f32.mrf.mxu0
        %v2609 = vadd.f32 0.0, %v2608
        %v2610 = vpop.f32.mrf.mxu0
        %2611 = vmatprep.mubr.bf16.mxu0 0
        %2612 = vmatmul.mubr.bf16.gmra.mxu0 %v2504
        %v2613 = vpop.f32.mrf.mxu0
        %v2614 = vadd.f32 0.0, %v2613
        %v2615 = vpop.f32.mrf.mxu0
        %v2616 = vpop.f32.mrf.mxu0
        %v2617 = vadd.f32 0.0, %v2616
        %v2618 = vpop.f32.mrf.mxu0
        %2619 = vmatprep.mubr.bf16.mxu0 0
        %2620 = vmatmul.mubr.bf16.gmra.mxu0 %v2507
        %v2621 = vpop.f32.mrf.mxu0
        %v2622 = vadd.f32 0.0, %v2621
        %v2623 = vpop.f32.mrf.mxu0
        %v2624 = vpop.f32.mrf.mxu0
        %v2625 = vadd.f32 0.0, %v2624
        %v2626 = vpop.f32.mrf.mxu0
        %2627 = vmatprep.mubr.bf16.mxu0 0
        %2628 = vmatmul.mubr.bf16.gmra.mxu0 %v2510
        %v2629 = vpop.f32.mrf.mxu0
        %v2630 = vadd.f32 0.0, %v2629
        %v2631 = vpop.f32.mrf.mxu0
        %v2632 = vpop.f32.mrf.mxu0
        %v2633 = vadd.f32 0.0, %v2632
        %v2634 = vpop.f32.mrf.mxu0
        %2635 = vmatprep.mubr.bf16.mxu0 0
        %2636 = vmatmul.mubr.bf16.gmra.mxu0 %v2513
        %v2637 = vpop.f32.mrf.mxu0
        %v2638 = vadd.f32 0.0, %v2637
        %v2639 = vpop.f32.mrf.mxu0
        %v2640 = vpop.f32.mrf.mxu0
        %v2641 = vadd.f32 0.0, %v2640
        %v2642 = vpop.f32.mrf.mxu0
        %2643 = vmatprep.mubr.bf16.mxu0 0
        %2644 = vmatmul.mubr.bf16.gmra.mxu0 %v2516
        %v2645 = vpop.f32.mrf.mxu0
        %v2646 = vadd.f32 0.0, %v2645
        %v2647 = vpop.f32.mrf.mxu0
        %v2648 = vpop.f32.mrf.mxu0
        %v2649 = vadd.f32 0.0, %v2648
        %v2650 = vpop.f32.mrf.mxu0
        %2651 = vmatprep.mubr.bf16.mxu0 0
        %2652 = vmatmul.mubr.bf16.gmra.mxu0 %v2519
        %v2653 = vpop.f32.mrf.mxu0
        %v2654 = vadd.f32 0.0, %v2653
        %v2655 = vpop.f32.mrf.mxu0
        %v2656 = vpop.f32.mrf.mxu0
        %v2657 = vadd.f32 0.0, %v2656
        %v2658 = vpop.f32.mrf.mxu0
        %2659 = vmatprep.mubr.bf16.mxu0 0
        %2660 = vmatmul.mubr.bf16.gmra.mxu0 %v2522
        %v2661 = vpop.f32.mrf.mxu0
        %v2662 = vadd.f32 0.0, %v2661
        %v2663 = vpop.f32.mrf.mxu0
        %v2664 = vpop.f32.mrf.mxu0
        %v2665 = vadd.f32 0.0, %v2664
        %v2666 = vpop.f32.mrf.mxu0
        %2667 = vmatprep.mubr.bf16.mxu0 0
        %2668 = vmatmul.mubr.bf16.gmra.mxu0 %v2525
        %v2669 = vpop.f32.mrf.mxu0
        %v2670 = vadd.f32 0.0, %v2669
        %v2671 = vpop.f32.mrf.mxu0
        %v2672 = vpop.f32.mrf.mxu0
        %v2673 = vadd.f32 0.0, %v2672
        %v2674 = vpop.f32.mrf.mxu0
        %2675 = vmatprep.mubr.bf16.mxu0 0
        %2676 = vmatmul.mubr.bf16.gmra.mxu0 %v2528
        %v2677 = vpop.f32.mrf.mxu0
        %v2678 = vadd.f32 0.0, %v2677
        %v2679 = vpop.f32.mrf.mxu0
        %v2680 = vpop.f32.mrf.mxu0
        %v2681 = vadd.f32 0.0, %v2680
        %v2682 = vpop.f32.mrf.mxu0
        %2683 = vmatprep.mubr.bf16.mxu0 0
        %2684 = vmatmul.mubr.bf16.gmra.mxu0 %v2531
        %v2685 = vpop.f32.mrf.mxu0
        %v2686 = vadd.f32 0.0, %v2685
        %v2687 = vpop.f32.mrf.mxu0
        %v2688 = vpop.f32.mrf.mxu0
        %v2689 = vadd.f32 0.0, %v2688
        %v2690 = vpop.f32.mrf.mxu0
        %2691 = vmatprep.mubr.bf16.mxu0 0
        %2692 = vmatmul.mubr.bf16.gmra.mxu0 %v2534
        %v2693 = vpop.f32.mrf.mxu0
        %v2694 = vadd.f32 0.0, %v2693
        %v2695 = vpop.f32.mrf.mxu0
        %v2696 = vpop.f32.mrf.mxu0
        %v2697 = vadd.f32 0.0, %v2696
        %v2698 = vpop.f32.mrf.mxu0
        %2699 = vdwg.mxu0
        %v2700 = vadd.f32 %v1974, %v2574
        %v2701 = vadd.f32 %v1975, %v2577
        %v2702 = vadd.f32 %v1976, %v2582
        %v2703 = vadd.f32 %v1977, %v2585
        %v2704 = vadd.f32 %v1978, %v2590
        %v2705 = vadd.f32 %v1979, %v2593
        %v2706 = vadd.f32 %v1980, %v2598
        %v2707 = vadd.f32 %v1981, %v2601
        %v2708 = vadd.f32 %v1982, %v2606
        %v2709 = vadd.f32 %v1983, %v2609
        %v2710 = vadd.f32 %v1984, %v2614
        %v2711 = vadd.f32 %v1985, %v2617
        %v2712 = vadd.f32 %v1986, %v2622
        %v2713 = vadd.f32 %v1987, %v2625
        %v2714 = vadd.f32 %v1988, %v2630
        %v2715 = vadd.f32 %v1989, %v2633
        %v2716 = vadd.f32 %v1990, %v2638
        %v2717 = vadd.f32 %v1991, %v2641
        %v2718 = vadd.f32 %v1992, %v2646
        %v2719 = vadd.f32 %v1993, %v2649
        %v2720 = vadd.f32 %v1994, %v2654
        %v2721 = vadd.f32 %v1995, %v2657
        %v2722 = vadd.f32 %v1996, %v2662
        %v2723 = vadd.f32 %v1997, %v2665
        %v2724 = vadd.f32 %v1998, %v2670
        %v2725 = vadd.f32 %v1999, %v2673
        %v2726 = vadd.f32 %v2000, %v2678
        %v2727 = vadd.f32 %v2001, %v2681
        %v2728 = vadd.f32 %v2002, %v2686
        %v2729 = vadd.f32 %v2003, %v2689
        %v2730 = vadd.f32 %v2004, %v2694
        %v2731 = vadd.f32 %v2005, %v2697
        %v2732 = vld [vmem:[%s1647] sm:$0xe]
        %v2733 = vld [vmem:[%s1647 + $0xc] sm:$0xe]
        %v2734 = vld [vmem:[%s1647 + $0x18] sm:$0xe]
        %v2735 = vld [vmem:[%s1647 + $0x24] sm:$0xe]
        %v2736 = vld [vmem:[%s1647 + $0x30] sm:$0xe]
        %v2737 = vld [vmem:[%s1647 + $0x3c] sm:$0xe]
        %v2738 = vld [vmem:[%s1647 + $0x48] sm:$0xe]
        %v2739 = vld [vmem:[%s1647 + $0x54] sm:$0xe]
        %v2740 = vld [vmem:[%s1647 + $0x60] sm:$0xe]
        %v2741 = vld [vmem:[%s1647 + $0x6c] sm:$0xe]
        %v2742 = vld [vmem:[%s1647 + $0x78] sm:$0xe]
        %v2743 = vld [vmem:[%s1647 + $0x84] sm:$0xe]
        %v2744 = vld [vmem:[%s1647 + $0x90] sm:$0xe]
        %v2745 = vld [vmem:[%s1647 + $0x9c] sm:$0xe]
        %v2746 = vld [vmem:[%s1647 + $0xa8] sm:$0xe]
        %v2747 = vld [vmem:[%s1647 + $0xb4] sm:$0xe]
        %v2796 = vrot.slane %v2732, 5
        %v2797 = vrot.slane %v2796, 4
        %v2798 = vrot.slane %v2007, 5
        %v2799 = vsel %vm1240, %v2797, %v2798
        %v2800 = vrot.slane %v2798, 4
        %v2801 = vrot.slane %v2008, 5
        %v2802 = vsel %vm1240, %v2800, %v2801
        %v2803 = vrot.slane %v2733, 5
        %v2804 = vrot.slane %v2803, 4
        %v2805 = vrot.slane %v2010, 5
        %v2806 = vsel %vm1240, %v2804, %v2805
        %v2807 = vrot.slane %v2805, 4
        %v2808 = vrot.slane %v2011, 5
        %v2809 = vsel %vm1240, %v2807, %v2808
        %v2810 = vrot.slane %v2734, 5
        %v2811 = vrot.slane %v2810, 4
        %v2812 = vrot.slane %v2013, 5
        %v2813 = vsel %vm1240, %v2811, %v2812
        %v2814 = vrot.slane %v2812, 4
        %v2815 = vrot.slane %v2014, 5
        %v2816 = vsel %vm1240, %v2814, %v2815
        %v2817 = vrot.slane %v2735, 5
        %v2818 = vrot.slane %v2817, 4
        %v2819 = vrot.slane %v2016, 5
        %v2820 = vsel %vm1240, %v2818, %v2819
        %v2821 = vrot.slane %v2819, 4
        %v2822 = vrot.slane %v2017, 5
        %v2823 = vsel %vm1240, %v2821, %v2822
        %v2824 = vrot.slane %v2736, 5
        %v2825 = vrot.slane %v2824, 4
        %v2826 = vrot.slane %v2019, 5
        %v2827 = vsel %vm1240, %v2825, %v2826
        %v2828 = vrot.slane %v2826, 4
        %v2829 = vrot.slane %v2020, 5
        %v2830 = vsel %vm1240, %v2828, %v2829
        %v2831 = vrot.slane %v2737, 5
        %v2832 = vrot.slane %v2831, 4
        %v2833 = vrot.slane %v2022, 5
        %v2834 = vsel %vm1240, %v2832, %v2833
        %v2835 = vrot.slane %v2833, 4
        %v2836 = vrot.slane %v2023, 5
        %v2837 = vsel %vm1240, %v2835, %v2836
        %v2838 = vrot.slane %v2738, 5
        %v2839 = vrot.slane %v2838, 4
        %v2840 = vrot.slane %v2025, 5
        %v2841 = vsel %vm1240, %v2839, %v2840
        %v2842 = vrot.slane %v2840, 4
        %v2843 = vrot.slane %v2026, 5
        %v2844 = vsel %vm1240, %v2842, %v2843
        %v2845 = vrot.slane %v2739, 5
        %v2846 = vrot.slane %v2845, 4
        %v2847 = vrot.slane %v2028, 5
        %v2848 = vsel %vm1240, %v2846, %v2847
        %v2849 = vrot.slane %v2847, 4
        %v2850 = vrot.slane %v2029, 5
        %v2851 = vsel %vm1240, %v2849, %v2850
        %v2852 = vrot.slane %v2740, 5
        %v2853 = vrot.slane %v2852, 4
        %v2854 = vrot.slane %v2031, 5
        %v2855 = vsel %vm1240, %v2853, %v2854
        %v2856 = vrot.slane %v2854, 4
        %v2857 = vrot.slane %v2032, 5
        %v2858 = vsel %vm1240, %v2856, %v2857
        %v2859 = vrot.slane %v2741, 5
        %v2860 = vrot.slane %v2859, 4
        %v2861 = vrot.slane %v2034, 5
        %v2862 = vsel %vm1240, %v2860, %v2861
        %v2863 = vrot.slane %v2861, 4
        %v2864 = vrot.slane %v2035, 5
        %v2865 = vsel %vm1240, %v2863, %v2864
        %v2866 = vrot.slane %v2742, 5
        %v2867 = vrot.slane %v2866, 4
        %v2868 = vrot.slane %v2037, 5
        %v2869 = vsel %vm1240, %v2867, %v2868
        %v2870 = vrot.slane %v2868, 4
        %v2871 = vrot.slane %v2038, 5
        %v2872 = vsel %vm1240, %v2870, %v2871
        %v2873 = vrot.slane %v2743, 5
        %v2874 = vrot.slane %v2873, 4
        %v2875 = vrot.slane %v2040, 5
        %v2876 = vsel %vm1240, %v2874, %v2875
        %v2877 = vrot.slane %v2875, 4
        %v2878 = vrot.slane %v2041, 5
        %v2879 = vsel %vm1240, %v2877, %v2878
        %v2880 = vrot.slane %v2744, 5
        %v2881 = vrot.slane %v2880, 4
        %v2882 = vrot.slane %v2043, 5
        %v2883 = vsel %vm1240, %v2881, %v2882
        %v2884 = vrot.slane %v2882, 4
        %v2885 = vrot.slane %v2044, 5
        %v2886 = vsel %vm1240, %v2884, %v2885
        %v2887 = vrot.slane %v2745, 5
        %v2888 = vrot.slane %v2887, 4
        %v2889 = vrot.slane %v2046, 5
        %v2890 = vsel %vm1240, %v2888, %v2889
        %v2891 = vrot.slane %v2889, 4
        %v2892 = vrot.slane %v2047, 5
        %v2893 = vsel %vm1240, %v2891, %v2892
        %v2894 = vrot.slane %v2746, 5
        %v2895 = vrot.slane %v2894, 4
        %v2896 = vrot.slane %v2049, 5
        %v2897 = vsel %vm1240, %v2895, %v2896
        %v2898 = vrot.slane %v2896, 4
        %v2899 = vrot.slane %v2050, 5
        %v2900 = vsel %vm1240, %v2898, %v2899
        %v2901 = vrot.slane %v2747, 5
        %v2902 = vrot.slane %v2901, 4
        %v2903 = vrot.slane %v2052, 5
        %v2904 = vsel %vm1240, %v2902, %v2903
        %v2905 = vrot.slane %v2903, 4
        %v2906 = vrot.slane %v2053, 5
        %v2907 = vsel %vm1240, %v2905, %v2906
        %s2908 = scalar_lea.vmem %s1, 10
        %v2909 = vld [vmem:[%s2908] sm:$0x3]
        %v2910 = vunpack.c.l.b16 %v2799
        %v2911 = vunpack.c.l.b16 %v2802
        %v2912 = vunpack.c.l.b16 %v2806
        %v2913 = vunpack.c.l.b16 %v2809
        %v2914 = vunpack.c.l.b16 %v2813
        %v2915 = vunpack.c.l.b16 %v2816
        %v2916 = vunpack.c.l.b16 %v2820
        %v2917 = vunpack.c.l.b16 %v2823
        %v2918 = vunpack.c.l.b16 %v2827
        %v2919 = vunpack.c.l.b16 %v2830
        %v2920 = vunpack.c.l.b16 %v2834
        %v2921 = vunpack.c.l.b16 %v2837
        %v2922 = vunpack.c.l.b16 %v2841
        %v2923 = vunpack.c.l.b16 %v2844
        %v2924 = vunpack.c.l.b16 %v2848
        %v2925 = vunpack.c.l.b16 %v2851
        %v2926 = vunpack.c.l.b16 %v2855
        %v2927 = vunpack.c.l.b16 %v2858
        %v2928 = vunpack.c.l.b16 %v2862
        %v2929 = vunpack.c.l.b16 %v2865
        %v2930 = vunpack.c.l.b16 %v2869
        %v2931 = vunpack.c.l.b16 %v2872
        %v2932 = vunpack.c.l.b16 %v2876
        %v2933 = vunpack.c.l.b16 %v2879
        %v2934 = vunpack.c.l.b16 %v2883
        %v2935 = vunpack.c.l.b16 %v2886
        %v2936 = vunpack.c.l.b16 %v2890
        %v2937 = vunpack.c.l.b16 %v2893
        %v2938 = vunpack.c.l.b16 %v2897
        %v2939 = vunpack.c.l.b16 %v2900
        %v2940 = vunpack.c.l.b16 %v2904
        %v2941 = vunpack.c.l.b16 %v2907
        %v2942 = vpack.c.b16 %v2911, %v2910
        %v2943 = vpack.c.b16 %v2913, %v2912
        %v2944 = vpack.c.b16 %v2915, %v2914
        %v2945 = vpack.c.b16 %v2917, %v2916
        %v2946 = vpack.c.b16 %v2919, %v2918
        %v2947 = vpack.c.b16 %v2921, %v2920
        %v2948 = vpack.c.b16 %v2923, %v2922
        %v2949 = vpack.c.b16 %v2925, %v2924
        %v2950 = vpack.c.b16 %v2927, %v2926
        %v2951 = vpack.c.b16 %v2929, %v2928
        %v2952 = vpack.c.b16 %v2931, %v2930
        %v2953 = vpack.c.b16 %v2933, %v2932
        %v2954 = vpack.c.b16 %v2935, %v2934
        %v2955 = vpack.c.b16 %v2937, %v2936
        %v2956 = vpack.c.b16 %v2939, %v2938
        %v2957 = vpack.c.b16 %v2941, %v2940
        %v2959 = vsel %vm684, %v2942, 0
        %v2962 = vsel %vm684, %v2943, 0
        %v2965 = vsel %vm684, %v2944, 0
        %v2968 = vsel %vm684, %v2945, 0
        %v2971 = vsel %vm684, %v2946, 0
        %v2974 = vsel %vm684, %v2947, 0
        %v2977 = vsel %vm684, %v2948, 0
        %v2980 = vsel %vm684, %v2949, 0
        %v2983 = vsel %vm684, %v2950, 0
        %v2986 = vsel %vm684, %v2951, 0
        %v2989 = vsel %vm684, %v2952, 0
        %v2992 = vsel %vm684, %v2953, 0
        %v2995 = vsel %vm684, %v2954, 0
        %v2998 = vsel %vm684, %v2955, 0
        %v3001 = vsel %vm684, %v2956, 0
        %v3004 = vsel %vm684, %v2957, 0
        %v3007 = vsel %vm733, %v2909, 0
        %3009 = vmatprep.subr.bf16.mxu0 0
        %3010 = vmatpush1.bf16.msra.mxu0 0
        %3011 = vmatprep.subr.bf16.mxu0 0
        %3012 = vmatpush1.bf16.msra.mxu0 0
        %3013 = vmatprep.subr.bf16.mxu0 0
        %3014 = vmatpush1.bf16.msra.mxu0 0
        %3015 = vmatprep.subr.bf16.mxu0 0
        %3016 = vmatpush1.bf16.msra.mxu0 0
        %3017 = vmatprep.subr.bf16.mxu0 0
        %3018 = vmatpush1.bf16.msra.mxu0 0
        %3019 = vmatprep.subr.bf16.mxu0 0
        %3020 = vmatpush1.bf16.msra.mxu0 0
        %3021 = vmatprep.subr.bf16.mxu0 0
        %3022 = vmatpush1.bf16.msra.mxu0 0
        %3023 = vmatprep.subr.bf16.mxu0 0
        %3024 = vmatpush1.bf16.msra.mxu0 %v3007
        %3025 = vmatprep.subr.bf16.mxu0 0
        %3026 = vmatpush2.bf16.msra.mxu0 0
        %3027 = vmatprep.subr.bf16.mxu0 0
        %3028 = vmatpush2.bf16.msra.mxu0 0
        %3029 = vmatprep.subr.bf16.mxu0 0
        %3030 = vmatpush2.bf16.msra.mxu0 0
        %3031 = vmatprep.subr.bf16.mxu0 0
        %3032 = vmatpush2.bf16.msra.mxu0 0
        %3033 = vmatprep.subr.bf16.mxu0 0
        %3034 = vmatpush2.bf16.msra.mxu0 0
        %3035 = vmatprep.subr.bf16.mxu0 0
        %3036 = vmatpush2.bf16.msra.mxu0 0
        %3037 = vmatprep.subr.bf16.mxu0 0
        %3038 = vmatpush2.bf16.msra.mxu0 0
        %3039 = vmatprep.subr.bf16.mxu0 0
        %3040 = vmatpush2.bf16.msra.mxu0 0
        %3041 = vmatprep.mubr.bf16.mxu0 0
        %3042 = vmatmul.mubr.bf16.gmra.mxu0 %v2959
        %v3043 = vpop.f32.mrf.mxu0
        %v3044 = vadd.f32 0.0, %v3043
        %v3045 = vpop.f32.mrf.mxu0
        %v3046 = vpop.f32.mrf.mxu0
        %v3047 = vadd.f32 0.0, %v3046
        %v3048 = vpop.f32.mrf.mxu0
        %3049 = vmatprep.mubr.bf16.mxu0 0
        %3050 = vmatmul.mubr.bf16.gmra.mxu0 %v2962
        %v3051 = vpop.f32.mrf.mxu0
        %v3052 = vadd.f32 0.0, %v3051
        %v3053 = vpop.f32.mrf.mxu0
        %v3054 = vpop.f32.mrf.mxu0
        %v3055 = vadd.f32 0.0, %v3054
        %v3056 = vpop.f32.mrf.mxu0
        %3057 = vmatprep.mubr.bf16.mxu0 0
        %3058 = vmatmul.mubr.bf16.gmra.mxu0 %v2965
        %v3059 = vpop.f32.mrf.mxu0
        %v3060 = vadd.f32 0.0, %v3059
        %v3061 = vpop.f32.mrf.mxu0
        %v3062 = vpop.f32.mrf.mxu0
        %v3063 = vadd.f32 0.0, %v3062
        %v3064 = vpop.f32.mrf.mxu0
        %3065 = vmatprep.mubr.bf16.mxu0 0
        %3066 = vmatmul.mubr.bf16.gmra.mxu0 %v2968
        %v3067 = vpop.f32.mrf.mxu0
        %v3068 = vadd.f32 0.0, %v3067
        %v3069 = vpop.f32.mrf.mxu0
        %v3070 = vpop.f32.mrf.mxu0
        %v3071 = vadd.f32 0.0, %v3070
        %v3072 = vpop.f32.mrf.mxu0
        %3073 = vmatprep.mubr.bf16.mxu0 0
        %3074 = vmatmul.mubr.bf16.gmra.mxu0 %v2971
        %v3075 = vpop.f32.mrf.mxu0
        %v3076 = vadd.f32 0.0, %v3075
        %v3077 = vpop.f32.mrf.mxu0
        %v3078 = vpop.f32.mrf.mxu0
        %v3079 = vadd.f32 0.0, %v3078
        %v3080 = vpop.f32.mrf.mxu0
        %3081 = vmatprep.mubr.bf16.mxu0 0
        %3082 = vmatmul.mubr.bf16.gmra.mxu0 %v2974
        %v3083 = vpop.f32.mrf.mxu0
        %v3084 = vadd.f32 0.0, %v3083
        %v3085 = vpop.f32.mrf.mxu0
        %v3086 = vpop.f32.mrf.mxu0
        %v3087 = vadd.f32 0.0, %v3086
        %v3088 = vpop.f32.mrf.mxu0
        %3089 = vmatprep.mubr.bf16.mxu0 0
        %3090 = vmatmul.mubr.bf16.gmra.mxu0 %v2977
        %v3091 = vpop.f32.mrf.mxu0
        %v3092 = vadd.f32 0.0, %v3091
        %v3093 = vpop.f32.mrf.mxu0
        %v3094 = vpop.f32.mrf.mxu0
        %v3095 = vadd.f32 0.0, %v3094
        %v3096 = vpop.f32.mrf.mxu0
        %3097 = vmatprep.mubr.bf16.mxu0 0
        %3098 = vmatmul.mubr.bf16.gmra.mxu0 %v2980
        %v3099 = vpop.f32.mrf.mxu0
        %v3100 = vadd.f32 0.0, %v3099
        %v3101 = vpop.f32.mrf.mxu0
        %v3102 = vpop.f32.mrf.mxu0
        %v3103 = vadd.f32 0.0, %v3102
        %v3104 = vpop.f32.mrf.mxu0
        %3105 = vmatprep.mubr.bf16.mxu0 0
        %3106 = vmatmul.mubr.bf16.gmra.mxu0 %v2983
        %v3107 = vpop.f32.mrf.mxu0
        %v3108 = vadd.f32 0.0, %v3107
        %v3109 = vpop.f32.mrf.mxu0
        %v3110 = vpop.f32.mrf.mxu0
        %v3111 = vadd.f32 0.0, %v3110
        %v3112 = vpop.f32.mrf.mxu0
        %3113 = vmatprep.mubr.bf16.mxu0 0
        %3114 = vmatmul.mubr.bf16.gmra.mxu0 %v2986
        %v3115 = vpop.f32.mrf.mxu0
        %v3116 = vadd.f32 0.0, %v3115
        %v3117 = vpop.f32.mrf.mxu0
        %v3118 = vpop.f32.mrf.mxu0
        %v3119 = vadd.f32 0.0, %v3118
        %v3120 = vpop.f32.mrf.mxu0
        %3121 = vmatprep.mubr.bf16.mxu0 0
        %3122 = vmatmul.mubr.bf16.gmra.mxu0 %v2989
        %v3123 = vpop.f32.mrf.mxu0
        %v3124 = vadd.f32 0.0, %v3123
        %v3125 = vpop.f32.mrf.mxu0
        %v3126 = vpop.f32.mrf.mxu0
        %v3127 = vadd.f32 0.0, %v3126
        %v3128 = vpop.f32.mrf.mxu0
        %3129 = vmatprep.mubr.bf16.mxu0 0
        %3130 = vmatmul.mubr.bf16.gmra.mxu0 %v2992
        %v3131 = vpop.f32.mrf.mxu0
        %v3132 = vadd.f32 0.0, %v3131
        %v3133 = vpop.f32.mrf.mxu0
        %v3134 = vpop.f32.mrf.mxu0
        %v3135 = vadd.f32 0.0, %v3134
        %v3136 = vpop.f32.mrf.mxu0
        %3137 = vmatprep.mubr.bf16.mxu0 0
        %3138 = vmatmul.mubr.bf16.gmra.mxu0 %v2995
        %v3139 = vpop.f32.mrf.mxu0
        %v3140 = vadd.f32 0.0, %v3139
        %v3141 = vpop.f32.mrf.mxu0
        %v3142 = vpop.f32.mrf.mxu0
        %v3143 = vadd.f32 0.0, %v3142
        %v3144 = vpop.f32.mrf.mxu0
        %3145 = vmatprep.mubr.bf16.mxu0 0
        %3146 = vmatmul.mubr.bf16.gmra.mxu0 %v2998
        %v3147 = vpop.f32.mrf.mxu0
        %v3148 = vadd.f32 0.0, %v3147
        %v3149 = vpop.f32.mrf.mxu0
        %v3150 = vpop.f32.mrf.mxu0
        %v3151 = vadd.f32 0.0, %v3150
        %v3152 = vpop.f32.mrf.mxu0
        %3153 = vmatprep.mubr.bf16.mxu0 0
        %3154 = vmatmul.mubr.bf16.gmra.mxu0 %v3001
        %v3155 = vpop.f32.mrf.mxu0
        %v3156 = vadd.f32 0.0, %v3155
        %v3157 = vpop.f32.mrf.mxu0
        %v3158 = vpop.f32.mrf.mxu0
        %v3159 = vadd.f32 0.0, %v3158
        %v3160 = vpop.f32.mrf.mxu0
        %3161 = vmatprep.mubr.bf16.mxu0 0
        %3162 = vmatmul.mubr.bf16.gmra.mxu0 %v3004
        %v3163 = vpop.f32.mrf.mxu0
        %v3164 = vadd.f32 0.0, %v3163
        %v3165 = vpop.f32.mrf.mxu0
        %v3166 = vpop.f32.mrf.mxu0
        %v3167 = vadd.f32 0.0, %v3166
        %v3168 = vpop.f32.mrf.mxu0
        %3169 = vdwg.mxu0
        %v3170 = vadd.f32 %v2700, %v3044
        %v3171 = vadd.f32 %v2701, %v3047
        %v3172 = vadd.f32 %v2702, %v3052
        %v3173 = vadd.f32 %v2703, %v3055
        %v3174 = vadd.f32 %v2704, %v3060
        %v3175 = vadd.f32 %v2705, %v3063
        %v3176 = vadd.f32 %v2706, %v3068
        %v3177 = vadd.f32 %v2707, %v3071
        %v3178 = vadd.f32 %v2708, %v3076
        %v3179 = vadd.f32 %v2709, %v3079
        %v3180 = vadd.f32 %v2710, %v3084
        %v3181 = vadd.f32 %v2711, %v3087
        %v3182 = vadd.f32 %v2712, %v3092
        %v3183 = vadd.f32 %v2713, %v3095
        %v3184 = vadd.f32 %v2714, %v3100
        %v3185 = vadd.f32 %v2715, %v3103
        %v3186 = vadd.f32 %v2716, %v3108
        %v3187 = vadd.f32 %v2717, %v3111
        %v3188 = vadd.f32 %v2718, %v3116
        %v3189 = vadd.f32 %v2719, %v3119
        %v3190 = vadd.f32 %v2720, %v3124
        %v3191 = vadd.f32 %v2721, %v3127
        %v3192 = vadd.f32 %v2722, %v3132
        %v3193 = vadd.f32 %v2723, %v3135
        %v3194 = vadd.f32 %v2724, %v3140
        %v3195 = vadd.f32 %v2725, %v3143
        %v3196 = vadd.f32 %v2726, %v3148
        %v3197 = vadd.f32 %v2727, %v3151
        %v3198 = vadd.f32 %v2728, %v3156
        %v3199 = vadd.f32 %v2729, %v3159
        %v3200 = vadd.f32 %v2730, %v3164
        %v3201 = vadd.f32 %v2731, %v3167
        %s3202 = scalar_lea.vmem %s196, 24
        %v3203 = vld [vmem:[%s3202] sm:$0xf]
        %v3204 = vld [vmem:[%s3202 + $0x4] sm:$0xf]
        %v3205 = vld [vmem:[%s3202 + $0xc] sm:$0xf]
        %v3206 = vld [vmem:[%s3202 + $0x10] sm:$0xf]
        %v3207 = vld [vmem:[%s3202 + $0x18] sm:$0xf]
        %v3208 = vld [vmem:[%s3202 + $0x1c] sm:$0xf]
        %v3209 = vld [vmem:[%s3202 + $0x24] sm:$0xf]
        %v3210 = vld [vmem:[%s3202 + $0x28] sm:$0xf]
        %v3211 = vld [vmem:[%s3202 + $0x30] sm:$0xf]
        %v3212 = vld [vmem:[%s3202 + $0x34] sm:$0xf]
        %v3213 = vld [vmem:[%s3202 + $0x3c] sm:$0xf]
        %v3214 = vld [vmem:[%s3202 + $0x40] sm:$0xf]
        %v3215 = vld [vmem:[%s3202 + $0x48] sm:$0xf]
        %v3216 = vld [vmem:[%s3202 + $0x4c] sm:$0xf]
        %v3217 = vld [vmem:[%s3202 + $0x54] sm:$0xf]
        %v3218 = vld [vmem:[%s3202 + $0x58] sm:$0xf]
        %v3219 = vld [vmem:[%s3202 + $0x60] sm:$0xf]
        %v3220 = vld [vmem:[%s3202 + $0x64] sm:$0xf]
        %v3221 = vld [vmem:[%s3202 + $0x6c] sm:$0xf]
        %v3222 = vld [vmem:[%s3202 + $0x70] sm:$0xf]
        %v3223 = vld [vmem:[%s3202 + $0x78] sm:$0xf]
        %v3224 = vld [vmem:[%s3202 + $0x7c] sm:$0xf]
        %v3225 = vld [vmem:[%s3202 + $0x84] sm:$0xf]
        %v3226 = vld [vmem:[%s3202 + $0x88] sm:$0xf]
        %v3227 = vld [vmem:[%s3202 + $0x90] sm:$0xf]
        %v3228 = vld [vmem:[%s3202 + $0x94] sm:$0xf]
        %v3229 = vld [vmem:[%s3202 + $0x9c] sm:$0xf]
        %v3230 = vld [vmem:[%s3202 + $0xa0] sm:$0xf]
        %v3231 = vld [vmem:[%s3202 + $0xa8] sm:$0xf]
        %v3232 = vld [vmem:[%s3202 + $0xac] sm:$0xf]
        %v3233 = vld [vmem:[%s3202 + $0xb4] sm:$0xf]
        %v3234 = vld [vmem:[%s3202 + $0xb8] sm:$0xf]
        %s3235 = scalar_lea.vmem %s1, 12
        %v3236 = vld [vmem:[%s3235] sm:$0x3]
        %v3269 = vunpack.c.l.b16 %v3203
        %v3270 = vunpack.c.l.b16 %v3204
        %v3271 = vunpack.c.l.b16 %v3205
        %v3272 = vunpack.c.l.b16 %v3206
        %v3273 = vunpack.c.l.b16 %v3207
        %v3274 = vunpack.c.l.b16 %v3208
        %v3275 = vunpack.c.l.b16 %v3209
        %v3276 = vunpack.c.l.b16 %v3210
        %v3277 = vunpack.c.l.b16 %v3211
        %v3278 = vunpack.c.l.b16 %v3212
        %v3279 = vunpack.c.l.b16 %v3213
        %v3280 = vunpack.c.l.b16 %v3214
        %v3281 = vunpack.c.l.b16 %v3215
        %v3282 = vunpack.c.l.b16 %v3216
        %v3283 = vunpack.c.l.b16 %v3217
        %v3284 = vunpack.c.l.b16 %v3218
        %v3285 = vunpack.c.l.b16 %v3219
        %v3286 = vunpack.c.l.b16 %v3220
        %v3287 = vunpack.c.l.b16 %v3221
        %v3288 = vunpack.c.l.b16 %v3222
        %v3289 = vunpack.c.l.b16 %v3223
        %v3290 = vunpack.c.l.b16 %v3224
        %v3291 = vunpack.c.l.b16 %v3225
        %v3292 = vunpack.c.l.b16 %v3226
        %v3293 = vunpack.c.l.b16 %v3227
        %v3294 = vunpack.c.l.b16 %v3228
        %v3295 = vunpack.c.l.b16 %v3229
        %v3296 = vunpack.c.l.b16 %v3230
        %v3297 = vunpack.c.l.b16 %v3231
        %v3298 = vunpack.c.l.b16 %v3232
        %v3299 = vunpack.c.l.b16 %v3233
        %v3300 = vunpack.c.l.b16 %v3234
        %v3301 = vpack.c.b16 %v3270, %v3269
        %v3302 = vpack.c.b16 %v3272, %v3271
        %v3303 = vpack.c.b16 %v3274, %v3273
        %v3304 = vpack.c.b16 %v3276, %v3275
        %v3305 = vpack.c.b16 %v3278, %v3277
        %v3306 = vpack.c.b16 %v3280, %v3279
        %v3307 = vpack.c.b16 %v3282, %v3281
        %v3308 = vpack.c.b16 %v3284, %v3283
        %v3309 = vpack.c.b16 %v3286, %v3285
        %v3310 = vpack.c.b16 %v3288, %v3287
        %v3311 = vpack.c.b16 %v3290, %v3289
        %v3312 = vpack.c.b16 %v3292, %v3291
        %v3313 = vpack.c.b16 %v3294, %v3293
        %v3314 = vpack.c.b16 %v3296, %v3295
        %v3315 = vpack.c.b16 %v3298, %v3297
        %v3316 = vpack.c.b16 %v3300, %v3299
        %v3318 = vsel %vm684, %v3301, 0
        %v3321 = vsel %vm684, %v3302, 0
        %v3324 = vsel %vm684, %v3303, 0
        %v3327 = vsel %vm684, %v3304, 0
        %v3330 = vsel %vm684, %v3305, 0
        %v3333 = vsel %vm684, %v3306, 0
        %v3336 = vsel %vm684, %v3307, 0
        %v3339 = vsel %vm684, %v3308, 0
        %v3342 = vsel %vm684, %v3309, 0
        %v3345 = vsel %vm684, %v3310, 0
        %v3348 = vsel %vm684, %v3311, 0
        %v3351 = vsel %vm684, %v3312, 0
        %v3354 = vsel %vm684, %v3313, 0
        %v3357 = vsel %vm684, %v3314, 0
        %v3360 = vsel %vm684, %v3315, 0
        %v3363 = vsel %vm684, %v3316, 0
        %v3366 = vsel %vm733, %v3236, 0
        %3368 = vmatprep.subr.bf16.mxu0 0
        %3369 = vmatpush1.bf16.msra.mxu0 0
        %3370 = vmatprep.subr.bf16.mxu0 0
        %3371 = vmatpush1.bf16.msra.mxu0 0
        %3372 = vmatprep.subr.bf16.mxu0 0
        %3373 = vmatpush1.bf16.msra.mxu0 0
        %3374 = vmatprep.subr.bf16.mxu0 0
        %3375 = vmatpush1.bf16.msra.mxu0 0
        %3376 = vmatprep.subr.bf16.mxu0 0
        %3377 = vmatpush1.bf16.msra.mxu0 0
        %3378 = vmatprep.subr.bf16.mxu0 0
        %3379 = vmatpush1.bf16.msra.mxu0 0
        %3380 = vmatprep.subr.bf16.mxu0 0
        %3381 = vmatpush1.bf16.msra.mxu0 0
        %3382 = vmatprep.subr.bf16.mxu0 0
        %3383 = vmatpush1.bf16.msra.mxu0 %v3366
        %3384 = vmatprep.subr.bf16.mxu0 0
        %3385 = vmatpush2.bf16.msra.mxu0 0
        %3386 = vmatprep.subr.bf16.mxu0 0
        %3387 = vmatpush2.bf16.msra.mxu0 0
        %3388 = vmatprep.subr.bf16.mxu0 0
        %3389 = vmatpush2.bf16.msra.mxu0 0
        %3390 = vmatprep.subr.bf16.mxu0 0
        %3391 = vmatpush2.bf16.msra.mxu0 0
        %3392 = vmatprep.subr.bf16.mxu0 0
        %3393 = vmatpush2.bf16.msra.mxu0 0
        %3394 = vmatprep.subr.bf16.mxu0 0
        %3395 = vmatpush2.bf16.msra.mxu0 0
        %3396 = vmatprep.subr.bf16.mxu0 0
        %3397 = vmatpush2.bf16.msra.mxu0 0
        %3398 = vmatprep.subr.bf16.mxu0 0
        %3399 = vmatpush2.bf16.msra.mxu0 0
        %3400 = vmatprep.mubr.bf16.mxu0 0
        %3401 = vmatmul.mubr.bf16.gmra.mxu0 %v3318
        %v3402 = vpop.f32.mrf.mxu0
        %v3403 = vadd.f32 0.0, %v3402
        %v3404 = vpop.f32.mrf.mxu0
        %v3405 = vpop.f32.mrf.mxu0
        %v3406 = vadd.f32 0.0, %v3405
        %v3407 = vpop.f32.mrf.mxu0
        %3408 = vmatprep.mubr.bf16.mxu0 0
        %3409 = vmatmul.mubr.bf16.gmra.mxu0 %v3321
        %v3410 = vpop.f32.mrf.mxu0
        %v3411 = vadd.f32 0.0, %v3410
        %v3412 = vpop.f32.mrf.mxu0
        %v3413 = vpop.f32.mrf.mxu0
        %v3414 = vadd.f32 0.0, %v3413
        %v3415 = vpop.f32.mrf.mxu0
        %3416 = vmatprep.mubr.bf16.mxu0 0
        %3417 = vmatmul.mubr.bf16.gmra.mxu0 %v3324
        %v3418 = vpop.f32.mrf.mxu0
        %v3419 = vadd.f32 0.0, %v3418
        %v3420 = vpop.f32.mrf.mxu0
        %v3421 = vpop.f32.mrf.mxu0
        %v3422 = vadd.f32 0.0, %v3421
        %v3423 = vpop.f32.mrf.mxu0
        %3424 = vmatprep.mubr.bf16.mxu0 0
        %3425 = vmatmul.mubr.bf16.gmra.mxu0 %v3327
        %v3426 = vpop.f32.mrf.mxu0
        %v3427 = vadd.f32 0.0, %v3426
        %v3428 = vpop.f32.mrf.mxu0
        %v3429 = vpop.f32.mrf.mxu0
        %v3430 = vadd.f32 0.0, %v3429
        %v3431 = vpop.f32.mrf.mxu0
        %3432 = vmatprep.mubr.bf16.mxu0 0
        %3433 = vmatmul.mubr.bf16.gmra.mxu0 %v3330
        %v3434 = vpop.f32.mrf.mxu0
        %v3435 = vadd.f32 0.0, %v3434
        %v3436 = vpop.f32.mrf.mxu0
        %v3437 = vpop.f32.mrf.mxu0
        %v3438 = vadd.f32 0.0, %v3437
        %v3439 = vpop.f32.mrf.mxu0
        %3440 = vmatprep.mubr.bf16.mxu0 0
        %3441 = vmatmul.mubr.bf16.gmra.mxu0 %v3333
        %v3442 = vpop.f32.mrf.mxu0
        %v3443 = vadd.f32 0.0, %v3442
        %v3444 = vpop.f32.mrf.mxu0
        %v3445 = vpop.f32.mrf.mxu0
        %v3446 = vadd.f32 0.0, %v3445
        %v3447 = vpop.f32.mrf.mxu0
        %3448 = vmatprep.mubr.bf16.mxu0 0
        %3449 = vmatmul.mubr.bf16.gmra.mxu0 %v3336
        %v3450 = vpop.f32.mrf.mxu0
        %v3451 = vadd.f32 0.0, %v3450
        %v3452 = vpop.f32.mrf.mxu0
        %v3453 = vpop.f32.mrf.mxu0
        %v3454 = vadd.f32 0.0, %v3453
        %v3455 = vpop.f32.mrf.mxu0
        %3456 = vmatprep.mubr.bf16.mxu0 0
        %3457 = vmatmul.mubr.bf16.gmra.mxu0 %v3339
        %v3458 = vpop.f32.mrf.mxu0
        %v3459 = vadd.f32 0.0, %v3458
        %v3460 = vpop.f32.mrf.mxu0
        %v3461 = vpop.f32.mrf.mxu0
        %v3462 = vadd.f32 0.0, %v3461
        %v3463 = vpop.f32.mrf.mxu0
        %3464 = vmatprep.mubr.bf16.mxu0 0
        %3465 = vmatmul.mubr.bf16.gmra.mxu0 %v3342
        %v3466 = vpop.f32.mrf.mxu0
        %v3467 = vadd.f32 0.0, %v3466
        %v3468 = vpop.f32.mrf.mxu0
        %v3469 = vpop.f32.mrf.mxu0
        %v3470 = vadd.f32 0.0, %v3469
        %v3471 = vpop.f32.mrf.mxu0
        %3472 = vmatprep.mubr.bf16.mxu0 0
        %3473 = vmatmul.mubr.bf16.gmra.mxu0 %v3345
        %v3474 = vpop.f32.mrf.mxu0
        %v3475 = vadd.f32 0.0, %v3474
        %v3476 = vpop.f32.mrf.mxu0
        %v3477 = vpop.f32.mrf.mxu0
        %v3478 = vadd.f32 0.0, %v3477
        %v3479 = vpop.f32.mrf.mxu0
        %3480 = vmatprep.mubr.bf16.mxu0 0
        %3481 = vmatmul.mubr.bf16.gmra.mxu0 %v3348
        %v3482 = vpop.f32.mrf.mxu0
        %v3483 = vadd.f32 0.0, %v3482
        %v3484 = vpop.f32.mrf.mxu0
        %v3485 = vpop.f32.mrf.mxu0
        %v3486 = vadd.f32 0.0, %v3485
        %v3487 = vpop.f32.mrf.mxu0
        %3488 = vmatprep.mubr.bf16.mxu0 0
        %3489 = vmatmul.mubr.bf16.gmra.mxu0 %v3351
        %v3490 = vpop.f32.mrf.mxu0
        %v3491 = vadd.f32 0.0, %v3490
        %v3492 = vpop.f32.mrf.mxu0
        %v3493 = vpop.f32.mrf.mxu0
        %v3494 = vadd.f32 0.0, %v3493
        %v3495 = vpop.f32.mrf.mxu0
        %3496 = vmatprep.mubr.bf16.mxu0 0
        %3497 = vmatmul.mubr.bf16.gmra.mxu0 %v3354
        %v3498 = vpop.f32.mrf.mxu0
        %v3499 = vadd.f32 0.0, %v3498
        %v3500 = vpop.f32.mrf.mxu0
        %v3501 = vpop.f32.mrf.mxu0
        %v3502 = vadd.f32 0.0, %v3501
        %v3503 = vpop.f32.mrf.mxu0
        %3504 = vmatprep.mubr.bf16.mxu0 0
        %3505 = vmatmul.mubr.bf16.gmra.mxu0 %v3357
        %v3506 = vpop.f32.mrf.mxu0
        %v3507 = vadd.f32 0.0, %v3506
        %v3508 = vpop.f32.mrf.mxu0
        %v3509 = vpop.f32.mrf.mxu0
        %v3510 = vadd.f32 0.0, %v3509
        %v3511 = vpop.f32.mrf.mxu0
        %3512 = vmatprep.mubr.bf16.mxu0 0
        %3513 = vmatmul.mubr.bf16.gmra.mxu0 %v3360
        %v3514 = vpop.f32.mrf.mxu0
        %v3515 = vadd.f32 0.0, %v3514
        %v3516 = vpop.f32.mrf.mxu0
        %v3517 = vpop.f32.mrf.mxu0
        %v3518 = vadd.f32 0.0, %v3517
        %v3519 = vpop.f32.mrf.mxu0
        %3520 = vmatprep.mubr.bf16.mxu0 0
        %3521 = vmatmul.mubr.bf16.gmra.mxu0 %v3363
        %v3522 = vpop.f32.mrf.mxu0
        %v3523 = vadd.f32 0.0, %v3522
        %v3524 = vpop.f32.mrf.mxu0
        %v3525 = vpop.f32.mrf.mxu0
        %v3526 = vadd.f32 0.0, %v3525
        %v3527 = vpop.f32.mrf.mxu0
        %3528 = vdwg.mxu0
        %v3529 = vadd.f32 %v3170, %v3403
        %v3530 = vadd.f32 %v3171, %v3406
        %v3531 = vadd.f32 %v3172, %v3411
        %v3532 = vadd.f32 %v3173, %v3414
        %v3533 = vadd.f32 %v3174, %v3419
        %v3534 = vadd.f32 %v3175, %v3422
        %v3535 = vadd.f32 %v3176, %v3427
        %v3536 = vadd.f32 %v3177, %v3430
        %v3537 = vadd.f32 %v3178, %v3435
        %v3538 = vadd.f32 %v3179, %v3438
        %v3539 = vadd.f32 %v3180, %v3443
        %v3540 = vadd.f32 %v3181, %v3446
        %v3541 = vadd.f32 %v3182, %v3451
        %v3542 = vadd.f32 %v3183, %v3454
        %v3543 = vadd.f32 %v3184, %v3459
        %v3544 = vadd.f32 %v3185, %v3462
        %v3545 = vadd.f32 %v3186, %v3467
        %v3546 = vadd.f32 %v3187, %v3470
        %v3547 = vadd.f32 %v3188, %v3475
        %v3548 = vadd.f32 %v3189, %v3478
        %v3549 = vadd.f32 %v3190, %v3483
        %v3550 = vadd.f32 %v3191, %v3486
        %v3551 = vadd.f32 %v3192, %v3491
        %v3552 = vadd.f32 %v3193, %v3494
        %v3553 = vadd.f32 %v3194, %v3499
        %v3554 = vadd.f32 %v3195, %v3502
        %v3555 = vadd.f32 %v3196, %v3507
        %v3556 = vadd.f32 %v3197, %v3510
        %v3557 = vadd.f32 %v3198, %v3515
        %v3558 = vadd.f32 %v3199, %v3518
        %v3559 = vadd.f32 %v3200, %v3523
        %v3560 = vadd.f32 %v3201, %v3526
        %v3561 = vld [vmem:[%s3202] sm:$0xf]
        %v3562 = vld [vmem:[%s3202 + $0x4] sm:$0xf]
        %v3563 = vld [vmem:[%s3202 + $0x8] sm:$0x1]
        %v3564 = vld [vmem:[%s3202 + $0xc] sm:$0xf]
        %v3565 = vld [vmem:[%s3202 + $0x10] sm:$0xf]
        %v3566 = vld [vmem:[%s3202 + $0x14] sm:$0x1]
        %v3567 = vld [vmem:[%s3202 + $0x18] sm:$0xf]
        %v3568 = vld [vmem:[%s3202 + $0x1c] sm:$0xf]
        %v3569 = vld [vmem:[%s3202 + $0x20] sm:$0x1]
        %v3570 = vld [vmem:[%s3202 + $0x24] sm:$0xf]
        %v3571 = vld [vmem:[%s3202 + $0x28] sm:$0xf]
        %v3572 = vld [vmem:[%s3202 + $0x2c] sm:$0x1]
        %v3573 = vld [vmem:[%s3202 + $0x30] sm:$0xf]
        %v3574 = vld [vmem:[%s3202 + $0x34] sm:$0xf]
        %v3575 = vld [vmem:[%s3202 + $0x38] sm:$0x1]
        %v3576 = vld [vmem:[%s3202 + $0x3c] sm:$0xf]
        %v3577 = vld [vmem:[%s3202 + $0x40] sm:$0xf]
        %v3578 = vld [vmem:[%s3202 + $0x44] sm:$0x1]
        %v3579 = vld [vmem:[%s3202 + $0x48] sm:$0xf]
        %v3580 = vld [vmem:[%s3202 + $0x4c] sm:$0xf]
        %v3581 = vld [vmem:[%s3202 + $0x50] sm:$0x1]
        %v3582 = vld [vmem:[%s3202 + $0x54] sm:$0xf]
        %v3583 = vld [vmem:[%s3202 + $0x58] sm:$0xf]
        %v3584 = vld [vmem:[%s3202 + $0x5c] sm:$0x1]
        %v3585 = vld [vmem:[%s3202 + $0x60] sm:$0xf]
        %v3586 = vld [vmem:[%s3202 + $0x64] sm:$0xf]
        %v3587 = vld [vmem:[%s3202 + $0x68] sm:$0x1]
        %v3588 = vld [vmem:[%s3202 + $0x6c] sm:$0xf]
        %v3589 = vld [vmem:[%s3202 + $0x70] sm:$0xf]
        %v3590 = vld [vmem:[%s3202 + $0x74] sm:$0x1]
        %v3591 = vld [vmem:[%s3202 + $0x78] sm:$0xf]
        %v3592 = vld [vmem:[%s3202 + $0x7c] sm:$0xf]
        %v3593 = vld [vmem:[%s3202 + $0x80] sm:$0x1]
        %v3594 = vld [vmem:[%s3202 + $0x84] sm:$0xf]
        %v3595 = vld [vmem:[%s3202 + $0x88] sm:$0xf]
        %v3596 = vld [vmem:[%s3202 + $0x8c] sm:$0x1]
        %v3597 = vld [vmem:[%s3202 + $0x90] sm:$0xf]
        %v3598 = vld [vmem:[%s3202 + $0x94] sm:$0xf]
        %v3599 = vld [vmem:[%s3202 + $0x98] sm:$0x1]
        %v3600 = vld [vmem:[%s3202 + $0x9c] sm:$0xf]
        %v3601 = vld [vmem:[%s3202 + $0xa0] sm:$0xf]
        %v3602 = vld [vmem:[%s3202 + $0xa4] sm:$0x1]
        %v3603 = vld [vmem:[%s3202 + $0xa8] sm:$0xf]
        %v3604 = vld [vmem:[%s3202 + $0xac] sm:$0xf]
        %v3605 = vld [vmem:[%s3202 + $0xb0] sm:$0x1]
        %v3606 = vld [vmem:[%s3202 + $0xb4] sm:$0xf]
        %v3607 = vld [vmem:[%s3202 + $0xb8] sm:$0xf]
        %v3608 = vld [vmem:[%s3202 + $0xbc] sm:$0x1]
        %v3610 = vshrl.u32 %v3561, 16
        %v3612 = vrot.slane %v3610, 4
        %v3613 = vshll.u32 %v3561, 16
        %v3615 = vrot.slane %v3613, 5
        %v3616 = vor.u32 %v3612, %v3615
        %v3617 = vrot.slane %v3616, 4
        %v3619 = vshll.u32 %v3562, 16
        %v3621 = vrot.slane %v3619, 5
        %v3622 = vsel %vm249, %v3617, %v3621
        %v3623 = vshrl.u32 %v3562, 16
        %v3625 = vrot.slane %v3623, 4
        %v3626 = vor.u32 %v3625, %v3621
        %v3627 = vrot.slane %v3626, 4
        %v3629 = vshll.u32 %v3563, 16
        %v3631 = vrot.slane %v3629, 5
        %v3632 = vsel %vm249, %v3627, %v3631
        %v3634 = vshrl.u32 %v3564, 16
        %v3636 = vrot.slane %v3634, 4
        %v3637 = vshll.u32 %v3564, 16
        %v3639 = vrot.slane %v3637, 5
        %v3640 = vor.u32 %v3636, %v3639
        %v3641 = vrot.slane %v3640, 4
        %v3643 = vshll.u32 %v3565, 16
        %v3645 = vrot.slane %v3643, 5
        %v3646 = vsel %vm249, %v3641, %v3645
        %v3647 = vshrl.u32 %v3565, 16
        %v3649 = vrot.slane %v3647, 4
        %v3650 = vor.u32 %v3649, %v3645
        %v3651 = vrot.slane %v3650, 4
        %v3653 = vshll.u32 %v3566, 16
        %v3655 = vrot.slane %v3653, 5
        %v3656 = vsel %vm249, %v3651, %v3655
        %v3658 = vshrl.u32 %v3567, 16
        %v3660 = vrot.slane %v3658, 4
        %v3661 = vshll.u32 %v3567, 16
        %v3663 = vrot.slane %v3661, 5
        %v3664 = vor.u32 %v3660, %v3663
        %v3665 = vrot.slane %v3664, 4
        %v3667 = vshll.u32 %v3568, 16
        %v3669 = vrot.slane %v3667, 5
        %v3670 = vsel %vm249, %v3665, %v3669
        %v3671 = vshrl.u32 %v3568, 16
        %v3673 = vrot.slane %v3671, 4
        %v3674 = vor.u32 %v3673, %v3669
        %v3675 = vrot.slane %v3674, 4
        %v3677 = vshll.u32 %v3569, 16
        %v3679 = vrot.slane %v3677, 5
        %v3680 = vsel %vm249, %v3675, %v3679
        %v3682 = vshrl.u32 %v3570, 16
        %v3684 = vrot.slane %v3682, 4
        %v3685 = vshll.u32 %v3570, 16
        %v3687 = vrot.slane %v3685, 5
        %v3688 = vor.u32 %v3684, %v3687
        %v3689 = vrot.slane %v3688, 4
        %v3691 = vshll.u32 %v3571, 16
        %v3693 = vrot.slane %v3691, 5
        %v3694 = vsel %vm249, %v3689, %v3693
        %v3695 = vshrl.u32 %v3571, 16
        %v3697 = vrot.slane %v3695, 4
        %v3698 = vor.u32 %v3697, %v3693
        %v3699 = vrot.slane %v3698, 4
        %v3701 = vshll.u32 %v3572, 16
        %v3703 = vrot.slane %v3701, 5
        %v3704 = vsel %vm249, %v3699, %v3703
        %v3706 = vshrl.u32 %v3573, 16
        %v3708 = vrot.slane %v3706, 4
        %v3709 = vshll.u32 %v3573, 16
        %v3711 = vrot.slane %v3709, 5
        %v3712 = vor.u32 %v3708, %v3711
        %v3713 = vrot.slane %v3712, 4
        %v3715 = vshll.u32 %v3574, 16
        %v3717 = vrot.slane %v3715, 5
        %v3718 = vsel %vm249, %v3713, %v3717
        %v3719 = vshrl.u32 %v3574, 16
        %v3721 = vrot.slane %v3719, 4
        %v3722 = vor.u32 %v3721, %v3717
        %v3723 = vrot.slane %v3722, 4
        %v3725 = vshll.u32 %v3575, 16
        %v3727 = vrot.slane %v3725, 5
        %v3728 = vsel %vm249, %v3723, %v3727
        %v3730 = vshrl.u32 %v3576, 16
        %v3732 = vrot.slane %v3730, 4
        %v3733 = vshll.u32 %v3576, 16
        %v3735 = vrot.slane %v3733, 5
        %v3736 = vor.u32 %v3732, %v3735
        %v3737 = vrot.slane %v3736, 4
        %v3739 = vshll.u32 %v3577, 16
        %v3741 = vrot.slane %v3739, 5
        %v3742 = vsel %vm249, %v3737, %v3741
        %v3743 = vshrl.u32 %v3577, 16
        %v3745 = vrot.slane %v3743, 4
        %v3746 = vor.u32 %v3745, %v3741
        %v3747 = vrot.slane %v3746, 4
        %v3749 = vshll.u32 %v3578, 16
        %v3751 = vrot.slane %v3749, 5
        %v3752 = vsel %vm249, %v3747, %v3751
        %v3754 = vshrl.u32 %v3579, 16
        %v3756 = vrot.slane %v3754, 4
        %v3757 = vshll.u32 %v3579, 16
        %v3759 = vrot.slane %v3757, 5
        %v3760 = vor.u32 %v3756, %v3759
        %v3761 = vrot.slane %v3760, 4
        %v3763 = vshll.u32 %v3580, 16
        %v3765 = vrot.slane %v3763, 5
        %v3766 = vsel %vm249, %v3761, %v3765
        %v3767 = vshrl.u32 %v3580, 16
        %v3769 = vrot.slane %v3767, 4
        %v3770 = vor.u32 %v3769, %v3765
        %v3771 = vrot.slane %v3770, 4
        %v3773 = vshll.u32 %v3581, 16
        %v3775 = vrot.slane %v3773, 5
        %v3776 = vsel %vm249, %v3771, %v3775
        %v3778 = vshrl.u32 %v3582, 16
        %v3780 = vrot.slane %v3778, 4
        %v3781 = vshll.u32 %v3582, 16
        %v3783 = vrot.slane %v3781, 5
        %v3784 = vor.u32 %v3780, %v3783
        %v3785 = vrot.slane %v3784, 4
        %v3787 = vshll.u32 %v3583, 16
        %v3789 = vrot.slane %v3787, 5
        %v3790 = vsel %vm249, %v3785, %v3789
        %v3791 = vshrl.u32 %v3583, 16
        %v3793 = vrot.slane %v3791, 4
        %v3794 = vor.u32 %v3793, %v3789
        %v3795 = vrot.slane %v3794, 4
        %v3797 = vshll.u32 %v3584, 16
        %v3799 = vrot.slane %v3797, 5
        %v3800 = vsel %vm249, %v3795, %v3799
        %v3802 = vshrl.u32 %v3585, 16
        %v3804 = vrot.slane %v3802, 4
        %v3805 = vshll.u32 %v3585, 16
        %v3807 = vrot.slane %v3805, 5
        %v3808 = vor.u32 %v3804, %v3807
        %v3809 = vrot.slane %v3808, 4
        %v3811 = vshll.u32 %v3586, 16
        %v3813 = vrot.slane %v3811, 5
        %v3814 = vsel %vm249, %v3809, %v3813
        %v3815 = vshrl.u32 %v3586, 16
        %v3817 = vrot.slane %v3815, 4
        %v3818 = vor.u32 %v3817, %v3813
        %v3819 = vrot.slane %v3818, 4
        %v3821 = vshll.u32 %v3587, 16
        %v3823 = vrot.slane %v3821, 5
        %v3824 = vsel %vm249, %v3819, %v3823
        %v3826 = vshrl.u32 %v3588, 16
        %v3828 = vrot.slane %v3826, 4
        %v3829 = vshll.u32 %v3588, 16
        %v3831 = vrot.slane %v3829, 5
        %v3832 = vor.u32 %v3828, %v3831
        %v3833 = vrot.slane %v3832, 4
        %v3835 = vshll.u32 %v3589, 16
        %v3837 = vrot.slane %v3835, 5
        %v3838 = vsel %vm249, %v3833, %v3837
        %v3839 = vshrl.u32 %v3589, 16
        %v3841 = vrot.slane %v3839, 4
        %v3842 = vor.u32 %v3841, %v3837
        %v3843 = vrot.slane %v3842, 4
        %v3845 = vshll.u32 %v3590, 16
        %v3847 = vrot.slane %v3845, 5
        %v3848 = vsel %vm249, %v3843, %v3847
        %v3850 = vshrl.u32 %v3591, 16
        %v3852 = vrot.slane %v3850, 4
        %v3853 = vshll.u32 %v3591, 16
        %v3855 = vrot.slane %v3853, 5
        %v3856 = vor.u32 %v3852, %v3855
        %v3857 = vrot.slane %v3856, 4
        %v3859 = vshll.u32 %v3592, 16
        %v3861 = vrot.slane %v3859, 5
        %v3862 = vsel %vm249, %v3857, %v3861
        %v3863 = vshrl.u32 %v3592, 16
        %v3865 = vrot.slane %v3863, 4
        %v3866 = vor.u32 %v3865, %v3861
        %v3867 = vrot.slane %v3866, 4
        %v3869 = vshll.u32 %v3593, 16
        %v3871 = vrot.slane %v3869, 5
        %v3872 = vsel %vm249, %v3867, %v3871
        %v3874 = vshrl.u32 %v3594, 16
        %v3876 = vrot.slane %v3874, 4
        %v3877 = vshll.u32 %v3594, 16
        %v3879 = vrot.slane %v3877, 5
        %v3880 = vor.u32 %v3876, %v3879
        %v3881 = vrot.slane %v3880, 4
        %v3883 = vshll.u32 %v3595, 16
        %v3885 = vrot.slane %v3883, 5
        %v3886 = vsel %vm249, %v3881, %v3885
        %v3887 = vshrl.u32 %v3595, 16
        %v3889 = vrot.slane %v3887, 4
        %v3890 = vor.u32 %v3889, %v3885
        %v3891 = vrot.slane %v3890, 4
        %v3893 = vshll.u32 %v3596, 16
        %v3895 = vrot.slane %v3893, 5
        %v3896 = vsel %vm249, %v3891, %v3895
        %v3898 = vshrl.u32 %v3597, 16
        %v3900 = vrot.slane %v3898, 4
        %v3901 = vshll.u32 %v3597, 16
        %v3903 = vrot.slane %v3901, 5
        %v3904 = vor.u32 %v3900, %v3903
        %v3905 = vrot.slane %v3904, 4
        %v3907 = vshll.u32 %v3598, 16
        %v3909 = vrot.slane %v3907, 5
        %v3910 = vsel %vm249, %v3905, %v3909
        %v3911 = vshrl.u32 %v3598, 16
        %v3913 = vrot.slane %v3911, 4
        %v3914 = vor.u32 %v3913, %v3909
        %v3915 = vrot.slane %v3914, 4
        %v3917 = vshll.u32 %v3599, 16
        %v3919 = vrot.slane %v3917, 5
        %v3920 = vsel %vm249, %v3915, %v3919
        %v3922 = vshrl.u32 %v3600, 16
        %v3924 = vrot.slane %v3922, 4
        %v3925 = vshll.u32 %v3600, 16
        %v3927 = vrot.slane %v3925, 5
        %v3928 = vor.u32 %v3924, %v3927
        %v3929 = vrot.slane %v3928, 4
        %v3931 = vshll.u32 %v3601, 16
        %v3933 = vrot.slane %v3931, 5
        %v3934 = vsel %vm249, %v3929, %v3933
        %v3935 = vshrl.u32 %v3601, 16
        %v3937 = vrot.slane %v3935, 4
        %v3938 = vor.u32 %v3937, %v3933
        %v3939 = vrot.slane %v3938, 4
        %v3941 = vshll.u32 %v3602, 16
        %v3943 = vrot.slane %v3941, 5
        %v3944 = vsel %vm249, %v3939, %v3943
        %v3946 = vshrl.u32 %v3603, 16
        %v3948 = vrot.slane %v3946, 4
        %v3949 = vshll.u32 %v3603, 16
        %v3951 = vrot.slane %v3949, 5
        %v3952 = vor.u32 %v3948, %v3951
        %v3953 = vrot.slane %v3952, 4
        %v3955 = vshll.u32 %v3604, 16
        %v3957 = vrot.slane %v3955, 5
        %v3958 = vsel %vm249, %v3953, %v3957
        %v3959 = vshrl.u32 %v3604, 16
        %v3961 = vrot.slane %v3959, 4
        %v3962 = vor.u32 %v3961, %v3957
        %v3963 = vrot.slane %v3962, 4
        %v3965 = vshll.u32 %v3605, 16
        %v3967 = vrot.slane %v3965, 5
        %v3968 = vsel %vm249, %v3963, %v3967
        %v3970 = vshrl.u32 %v3606, 16
        %v3972 = vrot.slane %v3970, 4
        %v3973 = vshll.u32 %v3606, 16
        %v3975 = vrot.slane %v3973, 5
        %v3976 = vor.u32 %v3972, %v3975
        %v3977 = vrot.slane %v3976, 4
        %v3979 = vshll.u32 %v3607, 16
        %v3981 = vrot.slane %v3979, 5
        %v3982 = vsel %vm249, %v3977, %v3981
        %v3983 = vshrl.u32 %v3607, 16
        %v3985 = vrot.slane %v3983, 4
        %v3986 = vor.u32 %v3985, %v3981
        %v3987 = vrot.slane %v3986, 4
        %v3989 = vshll.u32 %v3608, 16
        %v3991 = vrot.slane %v3989, 5
        %v3992 = vsel %vm249, %v3987, %v3991
        %s3993 = scalar_lea.vmem %s1, 14
        %v3994 = vld [vmem:[%s3993] sm:$0x3]
        %v3995 = vunpack.c.l.b16 %v3622
        %v3996 = vunpack.c.l.b16 %v3632
        %v3997 = vunpack.c.l.b16 %v3646
        %v3998 = vunpack.c.l.b16 %v3656
        %v3999 = vunpack.c.l.b16 %v3670
        %v4000 = vunpack.c.l.b16 %v3680
        %v4001 = vunpack.c.l.b16 %v3694
        %v4002 = vunpack.c.l.b16 %v3704
        %v4003 = vunpack.c.l.b16 %v3718
        %v4004 = vunpack.c.l.b16 %v3728
        %v4005 = vunpack.c.l.b16 %v3742
        %v4006 = vunpack.c.l.b16 %v3752
        %v4007 = vunpack.c.l.b16 %v3766
        %v4008 = vunpack.c.l.b16 %v3776
        %v4009 = vunpack.c.l.b16 %v3790
        %v4010 = vunpack.c.l.b16 %v3800
        %v4011 = vunpack.c.l.b16 %v3814
        %v4012 = vunpack.c.l.b16 %v3824
        %v4013 = vunpack.c.l.b16 %v3838
        %v4014 = vunpack.c.l.b16 %v3848
        %v4015 = vunpack.c.l.b16 %v3862
        %v4016 = vunpack.c.l.b16 %v3872
        %v4017 = vunpack.c.l.b16 %v3886
        %v4018 = vunpack.c.l.b16 %v3896
        %v4019 = vunpack.c.l.b16 %v3910
        %v4020 = vunpack.c.l.b16 %v3920
        %v4021 = vunpack.c.l.b16 %v3934
        %v4022 = vunpack.c.l.b16 %v3944
        %v4023 = vunpack.c.l.b16 %v3958
        %v4024 = vunpack.c.l.b16 %v3968
        %v4025 = vunpack.c.l.b16 %v3982
        %v4026 = vunpack.c.l.b16 %v3992
        %v4027 = vpack.c.b16 %v3996, %v3995
        %v4028 = vpack.c.b16 %v3998, %v3997
        %v4029 = vpack.c.b16 %v4000, %v3999
        %v4030 = vpack.c.b16 %v4002, %v4001
        %v4031 = vpack.c.b16 %v4004, %v4003
        %v4032 = vpack.c.b16 %v4006, %v4005
        %v4033 = vpack.c.b16 %v4008, %v4007
        %v4034 = vpack.c.b16 %v4010, %v4009
        %v4035 = vpack.c.b16 %v4012, %v4011
        %v4036 = vpack.c.b16 %v4014, %v4013
        %v4037 = vpack.c.b16 %v4016, %v4015
        %v4038 = vpack.c.b16 %v4018, %v4017
        %v4039 = vpack.c.b16 %v4020, %v4019
        %v4040 = vpack.c.b16 %v4022, %v4021
        %v4041 = vpack.c.b16 %v4024, %v4023
        %v4042 = vpack.c.b16 %v4026, %v4025
        %v4044 = vsel %vm684, %v4027, 0
        %v4047 = vsel %vm684, %v4028, 0
        %v4050 = vsel %vm684, %v4029, 0
        %v4053 = vsel %vm684, %v4030, 0
        %v4056 = vsel %vm684, %v4031, 0
        %v4059 = vsel %vm684, %v4032, 0
        %v4062 = vsel %vm684, %v4033, 0
        %v4065 = vsel %vm684, %v4034, 0
        %v4068 = vsel %vm684, %v4035, 0
        %v4071 = vsel %vm684, %v4036, 0
        %v4074 = vsel %vm684, %v4037, 0
        %v4077 = vsel %vm684, %v4038, 0
        %v4080 = vsel %vm684, %v4039, 0
        %v4083 = vsel %vm684, %v4040, 0
        %v4086 = vsel %vm684, %v4041, 0
        %v4089 = vsel %vm684, %v4042, 0
        %v4092 = vsel %vm733, %v3994, 0
        %4094 = vmatprep.subr.bf16.mxu0 0
        %4095 = vmatpush1.bf16.msra.mxu0 0
        %4096 = vmatprep.subr.bf16.mxu0 0
        %4097 = vmatpush1.bf16.msra.mxu0 0
        %4098 = vmatprep.subr.bf16.mxu0 0
        %4099 = vmatpush1.bf16.msra.mxu0 0
        %4100 = vmatprep.subr.bf16.mxu0 0
        %4101 = vmatpush1.bf16.msra.mxu0 0
        %4102 = vmatprep.subr.bf16.mxu0 0
        %4103 = vmatpush1.bf16.msra.mxu0 0
        %4104 = vmatprep.subr.bf16.mxu0 0
        %4105 = vmatpush1.bf16.msra.mxu0 0
        %4106 = vmatprep.subr.bf16.mxu0 0
        %4107 = vmatpush1.bf16.msra.mxu0 0
        %4108 = vmatprep.subr.bf16.mxu0 0
        %4109 = vmatpush1.bf16.msra.mxu0 %v4092
        %4110 = vmatprep.subr.bf16.mxu0 0
        %4111 = vmatpush2.bf16.msra.mxu0 0
        %4112 = vmatprep.subr.bf16.mxu0 0
        %4113 = vmatpush2.bf16.msra.mxu0 0
        %4114 = vmatprep.subr.bf16.mxu0 0
        %4115 = vmatpush2.bf16.msra.mxu0 0
        %4116 = vmatprep.subr.bf16.mxu0 0
        %4117 = vmatpush2.bf16.msra.mxu0 0
        %4118 = vmatprep.subr.bf16.mxu0 0
        %4119 = vmatpush2.bf16.msra.mxu0 0
        %4120 = vmatprep.subr.bf16.mxu0 0
        %4121 = vmatpush2.bf16.msra.mxu0 0
        %4122 = vmatprep.subr.bf16.mxu0 0
        %4123 = vmatpush2.bf16.msra.mxu0 0
        %4124 = vmatprep.subr.bf16.mxu0 0
        %4125 = vmatpush2.bf16.msra.mxu0 0
        %4126 = vmatprep.mubr.bf16.mxu0 0
        %4127 = vmatmul.mubr.bf16.gmra.mxu0 %v4044
        %v4128 = vpop.f32.mrf.mxu0
        %v4129 = vadd.f32 0.0, %v4128
        %v4130 = vpop.f32.mrf.mxu0
        %v4131 = vpop.f32.mrf.mxu0
        %v4132 = vadd.f32 0.0, %v4131
        %v4133 = vpop.f32.mrf.mxu0
        %4134 = vmatprep.mubr.bf16.mxu0 0
        %4135 = vmatmul.mubr.bf16.gmra.mxu0 %v4047
        %v4136 = vpop.f32.mrf.mxu0
        %v4137 = vadd.f32 0.0, %v4136
        %v4138 = vpop.f32.mrf.mxu0
        %v4139 = vpop.f32.mrf.mxu0
        %v4140 = vadd.f32 0.0, %v4139
        %v4141 = vpop.f32.mrf.mxu0
        %4142 = vmatprep.mubr.bf16.mxu0 0
        %4143 = vmatmul.mubr.bf16.gmra.mxu0 %v4050
        %v4144 = vpop.f32.mrf.mxu0
        %v4145 = vadd.f32 0.0, %v4144
        %v4146 = vpop.f32.mrf.mxu0
        %v4147 = vpop.f32.mrf.mxu0
        %v4148 = vadd.f32 0.0, %v4147
        %v4149 = vpop.f32.mrf.mxu0
        %4150 = vmatprep.mubr.bf16.mxu0 0
        %4151 = vmatmul.mubr.bf16.gmra.mxu0 %v4053
        %v4152 = vpop.f32.mrf.mxu0
        %v4153 = vadd.f32 0.0, %v4152
        %v4154 = vpop.f32.mrf.mxu0
        %v4155 = vpop.f32.mrf.mxu0
        %v4156 = vadd.f32 0.0, %v4155
        %v4157 = vpop.f32.mrf.mxu0
        %4158 = vmatprep.mubr.bf16.mxu0 0
        %4159 = vmatmul.mubr.bf16.gmra.mxu0 %v4056
        %v4160 = vpop.f32.mrf.mxu0
        %v4161 = vadd.f32 0.0, %v4160
        %v4162 = vpop.f32.mrf.mxu0
        %v4163 = vpop.f32.mrf.mxu0
        %v4164 = vadd.f32 0.0, %v4163
        %v4165 = vpop.f32.mrf.mxu0
        %4166 = vmatprep.mubr.bf16.mxu0 0
        %4167 = vmatmul.mubr.bf16.gmra.mxu0 %v4059
        %v4168 = vpop.f32.mrf.mxu0
        %v4169 = vadd.f32 0.0, %v4168
        %v4170 = vpop.f32.mrf.mxu0
        %v4171 = vpop.f32.mrf.mxu0
        %v4172 = vadd.f32 0.0, %v4171
        %v4173 = vpop.f32.mrf.mxu0
        %4174 = vmatprep.mubr.bf16.mxu0 0
        %4175 = vmatmul.mubr.bf16.gmra.mxu0 %v4062
        %v4176 = vpop.f32.mrf.mxu0
        %v4177 = vadd.f32 0.0, %v4176
        %v4178 = vpop.f32.mrf.mxu0
        %v4179 = vpop.f32.mrf.mxu0
        %v4180 = vadd.f32 0.0, %v4179
        %v4181 = vpop.f32.mrf.mxu0
        %4182 = vmatprep.mubr.bf16.mxu0 0
        %4183 = vmatmul.mubr.bf16.gmra.mxu0 %v4065
        %v4184 = vpop.f32.mrf.mxu0
        %v4185 = vadd.f32 0.0, %v4184
        %v4186 = vpop.f32.mrf.mxu0
        %v4187 = vpop.f32.mrf.mxu0
        %v4188 = vadd.f32 0.0, %v4187
        %v4189 = vpop.f32.mrf.mxu0
        %4190 = vmatprep.mubr.bf16.mxu0 0
        %4191 = vmatmul.mubr.bf16.gmra.mxu0 %v4068
        %v4192 = vpop.f32.mrf.mxu0
        %v4193 = vadd.f32 0.0, %v4192
        %v4194 = vpop.f32.mrf.mxu0
        %v4195 = vpop.f32.mrf.mxu0
        %v4196 = vadd.f32 0.0, %v4195
        %v4197 = vpop.f32.mrf.mxu0
        %4198 = vmatprep.mubr.bf16.mxu0 0
        %4199 = vmatmul.mubr.bf16.gmra.mxu0 %v4071
        %v4200 = vpop.f32.mrf.mxu0
        %v4201 = vadd.f32 0.0, %v4200
        %v4202 = vpop.f32.mrf.mxu0
        %v4203 = vpop.f32.mrf.mxu0
        %v4204 = vadd.f32 0.0, %v4203
        %v4205 = vpop.f32.mrf.mxu0
        %4206 = vmatprep.mubr.bf16.mxu0 0
        %4207 = vmatmul.mubr.bf16.gmra.mxu0 %v4074
        %v4208 = vpop.f32.mrf.mxu0
        %v4209 = vadd.f32 0.0, %v4208
        %v4210 = vpop.f32.mrf.mxu0
        %v4211 = vpop.f32.mrf.mxu0
        %v4212 = vadd.f32 0.0, %v4211
        %v4213 = vpop.f32.mrf.mxu0
        %4214 = vmatprep.mubr.bf16.mxu0 0
        %4215 = vmatmul.mubr.bf16.gmra.mxu0 %v4077
        %v4216 = vpop.f32.mrf.mxu0
        %v4217 = vadd.f32 0.0, %v4216
        %v4218 = vpop.f32.mrf.mxu0
        %v4219 = vpop.f32.mrf.mxu0
        %v4220 = vadd.f32 0.0, %v4219
        %v4221 = vpop.f32.mrf.mxu0
        %4222 = vmatprep.mubr.bf16.mxu0 0
        %4223 = vmatmul.mubr.bf16.gmra.mxu0 %v4080
        %v4224 = vpop.f32.mrf.mxu0
        %v4225 = vadd.f32 0.0, %v4224
        %v4226 = vpop.f32.mrf.mxu0
        %v4227 = vpop.f32.mrf.mxu0
        %v4228 = vadd.f32 0.0, %v4227
        %v4229 = vpop.f32.mrf.mxu0
        %4230 = vmatprep.mubr.bf16.mxu0 0
        %4231 = vmatmul.mubr.bf16.gmra.mxu0 %v4083
        %v4232 = vpop.f32.mrf.mxu0
        %v4233 = vadd.f32 0.0, %v4232
        %v4234 = vpop.f32.mrf.mxu0
        %v4235 = vpop.f32.mrf.mxu0
        %v4236 = vadd.f32 0.0, %v4235
        %v4237 = vpop.f32.mrf.mxu0
        %4238 = vmatprep.mubr.bf16.mxu0 0
        %4239 = vmatmul.mubr.bf16.gmra.mxu0 %v4086
        %v4240 = vpop.f32.mrf.mxu0
        %v4241 = vadd.f32 0.0, %v4240
        %v4242 = vpop.f32.mrf.mxu0
        %v4243 = vpop.f32.mrf.mxu0
        %v4244 = vadd.f32 0.0, %v4243
        %v4245 = vpop.f32.mrf.mxu0
        %4246 = vmatprep.mubr.bf16.mxu0 0
        %4247 = vmatmul.mubr.bf16.gmra.mxu0 %v4089
        %v4248 = vpop.f32.mrf.mxu0
        %v4249 = vadd.f32 0.0, %v4248
        %v4250 = vpop.f32.mrf.mxu0
        %v4251 = vpop.f32.mrf.mxu0
        %v4252 = vadd.f32 0.0, %v4251
        %v4253 = vpop.f32.mrf.mxu0
        %4254 = vdwg.mxu0
        %v4255 = vadd.f32 %v3529, %v4129
        %v4256 = vadd.f32 %v3530, %v4132
        %v4257 = vadd.f32 %v3531, %v4137
        %v4258 = vadd.f32 %v3532, %v4140
        %v4259 = vadd.f32 %v3533, %v4145
        %v4260 = vadd.f32 %v3534, %v4148
        %v4261 = vadd.f32 %v3535, %v4153
        %v4262 = vadd.f32 %v3536, %v4156
        %v4263 = vadd.f32 %v3537, %v4161
        %v4264 = vadd.f32 %v3538, %v4164
        %v4265 = vadd.f32 %v3539, %v4169
        %v4266 = vadd.f32 %v3540, %v4172
        %v4267 = vadd.f32 %v3541, %v4177
        %v4268 = vadd.f32 %v3542, %v4180
        %v4269 = vadd.f32 %v3543, %v4185
        %v4270 = vadd.f32 %v3544, %v4188
        %v4271 = vadd.f32 %v3545, %v4193
        %v4272 = vadd.f32 %v3546, %v4196
        %v4273 = vadd.f32 %v3547, %v4201
        %v4274 = vadd.f32 %v3548, %v4204
        %v4275 = vadd.f32 %v3549, %v4209
        %v4276 = vadd.f32 %v3550, %v4212
        %v4277 = vadd.f32 %v3551, %v4217
        %v4278 = vadd.f32 %v3552, %v4220
        %v4279 = vadd.f32 %v3553, %v4225
        %v4280 = vadd.f32 %v3554, %v4228
        %v4281 = vadd.f32 %v3555, %v4233
        %v4282 = vadd.f32 %v3556, %v4236
        %v4283 = vadd.f32 %v3557, %v4241
        %v4284 = vadd.f32 %v3558, %v4244
        %v4285 = vadd.f32 %v3559, %v4249
        %v4286 = vadd.f32 %v3560, %v4252
        %v4287 = vld [vmem:[%s3202] sm:$0xe]
        %v4288 = vld [vmem:[%s3202 + $0xc] sm:$0xe]
        %v4289 = vld [vmem:[%s3202 + $0x18] sm:$0xe]
        %v4290 = vld [vmem:[%s3202 + $0x24] sm:$0xe]
        %v4291 = vld [vmem:[%s3202 + $0x30] sm:$0xe]
        %v4292 = vld [vmem:[%s3202 + $0x3c] sm:$0xe]
        %v4293 = vld [vmem:[%s3202 + $0x48] sm:$0xe]
        %v4294 = vld [vmem:[%s3202 + $0x54] sm:$0xe]
        %v4295 = vld [vmem:[%s3202 + $0x60] sm:$0xe]
        %v4296 = vld [vmem:[%s3202 + $0x6c] sm:$0xe]
        %v4297 = vld [vmem:[%s3202 + $0x78] sm:$0xe]
        %v4298 = vld [vmem:[%s3202 + $0x84] sm:$0xe]
        %v4299 = vld [vmem:[%s3202 + $0x90] sm:$0xe]
        %v4300 = vld [vmem:[%s3202 + $0x9c] sm:$0xe]
        %v4301 = vld [vmem:[%s3202 + $0xa8] sm:$0xe]
        %v4302 = vld [vmem:[%s3202 + $0xb4] sm:$0xe]
        %v4351 = vrot.slane %v4287, 5
        %v4352 = vrot.slane %v4351, 4
        %v4353 = vrot.slane %v3562, 5
        %v4354 = vsel %vm1240, %v4352, %v4353
        %v4355 = vrot.slane %v4353, 4
        %v4356 = vrot.slane %v3563, 5
        %v4357 = vsel %vm1240, %v4355, %v4356
        %v4358 = vrot.slane %v4288, 5
        %v4359 = vrot.slane %v4358, 4
        %v4360 = vrot.slane %v3565, 5
        %v4361 = vsel %vm1240, %v4359, %v4360
        %v4362 = vrot.slane %v4360, 4
        %v4363 = vrot.slane %v3566, 5
        %v4364 = vsel %vm1240, %v4362, %v4363
        %v4365 = vrot.slane %v4289, 5
        %v4366 = vrot.slane %v4365, 4
        %v4367 = vrot.slane %v3568, 5
        %v4368 = vsel %vm1240, %v4366, %v4367
        %v4369 = vrot.slane %v4367, 4
        %v4370 = vrot.slane %v3569, 5
        %v4371 = vsel %vm1240, %v4369, %v4370
        %v4372 = vrot.slane %v4290, 5
        %v4373 = vrot.slane %v4372, 4
        %v4374 = vrot.slane %v3571, 5
        %v4375 = vsel %vm1240, %v4373, %v4374
        %v4376 = vrot.slane %v4374, 4
        %v4377 = vrot.slane %v3572, 5
        %v4378 = vsel %vm1240, %v4376, %v4377
        %v4379 = vrot.slane %v4291, 5
        %v4380 = vrot.slane %v4379, 4
        %v4381 = vrot.slane %v3574, 5
        %v4382 = vsel %vm1240, %v4380, %v4381
        %v4383 = vrot.slane %v4381, 4
        %v4384 = vrot.slane %v3575, 5
        %v4385 = vsel %vm1240, %v4383, %v4384
        %v4386 = vrot.slane %v4292, 5
        %v4387 = vrot.slane %v4386, 4
        %v4388 = vrot.slane %v3577, 5
        %v4389 = vsel %vm1240, %v4387, %v4388
        %v4390 = vrot.slane %v4388, 4
        %v4391 = vrot.slane %v3578, 5
        %v4392 = vsel %vm1240, %v4390, %v4391
        %v4393 = vrot.slane %v4293, 5
        %v4394 = vrot.slane %v4393, 4
        %v4395 = vrot.slane %v3580, 5
        %v4396 = vsel %vm1240, %v4394, %v4395
        %v4397 = vrot.slane %v4395, 4
        %v4398 = vrot.slane %v3581, 5
        %v4399 = vsel %vm1240, %v4397, %v4398
        %v4400 = vrot.slane %v4294, 5
        %v4401 = vrot.slane %v4400, 4
        %v4402 = vrot.slane %v3583, 5
        %v4403 = vsel %vm1240, %v4401, %v4402
        %v4404 = vrot.slane %v4402, 4
        %v4405 = vrot.slane %v3584, 5
        %v4406 = vsel %vm1240, %v4404, %v4405
        %v4407 = vrot.slane %v4295, 5
        %v4408 = vrot.slane %v4407, 4
        %v4409 = vrot.slane %v3586, 5
        %v4410 = vsel %vm1240, %v4408, %v4409
        %v4411 = vrot.slane %v4409, 4
        %v4412 = vrot.slane %v3587, 5
        %v4413 = vsel %vm1240, %v4411, %v4412
        %v4414 = vrot.slane %v4296, 5
        %v4415 = vrot.slane %v4414, 4
        %v4416 = vrot.slane %v3589, 5
        %v4417 = vsel %vm1240, %v4415, %v4416
        %v4418 = vrot.slane %v4416, 4
        %v4419 = vrot.slane %v3590, 5
        %v4420 = vsel %vm1240, %v4418, %v4419
        %v4421 = vrot.slane %v4297, 5
        %v4422 = vrot.slane %v4421, 4
        %v4423 = vrot.slane %v3592, 5
        %v4424 = vsel %vm1240, %v4422, %v4423
        %v4425 = vrot.slane %v4423, 4
        %v4426 = vrot.slane %v3593, 5
        %v4427 = vsel %vm1240, %v4425, %v4426
        %v4428 = vrot.slane %v4298, 5
        %v4429 = vrot.slane %v4428, 4
        %v4430 = vrot.slane %v3595, 5
        %v4431 = vsel %vm1240, %v4429, %v4430
        %v4432 = vrot.slane %v4430, 4
        %v4433 = vrot.slane %v3596, 5
        %v4434 = vsel %vm1240, %v4432, %v4433
        %v4435 = vrot.slane %v4299, 5
        %v4436 = vrot.slane %v4435, 4
        %v4437 = vrot.slane %v3598, 5
        %v4438 = vsel %vm1240, %v4436, %v4437
        %v4439 = vrot.slane %v4437, 4
        %v4440 = vrot.slane %v3599, 5
        %v4441 = vsel %vm1240, %v4439, %v4440
        %v4442 = vrot.slane %v4300, 5
        %v4443 = vrot.slane %v4442, 4
        %v4444 = vrot.slane %v3601, 5
        %v4445 = vsel %vm1240, %v4443, %v4444
        %v4446 = vrot.slane %v4444, 4
        %v4447 = vrot.slane %v3602, 5
        %v4448 = vsel %vm1240, %v4446, %v4447
        %v4449 = vrot.slane %v4301, 5
        %v4450 = vrot.slane %v4449, 4
        %v4451 = vrot.slane %v3604, 5
        %v4452 = vsel %vm1240, %v4450, %v4451
        %v4453 = vrot.slane %v4451, 4
        %v4454 = vrot.slane %v3605, 5
        %v4455 = vsel %vm1240, %v4453, %v4454
        %v4456 = vrot.slane %v4302, 5
        %v4457 = vrot.slane %v4456, 4
        %v4458 = vrot.slane %v3607, 5
        %v4459 = vsel %vm1240, %v4457, %v4458
        %v4460 = vrot.slane %v4458, 4
        %v4461 = vrot.slane %v3608, 5
        %v4462 = vsel %vm1240, %v4460, %v4461
        %s4463 = scalar_lea.vmem %s1, 16
        %v4464 = vld [vmem:[%s4463] sm:$0x3]
        %v4465 = vunpack.c.l.b16 %v4354
        %v4466 = vunpack.c.l.b16 %v4357
        %v4467 = vunpack.c.l.b16 %v4361
        %v4468 = vunpack.c.l.b16 %v4364
        %v4469 = vunpack.c.l.b16 %v4368
        %v4470 = vunpack.c.l.b16 %v4371
        %v4471 = vunpack.c.l.b16 %v4375
        %v4472 = vunpack.c.l.b16 %v4378
        %v4473 = vunpack.c.l.b16 %v4382
        %v4474 = vunpack.c.l.b16 %v4385
        %v4475 = vunpack.c.l.b16 %v4389
        %v4476 = vunpack.c.l.b16 %v4392
        %v4477 = vunpack.c.l.b16 %v4396
        %v4478 = vunpack.c.l.b16 %v4399
        %v4479 = vunpack.c.l.b16 %v4403
        %v4480 = vunpack.c.l.b16 %v4406
        %v4481 = vunpack.c.l.b16 %v4410
        %v4482 = vunpack.c.l.b16 %v4413
        %v4483 = vunpack.c.l.b16 %v4417
        %v4484 = vunpack.c.l.b16 %v4420
        %v4485 = vunpack.c.l.b16 %v4424
        %v4486 = vunpack.c.l.b16 %v4427
        %v4487 = vunpack.c.l.b16 %v4431
        %v4488 = vunpack.c.l.b16 %v4434
        %v4489 = vunpack.c.l.b16 %v4438
        %v4490 = vunpack.c.l.b16 %v4441
        %v4491 = vunpack.c.l.b16 %v4445
        %v4492 = vunpack.c.l.b16 %v4448
        %v4493 = vunpack.c.l.b16 %v4452
        %v4494 = vunpack.c.l.b16 %v4455
        %v4495 = vunpack.c.l.b16 %v4459
        %v4496 = vunpack.c.l.b16 %v4462
        %v4497 = vpack.c.b16 %v4466, %v4465
        %v4498 = vpack.c.b16 %v4468, %v4467
        %v4499 = vpack.c.b16 %v4470, %v4469
        %v4500 = vpack.c.b16 %v4472, %v4471
        %v4501 = vpack.c.b16 %v4474, %v4473
        %v4502 = vpack.c.b16 %v4476, %v4475
        %v4503 = vpack.c.b16 %v4478, %v4477
        %v4504 = vpack.c.b16 %v4480, %v4479
        %v4505 = vpack.c.b16 %v4482, %v4481
        %v4506 = vpack.c.b16 %v4484, %v4483
        %v4507 = vpack.c.b16 %v4486, %v4485
        %v4508 = vpack.c.b16 %v4488, %v4487
        %v4509 = vpack.c.b16 %v4490, %v4489
        %v4510 = vpack.c.b16 %v4492, %v4491
        %v4511 = vpack.c.b16 %v4494, %v4493
        %v4512 = vpack.c.b16 %v4496, %v4495
        %v4514 = vsel %vm684, %v4497, 0
        %v4517 = vsel %vm684, %v4498, 0
        %v4520 = vsel %vm684, %v4499, 0
        %v4523 = vsel %vm684, %v4500, 0
        %v4526 = vsel %vm684, %v4501, 0
        %v4529 = vsel %vm684, %v4502, 0
        %v4532 = vsel %vm684, %v4503, 0
        %v4535 = vsel %vm684, %v4504, 0
        %v4538 = vsel %vm684, %v4505, 0
        %v4541 = vsel %vm684, %v4506, 0
        %v4544 = vsel %vm684, %v4507, 0
        %v4547 = vsel %vm684, %v4508, 0
        %v4550 = vsel %vm684, %v4509, 0
        %v4553 = vsel %vm684, %v4510, 0
        %v4556 = vsel %vm684, %v4511, 0
        %v4559 = vsel %vm684, %v4512, 0
        %v4562 = vsel %vm733, %v4464, 0
        %4564 = vmatprep.subr.bf16.mxu0 0
        %4565 = vmatpush1.bf16.msra.mxu0 0
        %4566 = vmatprep.subr.bf16.mxu0 0
        %4567 = vmatpush1.bf16.msra.mxu0 0
        %4568 = vmatprep.subr.bf16.mxu0 0
        %4569 = vmatpush1.bf16.msra.mxu0 0
        %4570 = vmatprep.subr.bf16.mxu0 0
        %4571 = vmatpush1.bf16.msra.mxu0 0
        %4572 = vmatprep.subr.bf16.mxu0 0
        %4573 = vmatpush1.bf16.msra.mxu0 0
        %4574 = vmatprep.subr.bf16.mxu0 0
        %4575 = vmatpush1.bf16.msra.mxu0 0
        %4576 = vmatprep.subr.bf16.mxu0 0
        %4577 = vmatpush1.bf16.msra.mxu0 0
        %4578 = vmatprep.subr.bf16.mxu0 0
        %4579 = vmatpush1.bf16.msra.mxu0 %v4562
        %4580 = vmatprep.subr.bf16.mxu0 0
        %4581 = vmatpush2.bf16.msra.mxu0 0
        %4582 = vmatprep.subr.bf16.mxu0 0
        %4583 = vmatpush2.bf16.msra.mxu0 0
        %4584 = vmatprep.subr.bf16.mxu0 0
        %4585 = vmatpush2.bf16.msra.mxu0 0
        %4586 = vmatprep.subr.bf16.mxu0 0
        %4587 = vmatpush2.bf16.msra.mxu0 0
        %4588 = vmatprep.subr.bf16.mxu0 0
        %4589 = vmatpush2.bf16.msra.mxu0 0
        %4590 = vmatprep.subr.bf16.mxu0 0
        %4591 = vmatpush2.bf16.msra.mxu0 0
        %4592 = vmatprep.subr.bf16.mxu0 0
        %4593 = vmatpush2.bf16.msra.mxu0 0
        %4594 = vmatprep.subr.bf16.mxu0 0
        %4595 = vmatpush2.bf16.msra.mxu0 0
        %4596 = vmatprep.mubr.bf16.mxu0 0
        %4597 = vmatmul.mubr.bf16.gmra.mxu0 %v4514
        %v4598 = vpop.f32.mrf.mxu0
        %v4599 = vadd.f32 0.0, %v4598
        %v4600 = vpop.f32.mrf.mxu0
        %v4601 = vpop.f32.mrf.mxu0
        %v4602 = vadd.f32 0.0, %v4601
        %v4603 = vpop.f32.mrf.mxu0
        %4604 = vmatprep.mubr.bf16.mxu0 0
        %4605 = vmatmul.mubr.bf16.gmra.mxu0 %v4517
        %v4606 = vpop.f32.mrf.mxu0
        %v4607 = vadd.f32 0.0, %v4606
        %v4608 = vpop.f32.mrf.mxu0
        %v4609 = vpop.f32.mrf.mxu0
        %v4610 = vadd.f32 0.0, %v4609
        %v4611 = vpop.f32.mrf.mxu0
        %4612 = vmatprep.mubr.bf16.mxu0 0
        %4613 = vmatmul.mubr.bf16.gmra.mxu0 %v4520
        %v4614 = vpop.f32.mrf.mxu0
        %v4615 = vadd.f32 0.0, %v4614
        %v4616 = vpop.f32.mrf.mxu0
        %v4617 = vpop.f32.mrf.mxu0
        %v4618 = vadd.f32 0.0, %v4617
        %v4619 = vpop.f32.mrf.mxu0
        %4620 = vmatprep.mubr.bf16.mxu0 0
        %4621 = vmatmul.mubr.bf16.gmra.mxu0 %v4523
        %v4622 = vpop.f32.mrf.mxu0
        %v4623 = vadd.f32 0.0, %v4622
        %v4624 = vpop.f32.mrf.mxu0
        %v4625 = vpop.f32.mrf.mxu0
        %v4626 = vadd.f32 0.0, %v4625
        %v4627 = vpop.f32.mrf.mxu0
        %4628 = vmatprep.mubr.bf16.mxu0 0
        %4629 = vmatmul.mubr.bf16.gmra.mxu0 %v4526
        %v4630 = vpop.f32.mrf.mxu0
        %v4631 = vadd.f32 0.0, %v4630
        %v4632 = vpop.f32.mrf.mxu0
        %v4633 = vpop.f32.mrf.mxu0
        %v4634 = vadd.f32 0.0, %v4633
        %v4635 = vpop.f32.mrf.mxu0
        %4636 = vmatprep.mubr.bf16.mxu0 0
        %4637 = vmatmul.mubr.bf16.gmra.mxu0 %v4529
        %v4638 = vpop.f32.mrf.mxu0
        %v4639 = vadd.f32 0.0, %v4638
        %v4640 = vpop.f32.mrf.mxu0
        %v4641 = vpop.f32.mrf.mxu0
        %v4642 = vadd.f32 0.0, %v4641
        %v4643 = vpop.f32.mrf.mxu0
        %4644 = vmatprep.mubr.bf16.mxu0 0
        %4645 = vmatmul.mubr.bf16.gmra.mxu0 %v4532
        %v4646 = vpop.f32.mrf.mxu0
        %v4647 = vadd.f32 0.0, %v4646
        %v4648 = vpop.f32.mrf.mxu0
        %v4649 = vpop.f32.mrf.mxu0
        %v4650 = vadd.f32 0.0, %v4649
        %v4651 = vpop.f32.mrf.mxu0
        %4652 = vmatprep.mubr.bf16.mxu0 0
        %4653 = vmatmul.mubr.bf16.gmra.mxu0 %v4535
        %v4654 = vpop.f32.mrf.mxu0
        %v4655 = vadd.f32 0.0, %v4654
        %v4656 = vpop.f32.mrf.mxu0
        %v4657 = vpop.f32.mrf.mxu0
        %v4658 = vadd.f32 0.0, %v4657
        %v4659 = vpop.f32.mrf.mxu0
        %4660 = vmatprep.mubr.bf16.mxu0 0
        %4661 = vmatmul.mubr.bf16.gmra.mxu0 %v4538
        %v4662 = vpop.f32.mrf.mxu0
        %v4663 = vadd.f32 0.0, %v4662
        %v4664 = vpop.f32.mrf.mxu0
        %v4665 = vpop.f32.mrf.mxu0
        %v4666 = vadd.f32 0.0, %v4665
        %v4667 = vpop.f32.mrf.mxu0
        %4668 = vmatprep.mubr.bf16.mxu0 0
        %4669 = vmatmul.mubr.bf16.gmra.mxu0 %v4541
        %v4670 = vpop.f32.mrf.mxu0
        %v4671 = vadd.f32 0.0, %v4670
        %v4672 = vpop.f32.mrf.mxu0
        %v4673 = vpop.f32.mrf.mxu0
        %v4674 = vadd.f32 0.0, %v4673
        %v4675 = vpop.f32.mrf.mxu0
        %4676 = vmatprep.mubr.bf16.mxu0 0
        %4677 = vmatmul.mubr.bf16.gmra.mxu0 %v4544
        %v4678 = vpop.f32.mrf.mxu0
        %v4679 = vadd.f32 0.0, %v4678
        %v4680 = vpop.f32.mrf.mxu0
        %v4681 = vpop.f32.mrf.mxu0
        %v4682 = vadd.f32 0.0, %v4681
        %v4683 = vpop.f32.mrf.mxu0
        %4684 = vmatprep.mubr.bf16.mxu0 0
        %4685 = vmatmul.mubr.bf16.gmra.mxu0 %v4547
        %v4686 = vpop.f32.mrf.mxu0
        %v4687 = vadd.f32 0.0, %v4686
        %v4688 = vpop.f32.mrf.mxu0
        %v4689 = vpop.f32.mrf.mxu0
        %v4690 = vadd.f32 0.0, %v4689
        %v4691 = vpop.f32.mrf.mxu0
        %4692 = vmatprep.mubr.bf16.mxu0 0
        %4693 = vmatmul.mubr.bf16.gmra.mxu0 %v4550
        %v4694 = vpop.f32.mrf.mxu0
        %v4695 = vadd.f32 0.0, %v4694
        %v4696 = vpop.f32.mrf.mxu0
        %v4697 = vpop.f32.mrf.mxu0
        %v4698 = vadd.f32 0.0, %v4697
        %v4699 = vpop.f32.mrf.mxu0
        %4700 = vmatprep.mubr.bf16.mxu0 0
        %4701 = vmatmul.mubr.bf16.gmra.mxu0 %v4553
        %v4702 = vpop.f32.mrf.mxu0
        %v4703 = vadd.f32 0.0, %v4702
        %v4704 = vpop.f32.mrf.mxu0
        %v4705 = vpop.f32.mrf.mxu0
        %v4706 = vadd.f32 0.0, %v4705
        %v4707 = vpop.f32.mrf.mxu0
        %4708 = vmatprep.mubr.bf16.mxu0 0
        %4709 = vmatmul.mubr.bf16.gmra.mxu0 %v4556
        %v4710 = vpop.f32.mrf.mxu0
        %v4711 = vadd.f32 0.0, %v4710
        %v4712 = vpop.f32.mrf.mxu0
        %v4713 = vpop.f32.mrf.mxu0
        %v4714 = vadd.f32 0.0, %v4713
        %v4715 = vpop.f32.mrf.mxu0
        %4716 = vmatprep.mubr.bf16.mxu0 0
        %4717 = vmatmul.mubr.bf16.gmra.mxu0 %v4559
        %v4718 = vpop.f32.mrf.mxu0
        %v4719 = vadd.f32 0.0, %v4718
        %v4720 = vpop.f32.mrf.mxu0
        %v4721 = vpop.f32.mrf.mxu0
        %v4722 = vadd.f32 0.0, %v4721
        %v4723 = vpop.f32.mrf.mxu0
        %4724 = vdwg.mxu0
        %v4725 = vadd.f32 %v4255, %v4599
        %v4726 = vadd.f32 %v4256, %v4602
        %v4727 = vadd.f32 %v4257, %v4607
        %v4728 = vadd.f32 %v4258, %v4610
        %v4729 = vadd.f32 %v4259, %v4615
        %v4730 = vadd.f32 %v4260, %v4618
        %v4731 = vadd.f32 %v4261, %v4623
        %v4732 = vadd.f32 %v4262, %v4626
        %v4733 = vadd.f32 %v4263, %v4631
        %v4734 = vadd.f32 %v4264, %v4634
        %v4735 = vadd.f32 %v4265, %v4639
        %v4736 = vadd.f32 %v4266, %v4642
        %v4737 = vadd.f32 %v4267, %v4647
        %v4738 = vadd.f32 %v4268, %v4650
        %v4739 = vadd.f32 %v4269, %v4655
        %v4740 = vadd.f32 %v4270, %v4658
        %v4741 = vadd.f32 %v4271, %v4663
        %v4742 = vadd.f32 %v4272, %v4666
        %v4743 = vadd.f32 %v4273, %v4671
        %v4744 = vadd.f32 %v4274, %v4674
        %v4745 = vadd.f32 %v4275, %v4679
        %v4746 = vadd.f32 %v4276, %v4682
        %v4747 = vadd.f32 %v4277, %v4687
        %v4748 = vadd.f32 %v4278, %v4690
        %v4749 = vadd.f32 %v4279, %v4695
        %v4750 = vadd.f32 %v4280, %v4698
        %v4751 = vadd.f32 %v4281, %v4703
        %v4752 = vadd.f32 %v4282, %v4706
        %v4753 = vadd.f32 %v4283, %v4711
        %v4754 = vadd.f32 %v4284, %v4714
        %v4755 = vadd.f32 %v4285, %v4719
        %v4756 = vadd.f32 %v4286, %v4722
        %v4757 = vld [vmem:[%s2] sm:$0x1]
        %v4759 = vlaneseq
        %v4760 = vshrl.u32 %v4759, 7
        %v4761 = vsub.s32 0, %v4760
        %v4762 = vrot.slane %v4757, %v4761
        %v4764 = vadd.f32 %v4725, %v4762
        %v4765 = vadd.f32 %v4726, %v4762
        %v4766 = vadd.f32 %v4727, %v4762
        %v4767 = vadd.f32 %v4728, %v4762
        %v4768 = vadd.f32 %v4729, %v4762
        %v4769 = vadd.f32 %v4730, %v4762
        %v4770 = vadd.f32 %v4731, %v4762
        %v4771 = vadd.f32 %v4732, %v4762
        %v4772 = vadd.f32 %v4733, %v4762
        %v4773 = vadd.f32 %v4734, %v4762
        %v4774 = vadd.f32 %v4735, %v4762
        %v4775 = vadd.f32 %v4736, %v4762
        %v4776 = vadd.f32 %v4737, %v4762
        %v4777 = vadd.f32 %v4738, %v4762
        %v4778 = vadd.f32 %v4739, %v4762
        %v4779 = vadd.f32 %v4740, %v4762
        %v4780 = vadd.f32 %v4741, %v4762
        %v4781 = vadd.f32 %v4742, %v4762
        %v4782 = vadd.f32 %v4743, %v4762
        %v4783 = vadd.f32 %v4744, %v4762
        %v4784 = vadd.f32 %v4745, %v4762
        %v4785 = vadd.f32 %v4746, %v4762
        %v4786 = vadd.f32 %v4747, %v4762
        %v4787 = vadd.f32 %v4748, %v4762
        %v4788 = vadd.f32 %v4749, %v4762
        %v4789 = vadd.f32 %v4750, %v4762
        %v4790 = vadd.f32 %v4751, %v4762
        %v4791 = vadd.f32 %v4752, %v4762
        %v4792 = vadd.f32 %v4753, %v4762
        %v4793 = vadd.f32 %v4754, %v4762
        %v4794 = vadd.f32 %v4755, %v4762
        %v4795 = vadd.f32 %v4756, %v4762
        %4796 = vst [vmem:[%s187] sm:$0xff] %v4764
        %4797 = vst [vmem:[%s187 + $0x8] sm:$0xff] %v4765
        %4798 = vst [vmem:[%s187 + $0x10] sm:$0xff] %v4766
        %4799 = vst [vmem:[%s187 + $0x18] sm:$0xff] %v4767
        %4800 = vst [vmem:[%s187 + $0x20] sm:$0xff] %v4768
        %4801 = vst [vmem:[%s187 + $0x28] sm:$0xff] %v4769
        %4802 = vst [vmem:[%s187 + $0x30] sm:$0xff] %v4770
        %4803 = vst [vmem:[%s187 + $0x38] sm:$0xff] %v4771
        %4804 = vst [vmem:[%s187 + $0x40] sm:$0xff] %v4772
        %4805 = vst [vmem:[%s187 + $0x48] sm:$0xff] %v4773
        %4806 = vst [vmem:[%s187 + $0x50] sm:$0xff] %v4774
        %4807 = vst [vmem:[%s187 + $0x58] sm:$0xff] %v4775
        %4808 = vst [vmem:[%s187 + $0x60] sm:$0xff] %v4776
        %4809 = vst [vmem:[%s187 + $0x68] sm:$0xff] %v4777
        %4810 = vst [vmem:[%s187 + $0x70] sm:$0xff] %v4778
        %4811 = vst [vmem:[%s187 + $0x78] sm:$0xff] %v4779
        %4812 = vst [vmem:[%s187 + $0x80] sm:$0xff] %v4780
        %4813 = vst [vmem:[%s187 + $0x88] sm:$0xff] %v4781
        %4814 = vst [vmem:[%s187 + $0x90] sm:$0xff] %v4782
        %4815 = vst [vmem:[%s187 + $0x98] sm:$0xff] %v4783
        %4816 = vst [vmem:[%s187 + $0xa0] sm:$0xff] %v4784
        %4817 = vst [vmem:[%s187 + $0xa8] sm:$0xff] %v4785
        %4818 = vst [vmem:[%s187 + $0xb0] sm:$0xff] %v4786
        %4819 = vst [vmem:[%s187 + $0xb8] sm:$0xff] %v4787
        %4820 = vst [vmem:[%s187 + $0xc0] sm:$0xff] %v4788
        %4821 = vst [vmem:[%s187 + $0xc8] sm:$0xff] %v4789
        %4822 = vst [vmem:[%s187 + $0xd0] sm:$0xff] %v4790
        %4823 = vst [vmem:[%s187 + $0xd8] sm:$0xff] %v4791
        %4824 = vst [vmem:[%s187 + $0xe0] sm:$0xff] %v4792
        %4825 = vst [vmem:[%s187 + $0xe8] sm:$0xff] %v4793
        %4826 = vst [vmem:[%s187 + $0xf0] sm:$0xff] %v4794
        %4827 = vst [vmem:[%s187 + $0xf8] sm:$0xff] %v4795
        %s4828 = sand.u32 %s109, 1
        %s4829 = scalar_lea.sflag [#allocation3], %s4828
        %s4830 = sand.u32 %s109, 1
        %s4831 = smul.addr %s4830, 256
        %s4832 = scalar_lea.vmem [#allocation2], %s4831
        // Predicated region
        $region33: #{tpu_custom_call.1} parent=31 // pred_check
          %p4833 = pneg %p119
        $region34: #{tpu_custom_call.1} parent=31 // pred_check_branch
          %4835 = sbr.rel (%p4833) target = $region36
        $region35: #{tpu_custom_call.1} parent=31 // pred_region
          %s4837 = ssub.s32 4096, 4096
          %4838 = vsyncadd %s4829, %s4837
          %s4839 = smul.addr %s22, 32
          %s4840 = smul.addr %s21, 32
          %s4841 = sadd.s32 %s4839, %s4840
          %s4842 = smul.addr %s4841, 128
          %s4843 = scalar_lea.hbm %s3, %s4842
          %s4844 = sshll.u32 %s4832, 4
          %s4845 = int_to_ptr.vmem [resolvable:$true] %s4844
          %4850 = dma.vmem_to_hbm [thread:$0]  %s4845, 4096, %s4843, %s4829, 128, 128, 8
        $region36: #{tpu_custom_call.1} parent=31 // pred_fallthru
          _
      $region32: #{tpu_custom_call.1} parent=5 // pred_fallthru
        _
      %p4851 = scmp.le.s32.totalorder 2, %s12
      // Predicated region
      $region37: #{tpu_custom_call.1} parent=5 // pred_check
        %p4852 = pneg %p4851
      $region38: #{tpu_custom_call.1} parent=5 // pred_check_branch
        %4854 = sbr.rel (%p4852) target = $region40
      $region39: #{tpu_custom_call.1} parent=5 // pred_region
        %s4855 = ssub.s32 %s12, 2
        // Predicated region
        $region41: #{tpu_custom_call.1} parent=39 // pred_check
          %p4856 = pneg %p125
        $region42: #{tpu_custom_call.1} parent=39 // pred_check_branch
          %4858 = sbr.rel (%p4856) target = $region44
        $region43: #{tpu_custom_call.1} parent=39 // pred_region
          %s4859 = sand.u32 %s110, 1
          %s4860 = scalar_lea.sflag [#allocation3], %s4859
          %s4861 = sand.u32 %s110, 1
          %s4862 = smul.addr %s4861, 256
          %s4863 = scalar_lea.vmem [#allocation2], %s4862
          %4864 = dma.done %s4860, 4096
        $region44: #{tpu_custom_call.1} parent=39 // pred_fallthru
          _
      $region40: #{tpu_custom_call.1} parent=5 // pred_fallthru
        _
    $region6: #{tpu_custom_call.1} parent=1 // loop_footer
      %s16 = sadd.s32 1, %s12
    $region7: #{tpu_custom_call.1} parent=1 // loop_footer_branch
      %11 = sbr.rel target = $region3
    $region8: #{tpu_custom_call.1} parent=1 // loop_exit
      _
    %4865 = vsyncpa [#allocation3], 1
    %s4866 = scalar_lea.sflag [#allocation3], 1
    %4867 = vsyncpa %s4866, 1

</llo_original>
